<compile_context>
chip_gen: v7x
topology: tpu7x:2x2x1
jax: 0.10.0
libtpu: 0.0.40
codegen_flags: <defaults>
</compile_context>

<pallas_src>
import functools

import jax
import jax.numpy as jnp
from jax.experimental import pallas as pl
from jax.experimental.pallas import tpu as pltpu

NUM_JOINTS = 16  # MPII


# ----------------------------------------------------------------------------
# Kernel 1: direct 3x3 stride-1 conv (tap-reduction grid axis, no im2col)
# ----------------------------------------------------------------------------
def _conv3x3_s1_kernel(x_ref, w_ref, b_ref, o_ref, acc_ref, *, relu):
    i = pl.program_id(2)                      # tap-row index (reduction axis)
    kw = w_ref.shape[1]
    Wo = o_ref.shape[2]

    @pl.when(i == 0)
    def _():
        acc_ref[...] = jnp.zeros_like(acc_ref)

    acc = acc_ref[...]
    for j in range(kw):                       # static unrolled tap-column loop
        a = x_ref[0, 0, j:j + Wo, :].astype(jnp.bfloat16)   # (Wo, Cin)
        wj = w_ref[0, j]                                    # (Cin, Cout) bf16
        acc = acc + jnp.dot(a, wj, preferred_element_type=jnp.float32)
    acc_ref[...] = acc

    @pl.when(i == pl.num_programs(2) - 1)
    def _():
        r = acc_ref[...] + b_ref[...]
        if relu:
            r = jnp.maximum(r, 0.0)
        o_ref[...] = r.reshape(o_ref.shape).astype(o_ref.dtype)


def conv3x3_s1(x_nhwc, w_oihw, bias, *, relu=True):
    """3x3, stride 1, pad 1 conv on NHWC input.  Tap axis is a grid reduction."""
    B, H, W, Cin = x_nhwc.shape
    Cout, Cin2, kh, kw = w_oihw.shape
    assert (kh, kw) == (3, 3) and Cin2 == Cin
    pad = 1
    xp = jnp.pad(x_nhwc, ((0, 0), (pad, pad), (pad, pad), (0, 0)))
    Hp, Wp = H + 2 * pad, W + 2 * pad
    Ho, Wo = H, W
    # torch [Cout, Cin, kh, kw] -> [kh, kw, Cin, Cout], bf16 for the MXU
    w = jnp.transpose(w_oihw, (2, 3, 1, 0)).astype(jnp.bfloat16)
    b2 = bias.reshape(1, Cout).astype(jnp.float32)

    return pl.pallas_call(
        functools.partial(_conv3x3_s1_kernel, relu=relu),
        out_shape=jax.ShapeDtypeStruct((B, Ho, Wo, Cout), jnp.float32),
        grid=(B, Ho, kh),
        in_specs=[
            pl.BlockSpec((1, 1, Wp, Cin), lambda b, h, i: (b, h + i, 0, 0)),
            pl.BlockSpec((1, kw, Cin, Cout), lambda b, h, i: (i, 0, 0, 0)),
            pl.BlockSpec((1, Cout), lambda b, h, i: (0, 0)),
        ],
        out_specs=pl.BlockSpec((1, 1, Wo, Cout), lambda b, h, i: (b, h, 0, 0)),
        scratch_shapes=[pltpu.VMEM((Wo, Cout), jnp.float32)],
        compiler_params=pltpu.CompilerParams(
            dimension_semantics=("parallel", "parallel", "arbitrary")),
    )(xp, w, b2)


# ----------------------------------------------------------------------------
# Kernel 2: row-tiled matmul + bias (+ReLU)  (used for the stride-2 stem convs)
# ----------------------------------------------------------------------------
def _matmul_bias_kernel(a_ref, w_ref, b_ref, o_ref, *, relu):
    acc = jnp.dot(a_ref[...], w_ref[...], preferred_element_type=jnp.float32)
    acc = acc + b_ref[...]
    if relu:
        acc = jnp.maximum(acc, 0.0)
    o_ref[...] = acc.astype(o_ref.dtype)


def matmul_bias(a_bf16, w_bf16, bias, *, relu, tm=256):
    M, K = a_bf16.shape
    K2, N = w_bf16.shape
    assert K == K2
    tm = min(tm, M)
    return pl.pallas_call(
        functools.partial(_matmul_bias_kernel, relu=relu),
        out_shape=jax.ShapeDtypeStruct((M, N), jnp.float32),
        grid=(pl.cdiv(M, tm),),
        in_specs=[
            pl.BlockSpec((tm, K), lambda i: (i, 0)),
            pl.BlockSpec((K, N), lambda i: (0, 0)),
            pl.BlockSpec((1, N), lambda i: (0, 0)),
        ],
        out_specs=pl.BlockSpec((tm, N), lambda i: (i, 0)),
        compiler_params=pltpu.CompilerParams(dimension_semantics=("parallel",)),
    )(a_bf16, w_bf16, bias.reshape(1, N).astype(jnp.float32))


def conv2d_im2col(x_nhwc, w_oihw, bias, *, stride, padding, relu):
    """Generic conv via im2col + Pallas matmul (only used for stride-2 stem convs)."""
    B, H, W, Cin = x_nhwc.shape
    Cout, _, kh, kw = w_oihw.shape
    xp = jnp.pad(x_nhwc, ((0, 0), (padding, padding), (padding, padding), (0, 0)))
    Hp, Wp = xp.shape[1], xp.shape[2]
    Ho = (Hp - kh) // stride + 1
    Wo = (Wp - kw) // stride + 1
    taps = []
    for i in range(kh):
        for j in range(kw):
            taps.append(xp[:, i:i + stride * Ho:stride, j:j + stride * Wo:stride, :])
    a = jnp.concatenate(taps, axis=-1).reshape(B * Ho * Wo, kh * kw * Cin)
    a = a.astype(jnp.bfloat16)
    wmat = jnp.transpose(w_oihw, (2, 3, 1, 0)).reshape(kh * kw * Cin, Cout)
    y = matmul_bias(a, wmat.astype(jnp.bfloat16), bias, relu=relu)
    return y.reshape(B, Ho, Wo, Cout)


# ----------------------------------------------------------------------------
# Kernel 3: fused reception-block tail
#   heatmaps = feats @ Wh + bh
#   out      = relu(x + feats @ Wb + bb + heatmaps @ Wr + br)
# ----------------------------------------------------------------------------
def _rec_tail_kernel(f_ref, x_ref, wh_ref, bh_ref, wb_ref, bb_ref, wr_ref, br_ref,
                     hm_ref, out_ref):
    fb = f_ref[...].astype(jnp.bfloat16)
    hm = jnp.dot(fb, wh_ref[...], preferred_element_type=jnp.float32) + bh_ref[...]
    proj = jnp.dot(fb, wb_ref[...], preferred_element_type=jnp.float32) + bb_ref[...]
    reinj = jnp.dot(hm.astype(jnp.bfloat16), wr_ref[...],
                    preferred_element_type=jnp.float32) + br_ref[...]
    hm_ref[...] = hm.astype(hm_ref.dtype)
    out_ref[...] = jnp.maximum(x_ref[...] + proj + reinj, 0.0).astype(out_ref.dtype)


def rec_tail(feats_nhwc, x_nhwc, p):
    B, H, W, C = x_nhwc.shape
    NJ = p["wh"].shape[0]
    M = B * H * W
    feats2d = feats_nhwc.reshape(M, C)
    x2d = x_nhwc.reshape(M, C)

    # 1x1 conv weights -> [in, out] matrices, bf16 for the MXU
    wh = jnp.transpose(p["wh"].reshape(NJ, C), (1, 0)).astype(jnp.bfloat16)  # [C, NJ]
    wb = jnp.transpose(p["wb"].reshape(C, C), (1, 0)).astype(jnp.bfloat16)   # [C, C]
    wr = jnp.transpose(p["wr"].reshape(C, NJ), (1, 0)).astype(jnp.bfloat16)  # [NJ, C]
    bh = p["bh"].reshape(1, NJ).astype(jnp.float32)
    bb = p["bb"].reshape(1, C).astype(jnp.float32)
    br = p["br"].reshape(1, C).astype(jnp.float32)

    tm = min(256, M)
    hm2d, out2d = pl.pallas_call(
        _rec_tail_kernel,
        out_shape=(jax.ShapeDtypeStruct((M, NJ), jnp.float32),
                   jax.ShapeDtypeStruct((M, C), jnp.float32)),
        grid=(pl.cdiv(M, tm),),
        in_specs=[
            pl.BlockSpec((tm, C), lambda i: (i, 0)),     # feats rows
            pl.BlockSpec((tm, C), lambda i: (i, 0)),     # residual input rows
            pl.BlockSpec((C, NJ), lambda i: (0, 0)),
            pl.BlockSpec((1, NJ), lambda i: (0, 0)),
            pl.BlockSpec((C, C), lambda i: (0, 0)),
            pl.BlockSpec((1, C), lambda i: (0, 0)),
            pl.BlockSpec((NJ, C), lambda i: (0, 0)),
            pl.BlockSpec((1, C), lambda i: (0, 0)),
        ],
        out_specs=(pl.BlockSpec((tm, NJ), lambda i: (i, 0)),
                   pl.BlockSpec((tm, C), lambda i: (i, 0))),
        compiler_params=pltpu.CompilerParams(dimension_semantics=("parallel",)),
    )(feats2d, x2d, wh, bh, wb, bb, wr, br)
    return hm2d.reshape(B, H, W, NJ), out2d.reshape(B, H, W, C)


# ----------------------------------------------------------------------------
# Kernel 4: 2-D soft-argmax (row-tiled, coords via in-kernel iota)
# ----------------------------------------------------------------------------
def _softargmax_kernel(h_ref, o_ref, *, H, W):
    h = h_ref[...].astype(jnp.float32)                       # (tr, H*W)
    m = jnp.max(h, axis=-1, keepdims=True)
    e = jnp.exp(h - m)
    s = jnp.sum(e, axis=-1, keepdims=True)
    p = e * pl.reciprocal(s, approx=True)                    # EUP slot
    # flattened index l = row*W + col  (H, W are powers of two here, so the
    # float divide/floor decomposition is exact)
    l = jax.lax.broadcasted_iota(jnp.int32, h.shape, 1).astype(jnp.float32)
    row = jnp.floor(l * (1.0 / W))
    col = l - row * W
    cx = (col + 0.5) * (1.0 / W)
    cy = (row + 0.5) * (1.0 / H)
    o_ref[:, 0:1] = jnp.sum(p * cx, axis=-1, keepdims=True)
    o_ref[:, 1:2] = jnp.sum(p * cy, axis=-1, keepdims=True)


def softargmax2d(heatmaps_nchw):
    """heatmaps: [B, NJ, H, W] -> pose [B, NJ, 2] (normalized x, y)."""
    B, NJ, H, W = heatmaps_nchw.shape
    L = H * W
    R = B * NJ
    rows = heatmaps_nchw.reshape(R, L)
    tr = 256 if R >= 256 else R
    pose = pl.pallas_call(
        functools.partial(_softargmax_kernel, H=H, W=W),
        out_shape=jax.ShapeDtypeStruct((R, 2), jnp.float32),
        grid=(pl.cdiv(R, tr),),
        in_specs=[pl.BlockSpec((tr, L), lambda i: (i, 0))],
        out_specs=pl.BlockSpec((tr, 2), lambda i: (i, 0)),
        compiler_params=pltpu.CompilerParams(dimension_semantics=("parallel",)),
    )(rows)
    return pose.reshape(B, NJ, 2)


# ----------------------------------------------------------------------------
# Model: Stem + ReceptionBlock x4 = Mpii_4
# ----------------------------------------------------------------------------
def _winit(key, shape, scale=0.1):
    return scale * jax.random.normal(key, shape, dtype=jnp.float32)


def init_params(key, cin=3, c_stem=16, nj=NUM_JOINTS):
    ks = jax.random.split(key, 10)
    c1, c2 = 8, 8
    stem = dict(
        w1=_winit(ks[0], (c1, cin, 3, 3)), b1=_winit(ks[1], (c1,)),
        w2=_winit(ks[2], (c2, c1, 3, 3)), b2=_winit(ks[3], (c2,)),
        w3=_winit(ks[4], (c_stem, c2, 3, 3)), b3=_winit(ks[5], (c_stem,)),
    )

    def rec_params(kk):
        k = jax.random.split(kk, 8)
        return dict(
            wa=_winit(k[0], (c_stem, c_stem, 3, 3)), ba=_winit(k[1], (c_stem,)),
            wh=_winit(k[2], (nj, c_stem, 1, 1)),     bh=_winit(k[3], (nj,)),
            wb=_winit(k[4], (c_stem, c_stem, 1, 1)), bb=_winit(k[5], (c_stem,)),
            wr=_winit(k[6], (c_stem, nj, 1, 1)),     br=_winit(k[7], (c_stem,)),
        )

    return dict(stem=stem,
                rec1=rec_params(ks[6]), rec2=rec_params(ks[7]),
                rec3=rec_params(ks[8]), rec4=rec_params(ks[9]))


def stem_forward(x_nhwc, p):
    # 3x3 s2 -> 3x3 s1 -> 3x3 s2 (downsample x4), conv+ReLU (BN folded)
    y = conv2d_im2col(x_nhwc, p["w1"], p["b1"], stride=2, padding=1, relu=True)
    y = conv3x3_s1(y, p["w2"], p["b2"], relu=True)
    y = conv2d_im2col(y, p["w3"], p["b3"], stride=2, padding=1, relu=True)
    return y


def reception_block(x_nhwc, p):
    """Returns (heatmaps[NCHW], pose, output[NHWC]) like deephar's ReceptionBlock."""
    feats = conv3x3_s1(x_nhwc, p["wa"], p["ba"], relu=True)          # direct conv
    hm_nhwc, out_nhwc = rec_tail(feats, x_nhwc, p)                   # fused tail
    heatmaps = jnp.transpose(hm_nhwc, (0, 3, 1, 2))                  # [B, NJ, H, W]
    pose = softargmax2d(heatmaps)                                    # [B, NJ, 2]
    return heatmaps, pose, out_nhwc


def mpii_4_forward(x_nchw, params):
    a = jnp.transpose(x_nchw, (0, 2, 3, 1))                          # NHWC once
    a = stem_forward(a, params["stem"])
    _, pose1, out1 = reception_block(a, params["rec1"])
    _, pose2, out2 = reception_block(out1, params["rec2"])
    _, pose3, out3 = reception_block(out2, params["rec3"])
    heatmaps, pose4, _ = reception_block(out3, params["rec4"])
    output1 = jnp.transpose(out1, (0, 3, 1, 2))                      # NCHW
    return (jnp.concatenate((pose1, pose2, pose3, pose4), axis=0),
            pose4, heatmaps, output1)


# ----------------------------------------------------------------------------
if __name__ == "__main__":
    key = jax.random.PRNGKey(0)
    k_x, k_p = jax.random.split(key)
    # small stand-in for the 3x256x256 MPII crops
    x = jax.random.normal(k_x, (2, 3, 32, 32), dtype=jnp.float32)
    params = init_params(k_p)

    poses, pose4, heatmaps, output1 = jax.jit(mpii_4_forward)(x, params)
    jax.block_until_ready((poses, pose4, heatmaps, output1))

    assert poses.shape == (8, NUM_JOINTS, 2)
    assert pose4.shape == (2, NUM_JOINTS, 2)
    assert heatmaps.shape == (2, NUM_JOINTS, 8, 8)
    assert output1.shape == (2, 16, 8, 8)
    print("KERNEL_OK")
</pallas_src>

<mosaic_0001>
module attributes {stable_mosaic.version = 11 : i64} {
  func.func @_matmul_bias_kernel(%arg0: i32, %arg1: memref<256x27xbf16, #tpu.memory_space<vmem>>, %arg2: memref<27x8xbf16, #tpu.memory_space<vmem>>, %arg3: memref<1x8xf32, #tpu.memory_space<vmem>>, %arg4: memref<256x8xf32, #tpu.memory_space<vmem>>) attributes {dimension_semantics = [#tpu.dimension_semantics<parallel>], iteration_bounds = array<i64: 2>, scalar_prefetch = 0 : i64, scratch_operands = 0 : i64, tpu.core_type = #tpu.core_type<tc>, window_params = [{transform_indices = @transform_0, window_bounds = array<i64: 256, 27>}, {pipeline_mode = #tpu.pipeline_mode<synchronous>, transform_indices = @transform_1, window_bounds = array<i64: 27, 8>}, {pipeline_mode = #tpu.pipeline_mode<synchronous>, transform_indices = @transform_2, window_bounds = array<i64: 1, 8>}, {transform_indices = @transform_3, window_bounds = array<i64: 256, 8>}]} {
    %c0 = arith.constant 0 : index
    %c0_0 = arith.constant 0 : index
    %0 = vector.load %arg1[%c0, %c0_0] : memref<256x27xbf16, #tpu.memory_space<vmem>>, vector<256x27xbf16>
    %c0_1 = arith.constant 0 : index
    %c0_2 = arith.constant 0 : index
    %1 = vector.load %arg2[%c0_1, %c0_2] : memref<27x8xbf16, #tpu.memory_space<vmem>>, vector<27x8xbf16>
    %cst = arith.constant dense<0.000000e+00> : vector<256x8xf32>
    %2 = tpu.matmul %0, %1, %cst {dimension_numbers = #tpu.dot_dimension_numbers<[1], [0], [0], [1], [0, 0, 1, 1], [], []>} : vector<256x27xbf16>, vector<27x8xbf16>, vector<256x8xf32> -> vector<256x8xf32>
    %c0_3 = arith.constant 0 : index
    %c0_4 = arith.constant 0 : index
    %3 = vector.load %arg3[%c0_3, %c0_4] : memref<1x8xf32, #tpu.memory_space<vmem>>, vector<1x8xf32>
    %4 = vector.broadcast %3 : vector<1x8xf32> to vector<256x8xf32>
    %5 = arith.addf %2, %4 : vector<256x8xf32>
    %cst_5 = arith.constant 0.000000e+00 : f32
    %6 = vector.broadcast %cst_5 : f32 to vector<256x8xf32>
    %7 = arith.maximumf %5, %6 : vector<256x8xf32>
    %c0_6 = arith.constant 0 : index
    %c0_7 = arith.constant 0 : index
    %8 = vector.load %arg4[%c0_6, %c0_7] : memref<256x8xf32, #tpu.memory_space<vmem>>, vector<256x8xf32>
    tpu.vector_store %arg4[%c0_6, %c0_7], %7 {strides = array<i32>} : memref<256x8xf32, #tpu.memory_space<vmem>>, vector<256x8xf32>,
    return
  }
  func.func @transform_0(%arg0: i32) -> (i32, i32) {
    %c0_i32 = arith.constant 0 : i32
    %c0_i32_0 = arith.constant 0 : i32
    return %arg0, %c0_i32 : i32, i32
  }
  func.func @transform_1(%arg0: i32) -> (i32, i32) {
    %c0_i32 = arith.constant 0 : i32
    %c0_i32_0 = arith.constant 0 : i32
    %c0_i32_1 = arith.constant 0 : i32
    return %c0_i32, %c0_i32_0 : i32, i32
  }
  func.func @transform_2(%arg0: i32) -> (i32, i32) {
    %c0_i32 = arith.constant 0 : i32
    %c0_i32_0 = arith.constant 0 : i32
    %c0_i32_1 = arith.constant 0 : i32
    return %c0_i32, %c0_i32_0 : i32, i32
  }
  func.func @transform_3(%arg0: i32) -> (i32, i32) {
    %c0_i32 = arith.constant 0 : i32
    %c0_i32_0 = arith.constant 0 : i32
    return %arg0, %c0_i32 : i32, i32
  }
}

module attributes {stable_mosaic.version = 11 : i64} {
  func.func @_conv3x3_s1_kernel(%arg0: i32, %arg1: i32, %arg2: i32, %arg3: memref<1x1x18x8xf32, #tpu.memory_space<vmem>>, %arg4: memref<1x3x8x8xbf16, #tpu.memory_space<vmem>>, %arg5: memref<1x8xf32, #tpu.memory_space<vmem>>, %arg6: memref<1x1x16x8xf32, #tpu.memory_space<vmem>>, %arg7: memref<16x8xf32, #tpu.memory_space<vmem>>) attributes {dimension_semantics = [#tpu.dimension_semantics<parallel>, #tpu.dimension_semantics<parallel>, #tpu.dimension_semantics<arbitrary>], iteration_bounds = array<i64: 2, 16, 3>, scalar_prefetch = 0 : i64, scratch_operands = 1 : i64, tpu.core_type = #tpu.core_type<tc>, window_params = [{transform_indices = @transform_0, window_bounds = array<i64: 1, 1, 18, 8>}, {transform_indices = @transform_1, window_bounds = array<i64: 1, 3, 8, 8>}, {pipeline_mode = #tpu.pipeline_mode<synchronous>, transform_indices = @transform_2, window_bounds = array<i64: 1, 8>}, {transform_indices = @transform_3, window_bounds = array<i64: 1, 1, 16, 8>}]} {
    %c0_i32 = arith.constant 0 : i32
    %0 = arith.cmpi eq, %arg2, %c0_i32 : i32
    %1 = arith.extui %0 : i1 to i32
    %c0_i32_0 = arith.constant 0 : i32
    %2 = arith.cmpi ne, %1, %c0_i32_0 : i32
    scf.if %2 {
      %cst_29 = arith.constant 0.000000e+00 : f32
      %29 = vector.broadcast %cst_29 : f32 to vector<16x8xf32>
      %c0_30 = arith.constant 0 : index
      %c0_31 = arith.constant 0 : index
      %30 = vector.load %arg7[%c0_30, %c0_31] : memref<16x8xf32, #tpu.memory_space<vmem>>, vector<16x8xf32>
      tpu.vector_store %arg7[%c0_30, %c0_31], %29 {strides = array<i32>} : memref<16x8xf32, #tpu.memory_space<vmem>>, vector<16x8xf32>,
    } else {
    }
    %c0 = arith.constant 0 : index
    %c0_1 = arith.constant 0 : index
    %3 = vector.load %arg7[%c0, %c0_1] : memref<16x8xf32, #tpu.memory_space<vmem>>, vector<16x8xf32>
    %c0_2 = arith.constant 0 : index
    %c0_3 = arith.constant 0 : index
    %c0_4 = arith.constant 0 : index
    %c0_5 = arith.constant 0 : index
    %4 = vector.load %arg3[%c0_2, %c0_3, %c0_4, %c0_5] : memref<1x1x18x8xf32, #tpu.memory_space<vmem>>, vector<1x1x16x8xf32>
    %5 = vector.shape_cast %4 : vector<1x1x16x8xf32> to vector<16x8xf32>
    %6 = arith.truncf %5 : vector<16x8xf32> to vector<16x8xbf16>
    %c0_6 = arith.constant 0 : index
    %c0_7 = arith.constant 0 : index
    %c0_8 = arith.constant 0 : index
    %c0_9 = arith.constant 0 : index
    %7 = vector.load %arg4[%c0_6, %c0_7, %c0_8, %c0_9] : memref<1x3x8x8xbf16, #tpu.memory_space<vmem>>, vector<1x1x8x8xbf16>
    %8 = vector.shape_cast %7 : vector<1x1x8x8xbf16> to vector<8x8xbf16>
    %cst = arith.constant dense<0.000000e+00> : vector<16x8xf32>
    %9 = tpu.matmul %6, %8, %cst {dimension_numbers = #tpu.dot_dimension_numbers<[1], [0], [0], [1], [0, 0, 1, 1], [], []>} : vector<16x8xbf16>, vector<8x8xbf16>, vector<16x8xf32> -> vector<16x8xf32>
    %10 = arith.addf %3, %9 : vector<16x8xf32>
    %c0_10 = arith.constant 0 : index
    %c0_11 = arith.constant 0 : index
    %c1 = arith.constant 1 : index
    %c0_12 = arith.constant 0 : index
    %11 = vector.load %arg3[%c0_10, %c0_11, %c1, %c0_12] : memref<1x1x18x8xf32, #tpu.memory_space<vmem>>, vector<1x1x16x8xf32>
    %12 = vector.shape_cast %11 : vector<1x1x16x8xf32> to vector<16x8xf32>
    %13 = arith.truncf %12 : vector<16x8xf32> to vector<16x8xbf16>
    %c0_13 = arith.constant 0 : index
    %c1_14 = arith.constant 1 : index
    %c0_15 = arith.constant 0 : index
    %c0_16 = arith.constant 0 : index
    %14 = vector.load %arg4[%c0_13, %c1_14, %c0_15, %c0_16] : memref<1x3x8x8xbf16, #tpu.memory_space<vmem>>, vector<1x1x8x8xbf16>
    %15 = vector.shape_cast %14 : vector<1x1x8x8xbf16> to vector<8x8xbf16>
    %cst_17 = arith.constant dense<0.000000e+00> : vector<16x8xf32>
    %16 = tpu.matmul %13, %15, %cst_17 {dimension_numbers = #tpu.dot_dimension_numbers<[1], [0], [0], [1], [0, 0, 1, 1], [], []>} : vector<16x8xbf16>, vector<8x8xbf16>, vector<16x8xf32> -> vector<16x8xf32>
    %17 = arith.addf %10, %16 : vector<16x8xf32>
    %c0_18 = arith.constant 0 : index
    %c0_19 = arith.constant 0 : index
    %c2 = arith.constant 2 : index
    %c0_20 = arith.constant 0 : index
    %18 = vector.load %arg3[%c0_18, %c0_19, %c2, %c0_20] : memref<1x1x18x8xf32, #tpu.memory_space<vmem>>, vector<1x1x16x8xf32>
    %19 = vector.shape_cast %18 : vector<1x1x16x8xf32> to vector<16x8xf32>
    %20 = arith.truncf %19 : vector<16x8xf32> to vector<16x8xbf16>
    %c0_21 = arith.constant 0 : index
    %c2_22 = arith.constant 2 : index
    %c0_23 = arith.constant 0 : index
    %c0_24 = arith.constant 0 : index
    %21 = vector.load %arg4[%c0_21, %c2_22, %c0_23, %c0_24] : memref<1x3x8x8xbf16, #tpu.memory_space<vmem>>, vector<1x1x8x8xbf16>
    %22 = vector.shape_cast %21 : vector<1x1x8x8xbf16> to vector<8x8xbf16>
    %cst_25 = arith.constant dense<0.000000e+00> : vector<16x8xf32>
    %23 = tpu.matmul %20, %22, %cst_25 {dimension_numbers = #tpu.dot_dimension_numbers<[1], [0], [0], [1], [0, 0, 1, 1], [], []>} : vector<16x8xbf16>, vector<8x8xbf16>, vector<16x8xf32> -> vector<16x8xf32>
    %24 = arith.addf %17, %23 : vector<16x8xf32>
    %c0_26 = arith.constant 0 : index
    %c0_27 = arith.constant 0 : index
    %25 = vector.load %arg7[%c0_26, %c0_27] : memref<16x8xf32, #tpu.memory_space<vmem>>, vector<16x8xf32>
    tpu.vector_store %arg7[%c0_26, %c0_27], %24 {strides = array<i32>} : memref<16x8xf32, #tpu.memory_space<vmem>>, vector<16x8xf32>,
    %c2_i32 = arith.constant 2 : i32
    %26 = arith.cmpi eq, %arg2, %c2_i32 : i32
    %27 = arith.extui %26 : i1 to i32
    %c0_i32_28 = arith.constant 0 : i32
    %28 = arith.cmpi ne, %27, %c0_i32_28 : i32
    scf.if %28 {
      %c0_29 = arith.constant 0 : index
      %c0_30 = arith.constant 0 : index
      %29 = vector.load %arg7[%c0_29, %c0_30] : memref<16x8xf32, #tpu.memory_space<vmem>>, vector<16x8xf32>
      %c0_31 = arith.constant 0 : index
      %c0_32 = arith.constant 0 : index
      %30 = vector.load %arg5[%c0_31, %c0_32] : memref<1x8xf32, #tpu.memory_space<vmem>>, vector<1x8xf32>
      %31 = vector.broadcast %30 : vector<1x8xf32> to vector<16x8xf32>
      %32 = arith.addf %29, %31 : vector<16x8xf32>
      %cst_33 = arith.constant 0.000000e+00 : f32
      %33 = vector.broadcast %cst_33 : f32 to vector<16x8xf32>
      %34 = arith.maximumf %32, %33 : vector<16x8xf32>
      %35 = vector.shape_cast %34 : vector<16x8xf32> to vector<1x1x16x8xf32>
      %c0_34 = arith.constant 0 : index
      %c0_35 = arith.constant 0 : index
      %c0_36 = arith.constant 0 : index
      %c0_37 = arith.constant 0 : index
      %36 = vector.load %arg6[%c0_34, %c0_35, %c0_36, %c0_37] : memref<1x1x16x8xf32, #tpu.memory_space<vmem>>, vector<1x1x16x8xf32>
      tpu.vector_store %arg6[%c0_34, %c0_35, %c0_36, %c0_37], %35 {strides = array<i32>} : memref<1x1x16x8xf32, #tpu.memory_space<vmem>>, vector<1x1x16x8xf32>,
    } else {
    }
    return
  }
  func.func @transform_0(%arg0: i32, %arg1: i32, %arg2: i32) -> (i32, i32, i32, i32) {
    %0 = arith.addi %arg1, %arg2 : i32
    %c0_i32 = arith.constant 0 : i32
    %c0_i32_0 = arith.constant 0 : i32
    %c0_i32_1 = arith.constant 0 : i32
    return %arg0, %0, %c0_i32, %c0_i32_0 : i32, i32, i32, i32
  }
  func.func @transform_1(%arg0: i32, %arg1: i32, %arg2: i32) -> (i32, i32, i32, i32) {
    %c0_i32 = arith.constant 0 : i32
    %c0_i32_0 = arith.constant 0 : i32
    %c0_i32_1 = arith.constant 0 : i32
    %c0_i32_2 = arith.constant 0 : i32
    return %arg2, %c0_i32, %c0_i32_0, %c0_i32_1 : i32, i32, i32, i32
  }
  func.func @transform_2(%arg0: i32, %arg1: i32, %arg2: i32) -> (i32, i32) {
    %c0_i32 = arith.constant 0 : i32
    %c0_i32_0 = arith.constant 0 : i32
    %c0_i32_1 = arith.constant 0 : i32
    return %c0_i32, %c0_i32_0 : i32, i32
  }
  func.func @transform_3(%arg0: i32, %arg1: i32, %arg2: i32) -> (i32, i32, i32, i32) {
    %c0_i32 = arith.constant 0 : i32
    %c0_i32_0 = arith.constant 0 : i32
    %c0_i32_1 = arith.constant 0 : i32
    return %arg0, %arg1, %c0_i32, %c0_i32_0 : i32, i32, i32, i32
  }
}

module attributes {stable_mosaic.version = 11 : i64} {
  func.func @_matmul_bias_kernel(%arg0: i32, %arg1: memref<128x72xbf16, #tpu.memory_space<vmem>>, %arg2: memref<72x16xbf16, #tpu.memory_space<vmem>>, %arg3: memref<1x16xf32, #tpu.memory_space<vmem>>, %arg4: memref<128x16xf32, #tpu.memory_space<vmem>>) attributes {dimension_semantics = [#tpu.dimension_semantics<parallel>], iteration_bounds = array<i64: 1>, scalar_prefetch = 0 : i64, scratch_operands = 0 : i64, tpu.core_type = #tpu.core_type<tc>, window_params = [{transform_indices = @transform_0, window_bounds = array<i64: 128, 72>}, {pipeline_mode = #tpu.pipeline_mode<synchronous>, transform_indices = @transform_1, window_bounds = array<i64: 72, 16>}, {pipeline_mode = #tpu.pipeline_mode<synchronous>, transform_indices = @transform_2, window_bounds = array<i64: 1, 16>}, {transform_indices = @transform_3, window_bounds = array<i64: 128, 16>}]} {
    %c0 = arith.constant 0 : index
    %c0_0 = arith.constant 0 : index
    %0 = vector.load %arg1[%c0, %c0_0] : memref<128x72xbf16, #tpu.memory_space<vmem>>, vector<128x72xbf16>
    %c0_1 = arith.constant 0 : index
    %c0_2 = arith.constant 0 : index
    %1 = vector.load %arg2[%c0_1, %c0_2] : memref<72x16xbf16, #tpu.memory_space<vmem>>, vector<72x16xbf16>
    %cst = arith.constant dense<0.000000e+00> : vector<128x16xf32>
    %2 = tpu.matmul %0, %1, %cst {dimension_numbers = #tpu.dot_dimension_numbers<[1], [0], [0], [1], [0, 0, 1, 1], [], []>} : vector<128x72xbf16>, vector<72x16xbf16>, vector<128x16xf32> -> vector<128x16xf32>
    %c0_3 = arith.constant 0 : index
    %c0_4 = arith.constant 0 : index
    %3 = vector.load %arg3[%c0_3, %c0_4] : memref<1x16xf32, #tpu.memory_space<vmem>>, vector<1x16xf32>
    %4 = vector.broadcast %3 : vector<1x16xf32> to vector<128x16xf32>
    %5 = arith.addf %2, %4 : vector<128x16xf32>
    %cst_5 = arith.constant 0.000000e+00 : f32
    %6 = vector.broadcast %cst_5 : f32 to vector<128x16xf32>
    %7 = arith.maximumf %5, %6 : vector<128x16xf32>
    %c0_6 = arith.constant 0 : index
    %c0_7 = arith.constant 0 : index
    %8 = vector.load %arg4[%c0_6, %c0_7] : memref<128x16xf32, #tpu.memory_space<vmem>>, vector<128x16xf32>
    tpu.vector_store %arg4[%c0_6, %c0_7], %7 {strides = array<i32>} : memref<128x16xf32, #tpu.memory_space<vmem>>, vector<128x16xf32>,
    return
  }
  func.func @transform_0(%arg0: i32) -> (i32, i32) {
    %c0_i32 = arith.constant 0 : i32
    %c0_i32_0 = arith.constant 0 : i32
    return %arg0, %c0_i32 : i32, i32
  }
  func.func @transform_1(%arg0: i32) -> (i32, i32) {
    %c0_i32 = arith.constant 0 : i32
    %c0_i32_0 = arith.constant 0 : i32
    %c0_i32_1 = arith.constant 0 : i32
    return %c0_i32, %c0_i32_0 : i32, i32
  }
  func.func @transform_2(%arg0: i32) -> (i32, i32) {
    %c0_i32 = arith.constant 0 : i32
    %c0_i32_0 = arith.constant 0 : i32
    %c0_i32_1 = arith.constant 0 : i32
    return %c0_i32, %c0_i32_0 : i32, i32
  }
  func.func @transform_3(%arg0: i32) -> (i32, i32) {
    %c0_i32 = arith.constant 0 : i32
    %c0_i32_0 = arith.constant 0 : i32
    return %arg0, %c0_i32 : i32, i32
  }
}

module attributes {stable_mosaic.version = 11 : i64} {
  func.func @_conv3x3_s1_kernel(%arg0: i32, %arg1: i32, %arg2: i32, %arg3: memref<1x1x10x16xf32, #tpu.memory_space<vmem>>, %arg4: memref<1x3x16x16xbf16, #tpu.memory_space<vmem>>, %arg5: memref<1x16xf32, #tpu.memory_space<vmem>>, %arg6: memref<1x1x8x16xf32, #tpu.memory_space<vmem>>, %arg7: memref<8x16xf32, #tpu.memory_space<vmem>>) attributes {dimension_semantics = [#tpu.dimension_semantics<parallel>, #tpu.dimension_semantics<parallel>, #tpu.dimension_semantics<arbitrary>], iteration_bounds = array<i64: 2, 8, 3>, scalar_prefetch = 0 : i64, scratch_operands = 1 : i64, tpu.core_type = #tpu.core_type<tc>, window_params = [{transform_indices = @transform_0, window_bounds = array<i64: 1, 1, 10, 16>}, {transform_indices = @transform_1, window_bounds = array<i64: 1, 3, 16, 16>}, {pipeline_mode = #tpu.pipeline_mode<synchronous>, transform_indices = @transform_2, window_bounds = array<i64: 1, 16>}, {transform_indices = @transform_3, window_bounds = array<i64: 1, 1, 8, 16>}]} {
    %c0_i32 = arith.constant 0 : i32
    %0 = arith.cmpi eq, %arg2, %c0_i32 : i32
    %1 = arith.extui %0 : i1 to i32
    %c0_i32_0 = arith.constant 0 : i32
    %2 = arith.cmpi ne, %1, %c0_i32_0 : i32
    scf.if %2 {
      %cst_29 = arith.constant 0.000000e+00 : f32
      %29 = vector.broadcast %cst_29 : f32 to vector<8x16xf32>
      %c0_30 = arith.constant 0 : index
      %c0_31 = arith.constant 0 : index
      %30 = vector.load %arg7[%c0_30, %c0_31] : memref<8x16xf32, #tpu.memory_space<vmem>>, vector<8x16xf32>
      tpu.vector_store %arg7[%c0_30, %c0_31], %29 {strides = array<i32>} : memref<8x16xf32, #tpu.memory_space<vmem>>, vector<8x16xf32>,
    } else {
    }
    %c0 = arith.constant 0 : index
    %c0_1 = arith.constant 0 : index
    %3 = vector.load %arg7[%c0, %c0_1] : memref<8x16xf32, #tpu.memory_space<vmem>>, vector<8x16xf32>
    %c0_2 = arith.constant 0 : index
    %c0_3 = arith.constant 0 : index
    %c0_4 = arith.constant 0 : index
    %c0_5 = arith.constant 0 : index
    %4 = vector.load %arg3[%c0_2, %c0_3, %c0_4, %c0_5] : memref<1x1x10x16xf32, #tpu.memory_space<vmem>>, vector<1x1x8x16xf32>
    %5 = vector.shape_cast %4 : vector<1x1x8x16xf32> to vector<8x16xf32>
    %6 = arith.truncf %5 : vector<8x16xf32> to vector<8x16xbf16>
    %c0_6 = arith.constant 0 : index
    %c0_7 = arith.constant 0 : index
    %c0_8 = arith.constant 0 : index
    %c0_9 = arith.constant 0 : index
    %7 = vector.load %arg4[%c0_6, %c0_7, %c0_8, %c0_9] : memref<1x3x16x16xbf16, #tpu.memory_space<vmem>>, vector<1x1x16x16xbf16>
    %8 = vector.shape_cast %7 : vector<1x1x16x16xbf16> to vector<16x16xbf16>
    %cst = arith.constant dense<0.000000e+00> : vector<8x16xf32>
    %9 = tpu.matmul %6, %8, %cst {dimension_numbers = #tpu.dot_dimension_numbers<[1], [0], [0], [1], [0, 0, 1, 1], [], []>} : vector<8x16xbf16>, vector<16x16xbf16>, vector<8x16xf32> -> vector<8x16xf32>
    %10 = arith.addf %3, %9 : vector<8x16xf32>
    %c0_10 = arith.constant 0 : index
    %c0_11 = arith.constant 0 : index
    %c1 = arith.constant 1 : index
    %c0_12 = arith.constant 0 : index
    %11 = vector.load %arg3[%c0_10, %c0_11, %c1, %c0_12] : memref<1x1x10x16xf32, #tpu.memory_space<vmem>>, vector<1x1x8x16xf32>
    %12 = vector.shape_cast %11 : vector<1x1x8x16xf32> to vector<8x16xf32>
    %13 = arith.truncf %12 : vector<8x16xf32> to vector<8x16xbf16>
    %c0_13 = arith.constant 0 : index
    %c1_14 = arith.constant 1 : index
    %c0_15 = arith.constant 0 : index
    %c0_16 = arith.constant 0 : index
    %14 = vector.load %arg4[%c0_13, %c1_14, %c0_15, %c0_16] : memref<1x3x16x16xbf16, #tpu.memory_space<vmem>>, vector<1x1x16x16xbf16>
    %15 = vector.shape_cast %14 : vector<1x1x16x16xbf16> to vector<16x16xbf16>
    %cst_17 = arith.constant dense<0.000000e+00> : vector<8x16xf32>
    %16 = tpu.matmul %13, %15, %cst_17 {dimension_numbers = #tpu.dot_dimension_numbers<[1], [0], [0], [1], [0, 0, 1, 1], [], []>} : vector<8x16xbf16>, vector<16x16xbf16>, vector<8x16xf32> -> vector<8x16xf32>
    %17 = arith.addf %10, %16 : vector<8x16xf32>
    %c0_18 = arith.constant 0 : index
    %c0_19 = arith.constant 0 : index
    %c2 = arith.constant 2 : index
    %c0_20 = arith.constant 0 : index
    %18 = vector.load %arg3[%c0_18, %c0_19, %c2, %c0_20] : memref<1x1x10x16xf32, #tpu.memory_space<vmem>>, vector<1x1x8x16xf32>
    %19 = vector.shape_cast %18 : vector<1x1x8x16xf32> to vector<8x16xf32>
    %20 = arith.truncf %19 : vector<8x16xf32> to vector<8x16xbf16>
    %c0_21 = arith.constant 0 : index
    %c2_22 = arith.constant 2 : index
    %c0_23 = arith.constant 0 : index
    %c0_24 = arith.constant 0 : index
    %21 = vector.load %arg4[%c0_21, %c2_22, %c0_23, %c0_24] : memref<1x3x16x16xbf16, #tpu.memory_space<vmem>>, vector<1x1x16x16xbf16>
    %22 = vector.shape_cast %21 : vector<1x1x16x16xbf16> to vector<16x16xbf16>
    %cst_25 = arith.constant dense<0.000000e+00> : vector<8x16xf32>
    %23 = tpu.matmul %20, %22, %cst_25 {dimension_numbers = #tpu.dot_dimension_numbers<[1], [0], [0], [1], [0, 0, 1, 1], [], []>} : vector<8x16xbf16>, vector<16x16xbf16>, vector<8x16xf32> -> vector<8x16xf32>
    %24 = arith.addf %17, %23 : vector<8x16xf32>
    %c0_26 = arith.constant 0 : index
    %c0_27 = arith.constant 0 : index
    %25 = vector.load %arg7[%c0_26, %c0_27] : memref<8x16xf32, #tpu.memory_space<vmem>>, vector<8x16xf32>
    tpu.vector_store %arg7[%c0_26, %c0_27], %24 {strides = array<i32>} : memref<8x16xf32, #tpu.memory_space<vmem>>, vector<8x16xf32>,
    %c2_i32 = arith.constant 2 : i32
    %26 = arith.cmpi eq, %arg2, %c2_i32 : i32
    %27 = arith.extui %26 : i1 to i32
    %c0_i32_28 = arith.constant 0 : i32
    %28 = arith.cmpi ne, %27, %c0_i32_28 : i32
    scf.if %28 {
      %c0_29 = arith.constant 0 : index
      %c0_30 = arith.constant 0 : index
      %29 = vector.load %arg7[%c0_29, %c0_30] : memref<8x16xf32, #tpu.memory_space<vmem>>, vector<8x16xf32>
      %c0_31 = arith.constant 0 : index
      %c0_32 = arith.constant 0 : index
      %30 = vector.load %arg5[%c0_31, %c0_32] : memref<1x16xf32, #tpu.memory_space<vmem>>, vector<1x16xf32>
      %31 = vector.broadcast %30 : vector<1x16xf32> to vector<8x16xf32>
      %32 = arith.addf %29, %31 : vector<8x16xf32>
      %cst_33 = arith.constant 0.000000e+00 : f32
      %33 = vector.broadcast %cst_33 : f32 to vector<8x16xf32>
      %34 = arith.maximumf %32, %33 : vector<8x16xf32>
      %35 = vector.shape_cast %34 : vector<8x16xf32> to vector<1x1x8x16xf32>
      %c0_34 = arith.constant 0 : index
      %c0_35 = arith.constant 0 : index
      %c0_36 = arith.constant 0 : index
      %c0_37 = arith.constant 0 : index
      %36 = vector.load %arg6[%c0_34, %c0_35, %c0_36, %c0_37] : memref<1x1x8x16xf32, #tpu.memory_space<vmem>>, vector<1x1x8x16xf32>
      tpu.vector_store %arg6[%c0_34, %c0_35, %c0_36, %c0_37], %35 {strides = array<i32>} : memref<1x1x8x16xf32, #tpu.memory_space<vmem>>, vector<1x1x8x16xf32>,
    } else {
    }
    return
  }
  func.func @transform_0(%arg0: i32, %arg1: i32, %arg2: i32) -> (i32, i32, i32, i32) {
    %0 = arith.addi %arg1, %arg2 : i32
    %c0_i32 = arith.constant 0 : i32
    %c0_i32_0 = arith.constant 0 : i32
    %c0_i32_1 = arith.constant 0 : i32
    return %arg0, %0, %c0_i32, %c0_i32_0 : i32, i32, i32, i32
  }
  func.func @transform_1(%arg0: i32, %arg1: i32, %arg2: i32) -> (i32, i32, i32, i32) {
    %c0_i32 = arith.constant 0 : i32
    %c0_i32_0 = arith.constant 0 : i32
    %c0_i32_1 = arith.constant 0 : i32
    %c0_i32_2 = arith.constant 0 : i32
    return %arg2, %c0_i32, %c0_i32_0, %c0_i32_1 : i32, i32, i32, i32
  }
  func.func @transform_2(%arg0: i32, %arg1: i32, %arg2: i32) -> (i32, i32) {
    %c0_i32 = arith.constant 0 : i32
    %c0_i32_0 = arith.constant 0 : i32
    %c0_i32_1 = arith.constant 0 : i32
    return %c0_i32, %c0_i32_0 : i32, i32
  }
  func.func @transform_3(%arg0: i32, %arg1: i32, %arg2: i32) -> (i32, i32, i32, i32) {
    %c0_i32 = arith.constant 0 : i32
    %c0_i32_0 = arith.constant 0 : i32
    %c0_i32_1 = arith.constant 0 : i32
    return %arg0, %arg1, %c0_i32, %c0_i32_0 : i32, i32, i32, i32
  }
}

module attributes {stable_mosaic.version = 11 : i64} {
  func.func @_rec_tail_kernel(%arg0: i32, %arg1: memref<128x16xf32, #tpu.memory_space<vmem>>, %arg2: memref<128x16xf32, #tpu.memory_space<vmem>>, %arg3: memref<16x16xbf16, #tpu.memory_space<vmem>>, %arg4: memref<1x16xf32, #tpu.memory_space<vmem>>, %arg5: memref<16x16xbf16, #tpu.memory_space<vmem>>, %arg6: memref<1x16xf32, #tpu.memory_space<vmem>>, %arg7: memref<16x16xbf16, #tpu.memory_space<vmem>>, %arg8: memref<1x16xf32, #tpu.memory_space<vmem>>, %arg9: memref<128x16xf32, #tpu.memory_space<vmem>>, %arg10: memref<128x16xf32, #tpu.memory_space<vmem>>) attributes {dimension_semantics = [#tpu.dimension_semantics<parallel>], iteration_bounds = array<i64: 1>, scalar_prefetch = 0 : i64, scratch_operands = 0 : i64, tpu.core_type = #tpu.core_type<tc>, window_params = [{transform_indices = @transform_0, window_bounds = array<i64: 128, 16>}, {transform_indices = @transform_1, window_bounds = array<i64: 128, 16>}, {pipeline_mode = #tpu.pipeline_mode<synchronous>, transform_indices = @transform_2, window_bounds = array<i64: 16, 16>}, {pipeline_mode = #tpu.pipeline_mode<synchronous>, transform_indices = @transform_3, window_bounds = array<i64: 1, 16>}, {pipeline_mode = #tpu.pipeline_mode<synchronous>, transform_indices = @transform_4, window_bounds = array<i64: 16, 16>}, {pipeline_mode = #tpu.pipeline_mode<synchronous>, transform_indices = @transform_5, window_bounds = array<i64: 1, 16>}, {pipeline_mode = #tpu.pipeline_mode<synchronous>, transform_indices = @transform_6, window_bounds = array<i64: 16, 16>}, {pipeline_mode = #tpu.pipeline_mode<synchronous>, transform_indices = @transform_7, window_bounds = array<i64: 1, 16>}, {transform_indices = @transform_8, window_bounds = array<i64: 128, 16>}, {transform_indices = @transform_9, window_bounds = array<i64: 128, 16>}]} {
    %c0 = arith.constant 0 : index
    %c0_0 = arith.constant 0 : index
    %0 = vector.load %arg1[%c0, %c0_0] : memref<128x16xf32, #tpu.memory_space<vmem>>, vector<128x16xf32>
    %1 = arith.truncf %0 : vector<128x16xf32> to vector<128x16xbf16>
    %c0_1 = arith.constant 0 : index
    %c0_2 = arith.constant 0 : index
    %2 = vector.load %arg3[%c0_1, %c0_2] : memref<16x16xbf16, #tpu.memory_space<vmem>>, vector<16x16xbf16>
    %cst = arith.constant dense<0.000000e+00> : vector<128x16xf32>
    %3 = tpu.matmul %1, %2, %cst {dimension_numbers = #tpu.dot_dimension_numbers<[1], [0], [0], [1], [0, 0, 1, 1], [], []>} : vector<128x16xbf16>, vector<16x16xbf16>, vector<128x16xf32> -> vector<128x16xf32>
    %c0_3 = arith.constant 0 : index
    %c0_4 = arith.constant 0 : index
    %4 = vector.load %arg4[%c0_3, %c0_4] : memref<1x16xf32, #tpu.memory_space<vmem>>, vector<1x16xf32>
    %5 = vector.broadcast %4 : vector<1x16xf32> to vector<128x16xf32>
    %6 = arith.addf %3, %5 : vector<128x16xf32>
    %c0_5 = arith.constant 0 : index
    %c0_6 = arith.constant 0 : index
    %7 = vector.load %arg5[%c0_5, %c0_6] : memref<16x16xbf16, #tpu.memory_space<vmem>>, vector<16x16xbf16>
    %cst_7 = arith.constant dense<0.000000e+00> : vector<128x16xf32>
    %8 = tpu.matmul %1, %7, %cst_7 {dimension_numbers = #tpu.dot_dimension_numbers<[1], [0], [0], [1], [0, 0, 1, 1], [], []>} : vector<128x16xbf16>, vector<16x16xbf16>, vector<128x16xf32> -> vector<128x16xf32>
    %c0_8 = arith.constant 0 : index
    %c0_9 = arith.constant 0 : index
    %9 = vector.load %arg6[%c0_8, %c0_9] : memref<1x16xf32, #tpu.memory_space<vmem>>, vector<1x16xf32>
    %10 = vector.broadcast %9 : vector<1x16xf32> to vector<128x16xf32>
    %11 = arith.addf %8, %10 : vector<128x16xf32>
    %12 = arith.truncf %6 : vector<128x16xf32> to vector<128x16xbf16>
    %c0_10 = arith.constant 0 : index
    %c0_11 = arith.constant 0 : index
    %13 = vector.load %arg7[%c0_10, %c0_11] : memref<16x16xbf16, #tpu.memory_space<vmem>>, vector<16x16xbf16>
    %cst_12 = arith.constant dense<0.000000e+00> : vector<128x16xf32>
    %14 = tpu.matmul %12, %13, %cst_12 {dimension_numbers = #tpu.dot_dimension_numbers<[1], [0], [0], [1], [0, 0, 1, 1], [], []>} : vector<128x16xbf16>, vector<16x16xbf16>, vector<128x16xf32> -> vector<128x16xf32>
    %c0_13 = arith.constant 0 : index
    %c0_14 = arith.constant 0 : index
    %15 = vector.load %arg8[%c0_13, %c0_14] : memref<1x16xf32, #tpu.memory_space<vmem>>, vector<1x16xf32>
    %16 = vector.broadcast %15 : vector<1x16xf32> to vector<128x16xf32>
    %17 = arith.addf %14, %16 : vector<128x16xf32>
    %c0_15 = arith.constant 0 : index
    %c0_16 = arith.constant 0 : index
    %18 = vector.load %arg9[%c0_15, %c0_16] : memref<128x16xf32, #tpu.memory_space<vmem>>, vector<128x16xf32>
    tpu.vector_store %arg9[%c0_15, %c0_16], %6 {strides = array<i32>} : memref<128x16xf32, #tpu.memory_space<vmem>>, vector<128x16xf32>,
    %c0_17 = arith.constant 0 : index
    %c0_18 = arith.constant 0 : index
    %19 = vector.load %arg2[%c0_17, %c0_18] : memref<128x16xf32, #tpu.memory_space<vmem>>, vector<128x16xf32>
    %20 = arith.addf %19, %11 : vector<128x16xf32>
    %21 = arith.addf %20, %17 : vector<128x16xf32>
    %cst_19 = arith.constant 0.000000e+00 : f32
    %22 = vector.broadcast %cst_19 : f32 to vector<128x16xf32>
    %23 = arith.maximumf %21, %22 : vector<128x16xf32>
    %c0_20 = arith.constant 0 : index
    %c0_21 = arith.constant 0 : index
    %24 = vector.load %arg10[%c0_20, %c0_21] : memref<128x16xf32, #tpu.memory_space<vmem>>, vector<128x16xf32>
    tpu.vector_store %arg10[%c0_20, %c0_21], %23 {strides = array<i32>} : memref<128x16xf32, #tpu.memory_space<vmem>>, vector<128x16xf32>,
    return
  }
  func.func @transform_0(%arg0: i32) -> (i32, i32) {
    %c0_i32 = arith.constant 0 : i32
    %c0_i32_0 = arith.constant 0 : i32
    return %arg0, %c0_i32 : i32, i32
  }
  func.func @transform_1(%arg0: i32) -> (i32, i32) {
    %c0_i32 = arith.constant 0 : i32
    %c0_i32_0 = arith.constant 0 : i32
    return %arg0, %c0_i32 : i32, i32
  }
  func.func @transform_2(%arg0: i32) -> (i32, i32) {
    %c0_i32 = arith.constant 0 : i32
    %c0_i32_0 = arith.constant 0 : i32
    %c0_i32_1 = arith.constant 0 : i32
    return %c0_i32, %c0_i32_0 : i32, i32
  }
  func.func @transform_3(%arg0: i32) -> (i32, i32) {
    %c0_i32 = arith.constant 0 : i32
    %c0_i32_0 = arith.constant 0 : i32
    %c0_i32_1 = arith.constant 0 : i32
    return %c0_i32, %c0_i32_0 : i32, i32
  }
  func.func @transform_4(%arg0: i32) -> (i32, i32) {
    %c0_i32 = arith.constant 0 : i32
    %c0_i32_0 = arith.constant 0 : i32
    %c0_i32_1 = arith.constant 0 : i32
    return %c0_i32, %c0_i32_0 : i32, i32
  }
  func.func @transform_5(%arg0: i32) -> (i32, i32) {
    %c0_i32 = arith.constant 0 : i32
    %c0_i32_0 = arith.constant 0 : i32
    %c0_i32_1 = arith.constant 0 : i32
    return %c0_i32, %c0_i32_0 : i32, i32
  }
  func.func @transform_6(%arg0: i32) -> (i32, i32) {
    %c0_i32 = arith.constant 0 : i32
    %c0_i32_0 = arith.constant 0 : i32
    %c0_i32_1 = arith.constant 0 : i32
    return %c0_i32, %c0_i32_0 : i32, i32
  }
  func.func @transform_7(%arg0: i32) -> (i32, i32) {
    %c0_i32 = arith.constant 0 : i32
    %c0_i32_0 = arith.constant 0 : i32
    %c0_i32_1 = arith.constant 0 : i32
    return %c0_i32, %c0_i32_0 : i32, i32
  }
  func.func @transform_8(%arg0: i32) -> (i32, i32) {
    %c0_i32 = arith.constant 0 : i32
    %c0_i32_0 = arith.constant 0 : i32
    return %arg0, %c0_i32 : i32, i32
  }
  func.func @transform_9(%arg0: i32) -> (i32, i32) {
    %c0_i32 = arith.constant 0 : i32
    %c0_i32_0 = arith.constant 0 : i32
    return %arg0, %c0_i32 : i32, i32
  }
}

module attributes {stable_mosaic.version = 11 : i64} {
  func.func @_rec_tail_kernel(%arg0: i32, %arg1: memref<128x16xf32, #tpu.memory_space<vmem>>, %arg2: memref<128x16xf32, #tpu.memory_space<vmem>>, %arg3: memref<16x16xbf16, #tpu.memory_space<vmem>>, %arg4: memref<1x16xf32, #tpu.memory_space<vmem>>, %arg5: memref<16x16xbf16, #tpu.memory_space<vmem>>, %arg6: memref<1x16xf32, #tpu.memory_space<vmem>>, %arg7: memref<16x16xbf16, #tpu.memory_space<vmem>>, %arg8: memref<1x16xf32, #tpu.memory_space<vmem>>, %arg9: memref<128x16xf32, #tpu.memory_space<vmem>>, %arg10: memref<128x16xf32, #tpu.memory_space<vmem>>) attributes {dimension_semantics = [#tpu.dimension_semantics<parallel>], iteration_bounds = array<i64: 1>, scalar_prefetch = 0 : i64, scratch_operands = 0 : i64, tpu.core_type = #tpu.core_type<tc>, window_params = [{transform_indices = @transform_0, window_bounds = array<i64: 128, 16>}, {transform_indices = @transform_1, window_bounds = array<i64: 128, 16>}, {pipeline_mode = #tpu.pipeline_mode<synchronous>, transform_indices = @transform_2, window_bounds = array<i64: 16, 16>}, {pipeline_mode = #tpu.pipeline_mode<synchronous>, transform_indices = @transform_3, window_bounds = array<i64: 1, 16>}, {pipeline_mode = #tpu.pipeline_mode<synchronous>, transform_indices = @transform_4, window_bounds = array<i64: 16, 16>}, {pipeline_mode = #tpu.pipeline_mode<synchronous>, transform_indices = @transform_5, window_bounds = array<i64: 1, 16>}, {pipeline_mode = #tpu.pipeline_mode<synchronous>, transform_indices = @transform_6, window_bounds = array<i64: 16, 16>}, {pipeline_mode = #tpu.pipeline_mode<synchronous>, transform_indices = @transform_7, window_bounds = array<i64: 1, 16>}, {transform_indices = @transform_8, window_bounds = array<i64: 128, 16>}, {transform_indices = @transform_9, window_bounds = array<i64: 128, 16>}]} {
    %c0 = arith.constant 0 : index
    %c0_0 = arith.constant 0 : index
    %0 = vector.load %arg1[%c0, %c0_0] : memref<128x16xf32, #tpu.memory_space<vmem>>, vector<128x16xf32>
    %1 = arith.truncf %0 : vector<128x16xf32> to vector<128x16xbf16>
    %c0_1 = arith.constant 0 : index
    %c0_2 = arith.constant 0 : index
    %2 = vector.load %arg3[%c0_1, %c0_2] : memref<16x16xbf16, #tpu.memory_space<vmem>>, vector<16x16xbf16>
    %cst = arith.constant dense<0.000000e+00> : vector<128x16xf32>
    %3 = tpu.matmul %1, %2, %cst {dimension_numbers = #tpu.dot_dimension_numbers<[1], [0], [0], [1], [0, 0, 1, 1], [], []>} : vector<128x16xbf16>, vector<16x16xbf16>, vector<128x16xf32> -> vector<128x16xf32>
    %c0_3 = arith.constant 0 : index
    %c0_4 = arith.constant 0 : index
    %4 = vector.load %arg4[%c0_3, %c0_4] : memref<1x16xf32, #tpu.memory_space<vmem>>, vector<1x16xf32>
    %5 = vector.broadcast %4 : vector<1x16xf32> to vector<128x16xf32>
    %6 = arith.addf %3, %5 : vector<128x16xf32>
    %c0_5 = arith.constant 0 : index
    %c0_6 = arith.constant 0 : index
    %7 = vector.load %arg5[%c0_5, %c0_6] : memref<16x16xbf16, #tpu.memory_space<vmem>>, vector<16x16xbf16>
    %cst_7 = arith.constant dense<0.000000e+00> : vector<128x16xf32>
    %8 = tpu.matmul %1, %7, %cst_7 {dimension_numbers = #tpu.dot_dimension_numbers<[1], [0], [0], [1], [0, 0, 1, 1], [], []>} : vector<128x16xbf16>, vector<16x16xbf16>, vector<128x16xf32> -> vector<128x16xf32>
    %c0_8 = arith.constant 0 : index
    %c0_9 = arith.constant 0 : index
    %9 = vector.load %arg6[%c0_8, %c0_9] : memref<1x16xf32, #tpu.memory_space<vmem>>, vector<1x16xf32>
    %10 = vector.broadcast %9 : vector<1x16xf32> to vector<128x16xf32>
    %11 = arith.addf %8, %10 : vector<128x16xf32>
    %12 = arith.truncf %6 : vector<128x16xf32> to vector<128x16xbf16>
    %c0_10 = arith.constant 0 : index
    %c0_11 = arith.constant 0 : index
    %13 = vector.load %arg7[%c0_10, %c0_11] : memref<16x16xbf16, #tpu.memory_space<vmem>>, vector<16x16xbf16>
    %cst_12 = arith.constant dense<0.000000e+00> : vector<128x16xf32>
    %14 = tpu.matmul %12, %13, %cst_12 {dimension_numbers = #tpu.dot_dimension_numbers<[1], [0], [0], [1], [0, 0, 1, 1], [], []>} : vector<128x16xbf16>, vector<16x16xbf16>, vector<128x16xf32> -> vector<128x16xf32>
    %c0_13 = arith.constant 0 : index
    %c0_14 = arith.constant 0 : index
    %15 = vector.load %arg8[%c0_13, %c0_14] : memref<1x16xf32, #tpu.memory_space<vmem>>, vector<1x16xf32>
    %16 = vector.broadcast %15 : vector<1x16xf32> to vector<128x16xf32>
    %17 = arith.addf %14, %16 : vector<128x16xf32>
    %c0_15 = arith.constant 0 : index
    %c0_16 = arith.constant 0 : index
    %18 = vector.load %arg9[%c0_15, %c0_16] : memref<128x16xf32, #tpu.memory_space<vmem>>, vector<128x16xf32>
    tpu.vector_store %arg9[%c0_15, %c0_16], %6 {strides = array<i32>} : memref<128x16xf32, #tpu.memory_space<vmem>>, vector<128x16xf32>,
    %c0_17 = arith.constant 0 : index
    %c0_18 = arith.constant 0 : index
    %19 = vector.load %arg2[%c0_17, %c0_18] : memref<128x16xf32, #tpu.memory_space<vmem>>, vector<128x16xf32>
    %20 = arith.addf %19, %11 : vector<128x16xf32>
    %21 = arith.addf %20, %17 : vector<128x16xf32>
    %cst_19 = arith.constant 0.000000e+00 : f32
    %22 = vector.broadcast %cst_19 : f32 to vector<128x16xf32>
    %23 = arith.maximumf %21, %22 : vector<128x16xf32>
    %c0_20 = arith.constant 0 : index
    %c0_21 = arith.constant 0 : index
    %24 = vector.load %arg10[%c0_20, %c0_21] : memref<128x16xf32, #tpu.memory_space<vmem>>, vector<128x16xf32>
    tpu.vector_store %arg10[%c0_20, %c0_21], %23 {strides = array<i32>} : memref<128x16xf32, #tpu.memory_space<vmem>>, vector<128x16xf32>,
    return
  }
  func.func @transform_0(%arg0: i32) -> (i32, i32) {
    %c0_i32 = arith.constant 0 : i32
    %c0_i32_0 = arith.constant 0 : i32
    return %arg0, %c0_i32 : i32, i32
  }
  func.func @transform_1(%arg0: i32) -> (i32, i32) {
    %c0_i32 = arith.constant 0 : i32
    %c0_i32_0 = arith.constant 0 : i32
    return %arg0, %c0_i32 : i32, i32
  }
  func.func @transform_2(%arg0: i32) -> (i32, i32) {
    %c0_i32 = arith.constant 0 : i32
    %c0_i32_0 = arith.constant 0 : i32
    %c0_i32_1 = arith.constant 0 : i32
    return %c0_i32, %c0_i32_0 : i32, i32
  }
  func.func @transform_3(%arg0: i32) -> (i32, i32) {
    %c0_i32 = arith.constant 0 : i32
    %c0_i32_0 = arith.constant 0 : i32
    %c0_i32_1 = arith.constant 0 : i32
    return %c0_i32, %c0_i32_0 : i32, i32
  }
  func.func @transform_4(%arg0: i32) -> (i32, i32) {
    %c0_i32 = arith.constant 0 : i32
    %c0_i32_0 = arith.constant 0 : i32
    %c0_i32_1 = arith.constant 0 : i32
    return %c0_i32, %c0_i32_0 : i32, i32
  }
  func.func @transform_5(%arg0: i32) -> (i32, i32) {
    %c0_i32 = arith.constant 0 : i32
    %c0_i32_0 = arith.constant 0 : i32
    %c0_i32_1 = arith.constant 0 : i32
    return %c0_i32, %c0_i32_0 : i32, i32
  }
  func.func @transform_6(%arg0: i32) -> (i32, i32) {
    %c0_i32 = arith.constant 0 : i32
    %c0_i32_0 = arith.constant 0 : i32
    %c0_i32_1 = arith.constant 0 : i32
    return %c0_i32, %c0_i32_0 : i32, i32
  }
  func.func @transform_7(%arg0: i32) -> (i32, i32) {
    %c0_i32 = arith.constant 0 : i32
    %c0_i32_0 = arith.constant 0 : i32
    %c0_i32_1 = arith.constant 0 : i32
    return %c0_i32, %c0_i32_0 : i32, i32
  }
  func.func @transform_8(%arg0: i32) -> (i32, i32) {
    %c0_i32 = arith.constant 0 : i32
    %c0_i32_0 = arith.constant 0 : i32
    return %arg0, %c0_i32 : i32, i32
  }
  func.func @transform_9(%arg0: i32) -> (i32, i32) {
    %c0_i32 = arith.constant 0 : i32
    %c0_i32_0 = arith.constant 0 : i32
    return %arg0, %c0_i32 : i32, i32
  }
}

module attributes {stable_mosaic.version = 11 : i64} {
  func.func @_softargmax_kernel(%arg0: i32, %arg1: memref<32x64xf32, #tpu.memory_space<vmem>>, %arg2: memref<32x2xf32, #tpu.memory_space<vmem>>) attributes {dimension_semantics = [#tpu.dimension_semantics<parallel>], iteration_bounds = array<i64: 1>, scalar_prefetch = 0 : i64, scratch_operands = 0 : i64, tpu.core_type = #tpu.core_type<tc>, window_params = [{transform_indices = @transform_0, window_bounds = array<i64: 32, 64>}, {transform_indices = @transform_1, window_bounds = array<i64: 32, 2>}]} {
    %c0 = arith.constant 0 : index
    %c0_0 = arith.constant 0 : index
    %0 = vector.load %arg1[%c0, %c0_0] : memref<32x64xf32, #tpu.memory_space<vmem>>, vector<32x64xf32>
    %cst = arith.constant dense<0xFF800000> : vector<32xf32>
    %1 = vector.multi_reduction <maximumf>, %0, %cst [1] : vector<32x64xf32> to vector<32xf32>
    %2 = vector.shape_cast %1 : vector<32xf32> to vector<32x1xf32>
    %3 = vector.broadcast %2 : vector<32x1xf32> to vector<32x64xf32>
    %4 = arith.subf %0, %3 : vector<32x64xf32>
    %5 = math.exp %4 : vector<32x64xf32>
    %cst_1 = arith.constant dense<0.000000e+00> : vector<32xf32>
    %6 = vector.multi_reduction <add>, %5, %cst_1 [1] : vector<32x64xf32> to vector<32xf32>
    %7 = vector.shape_cast %6 : vector<32xf32> to vector<32x1xf32>
    %8 = tpu.reciprocal %7 {approx = true} : vector<32x1xf32> -> vector<32x1xf32>
    %9 = vector.broadcast %8 : vector<32x1xf32> to vector<32x64xf32>
    %10 = arith.mulf %5, %9 : vector<32x64xf32>
    %11 = tpu.iota {dimensions = array<i32: 1>} : vector<32x64xi32>
    %12 = arith.sitofp %11 : vector<32x64xi32> to vector<32x64xf32>
    %cst_2 = arith.constant 1.250000e-01 : f32
    %13 = vector.broadcast %cst_2 : f32 to vector<32x64xf32>
    %14 = arith.mulf %12, %13 : vector<32x64xf32>
    %15 = math.floor %14 : vector<32x64xf32>
    %cst_3 = arith.constant 8.000000e+00 : f32
    %16 = vector.broadcast %cst_3 : f32 to vector<32x64xf32>
    %17 = arith.mulf %15, %16 : vector<32x64xf32>
    %18 = arith.subf %12, %17 : vector<32x64xf32>
    %cst_4 = arith.constant 5.000000e-01 : f32
    %19 = vector.broadcast %cst_4 : f32 to vector<32x64xf32>
    %20 = arith.addf %18, %19 : vector<32x64xf32>
    %cst_5 = arith.constant 1.250000e-01 : f32
    %21 = vector.broadcast %cst_5 : f32 to vector<32x64xf32>
    %22 = arith.mulf %20, %21 : vector<32x64xf32>
    %cst_6 = arith.constant 5.000000e-01 : f32
    %23 = vector.broadcast %cst_6 : f32 to vector<32x64xf32>
    %24 = arith.addf %15, %23 : vector<32x64xf32>
    %cst_7 = arith.constant 1.250000e-01 : f32
    %25 = vector.broadcast %cst_7 : f32 to vector<32x64xf32>
    %26 = arith.mulf %24, %25 : vector<32x64xf32>
    %27 = arith.mulf %10, %22 : vector<32x64xf32>
    %cst_8 = arith.constant dense<0.000000e+00> : vector<32xf32>
    %28 = vector.multi_reduction <add>, %27, %cst_8 [1] : vector<32x64xf32> to vector<32xf32>
    %29 = vector.shape_cast %28 : vector<32xf32> to vector<32x1xf32>
    %c0_9 = arith.constant 0 : index
    %c0_10 = arith.constant 0 : index
    %30 = vector.load %arg2[%c0_9, %c0_10] : memref<32x2xf32, #tpu.memory_space<vmem>>, vector<32x1xf32>
    tpu.vector_store %arg2[%c0_9, %c0_10], %29 {strides = array<i32>} : memref<32x2xf32, #tpu.memory_space<vmem>>, vector<32x1xf32>,
    %31 = arith.mulf %10, %26 : vector<32x64xf32>
    %cst_11 = arith.constant dense<0.000000e+00> : vector<32xf32>
    %32 = vector.multi_reduction <add>, %31, %cst_11 [1] : vector<32x64xf32> to vector<32xf32>
    %33 = vector.shape_cast %32 : vector<32xf32> to vector<32x1xf32>
    %c0_12 = arith.constant 0 : index
    %c1 = arith.constant 1 : index
    %34 = vector.load %arg2[%c0_12, %c1] : memref<32x2xf32, #tpu.memory_space<vmem>>, vector<32x1xf32>
    tpu.vector_store %arg2[%c0_12, %c1], %33 {strides = array<i32>} : memref<32x2xf32, #tpu.memory_space<vmem>>, vector<32x1xf32>,
    return
  }
  func.func @transform_0(%arg0: i32) -> (i32, i32) {
    %c0_i32 = arith.constant 0 : i32
    %c0_i32_0 = arith.constant 0 : i32
    return %arg0, %c0_i32 : i32, i32
  }
  func.func @transform_1(%arg0: i32) -> (i32, i32) {
    %c0_i32 = arith.constant 0 : i32
    %c0_i32_0 = arith.constant 0 : i32
    return %arg0, %c0_i32 : i32, i32
  }
}

</mosaic_0001>

<llo_original>
// kernel: mpii_4_forward.16
$region0: #{mpii_4_forward.16}
  #allocation0 [shape = 'u32[]', space=smem, size = 0x4, offset = 0x4, fixed_abs, tag = 'smem constant byte address 0x4 - core index']
  #allocation1 [shape = 'u32[144,128]{1,0:T(1,128)}', space=vmem, size = 0x12000, scoped, tag = 'internal scratch']
  #allocation2 [shape = 'f32[16,8]{1,0:T(8,128)}', space=vmem, size = 0x2000, scoped, tag = 'scratch operand']
  %s0 = inlined_call_operand.vmem [shape: f32[2,18,18,8], index: 0, kind: input, shape index: {}]
  %s1 = inlined_call_operand.vmem [shape: bf16[3,3,8,8], index: 1, kind: input, shape index: {}]
  %s2 = inlined_call_operand.vmem [shape: f32[1,8], index: 2, kind: input, shape index: {}]
  %s3 = inlined_call_operand.vmem [shape: f32[2,16,16,8], index: 3, kind: output, shape index: {}]
  %s4 = sld [smem:[#allocation0]]
  $region53: #{mpii_4_forward.16} parent=0
    _
  %s6 = ssub.s32 1, %s4
  %s7 = scalar_select 0, %s6, %s4
  loop: start=0, step=1, limit=98
  $region2: #{mpii_4_forward.16} parent=0 // loop_pre_header
    _
  $region3: #{mpii_4_forward.16} parent=0 // loop_header
    %s9 = sphi 0, %s13
    %p10 = scmp.ge.s32.totalorder %s9, 98
    %s16 = sphi 0, %s35
    %s17 = sphi 0, %s31
    %s18 = sphi 0, %s27
    %s19 = sphi 0, %s16
    %s20 = sphi 0, %s17
    %s21 = sphi 0, %s18
    %s22 = sphi 0, %s19
    %s23 = sphi 0, %s20
    %s24 = sphi 0, %s21
    %s42 = sphi 0, %s44
    %s45 = sphi 0, %s42
    %s46 = sphi 0, %s45
    %s62 = sphi 0, %s46
    %s68 = sphi 0, %s70
    %s71 = sphi 0, %s68
    %s72 = sphi 0, %s71
    %s88 = sphi 0, %s72
    %s92 = sphi 0, %s92
    %s94 = sphi 0, %s92
    %s95 = sphi 0, %s94
    %s109 = sphi 0, %s95
    %s117 = sphi 0, %s119
    %s120 = sphi 0, %s117
    %s121 = sphi 0, %s120
    %s137 = sphi 0, %s121
  $region4: #{mpii_4_forward.16} parent=0 // loop_header_branch
    %12 = sbr.rel (%p10) target = $region8
  $region5: #{mpii_4_forward.16} parent=0 // loop_body
    %s14 = ssub.s32 %s9, 1
    %s15 = ssub.s32 %s9, 2
    %s25 = sadd.s32 1, %s18
    %p26 = scmp.ge.s32.totalorder %s25, 3
    %s27 = scalar_select %p26, 0, %s25
    %s28 = sadd.s32 1, %s17
    %s29 = scalar_select %p26, %s28, %s17
    %p30 = scmp.ge.s32.totalorder %s29, 16
    %s31 = scalar_select %p30, 0, %s29
    %s32 = sadd.s32 1, %s16
    %s33 = scalar_select %p30, %s32, %s16
    %p34 = scmp.ge.s32.totalorder %s33, 2
    %s35 = scalar_select %p34, 0, %s33
    %s36 = sadd.s32 %s17, %s18
    %s37 = sadd.s32 %s31, %s27
    %s38 = ssub.s32 %s16, %s35
    %s39 = ssub.s32 %s36, %s37
    %s40 = sor.u32 %s38, %s39
    %p41 = scmp.eq.s32.totalorder %s40, 0
    %s43 = sadd.s32 %s42, 1
    %s44 = scalar_select %p41, %s42, %s43
    %p47 = pneg %p41
    %p48 = scmp.eq.s32.totalorder %s9, 95
    %p49 = por %p47, %p48
    %p50 = scmp.ne.s32.totalorder %s42, %s45
    %p51 = scmp.eq.s32.totalorder %s9, 0
    %p52 = por %p50, %p51
    %p53 = scmp.ne.s32.totalorder %s42, %s45
    %p54 = scmp.eq.s32.totalorder %s14, 95
    %p55 = por %p53, %p54
    %p56 = scmp.ne.s32.totalorder %s45, %s46
    %p57 = scmp.eq.s32.totalorder %s14, 0
    %p58 = por %p56, %p57
    %p59 = scmp.ne.s32.totalorder %s45, %s46
    %p60 = scmp.eq.s32.totalorder %s15, 95
    %p61 = por %p59, %p60
    %p63 = scmp.ne.s32.totalorder %s46, %s62
    %p64 = scmp.eq.s32.totalorder %s15, 0
    %p65 = por %p63, %p64
    %s66 = ssub.s32 %s18, %s27
    %p67 = scmp.eq.s32.totalorder %s66, 0
    %s69 = sadd.s32 %s68, 1
    %s70 = scalar_select %p67, %s68, %s69
    %p73 = pneg %p67
    %p74 = scmp.eq.s32.totalorder %s9, 95
    %p75 = por %p73, %p74
    %p76 = scmp.ne.s32.totalorder %s68, %s71
    %p77 = scmp.eq.s32.totalorder %s9, 0
    %p78 = por %p76, %p77
    %p79 = scmp.ne.s32.totalorder %s68, %s71
    %p80 = scmp.eq.s32.totalorder %s14, 95
    %p81 = por %p79, %p80
    %p82 = scmp.ne.s32.totalorder %s71, %s72
    %p83 = scmp.eq.s32.totalorder %s14, 0
    %p84 = por %p82, %p83
    %p85 = scmp.ne.s32.totalorder %s71, %s72
    %p86 = scmp.eq.s32.totalorder %s15, 95
    %p87 = por %p85, %p86
    %p89 = scmp.ne.s32.totalorder %s72, %s88
    %p90 = scmp.eq.s32.totalorder %s15, 0
    %p91 = por %p89, %p90
    %s93 = sadd.s32 %s92, 1
    %p96 = scmp.eq.s32.totalorder %s9, 95
    %p97 = scmp.ne.s32.totalorder %s92, %s94
    %p98 = scmp.eq.s32.totalorder %s9, 0
    %p99 = por %p97, %p98
    %p100 = scmp.ne.s32.totalorder %s92, %s94
    %p101 = scmp.eq.s32.totalorder %s14, 95
    %p102 = por %p100, %p101
    %p103 = scmp.ne.s32.totalorder %s94, %s95
    %p104 = scmp.eq.s32.totalorder %s14, 0
    %p105 = por %p103, %p104
    %p106 = scmp.ne.s32.totalorder %s94, %s95
    %p107 = scmp.eq.s32.totalorder %s15, 95
    %p108 = por %p106, %p107
    %p110 = scmp.ne.s32.totalorder %s95, %s109
    %p111 = scmp.eq.s32.totalorder %s15, 0
    %p112 = por %p110, %p111
    %s113 = ssub.s32 %s16, %s35
    %s114 = ssub.s32 %s17, %s31
    %s115 = sor.u32 %s113, %s114
    %p116 = scmp.eq.s32.totalorder %s115, 0
    %s118 = sadd.s32 %s117, 1
    %s119 = scalar_select %p116, %s117, %s118
    %p122 = pneg %p116
    %p123 = scmp.eq.s32.totalorder %s9, 95
    %p124 = por %p122, %p123
    %p125 = scmp.ne.s32.totalorder %s117, %s120
    %p126 = scmp.eq.s32.totalorder %s9, 0
    %p127 = por %p125, %p126
    %p128 = scmp.ne.s32.totalorder %s117, %s120
    %p129 = scmp.eq.s32.totalorder %s14, 95
    %p130 = por %p128, %p129
    %p131 = scmp.ne.s32.totalorder %s120, %s121
    %p132 = scmp.eq.s32.totalorder %s14, 0
    %p133 = por %p131, %p132
    %p134 = scmp.ne.s32.totalorder %s120, %s121
    %p135 = scmp.eq.s32.totalorder %s15, 95
    %p136 = por %p134, %p135
    %p138 = scmp.ne.s32.totalorder %s121, %s137
    %p139 = scmp.eq.s32.totalorder %s15, 0
    %p140 = por %p138, %p139
    %p141 = scmp.le.s32.totalorder 1, %s9
    %p142 = scmp.lt.s32.totalorder %s9, 97
    %p143 = pnand %p141, %p142
    %p144 = pneg %p143
    // Predicated region
    $region9: #{mpii_4_forward.16} parent=5 // pred_check
      _
    $region10: #{mpii_4_forward.16} parent=5 // pred_check_branch
      %146 = sbr.rel (%p143) target = $region12
    $region11: #{mpii_4_forward.16} parent=5 // pred_region
      %s147 = ssub.s32 %s9, 1
      // Predicated region
      $region13: #{mpii_4_forward.16} parent=11 // pred_check
        %p148 = pneg %p105
      $region14: #{mpii_4_forward.16} parent=11 // pred_check_branch
        %150 = sbr.rel (%p148) target = $region16
      $region15: #{mpii_4_forward.16} parent=11 // pred_region
        _
      $region16: #{mpii_4_forward.16} parent=11 // pred_fallthru
        _
    $region12: #{mpii_4_forward.16} parent=5 // pred_fallthru
      _
    %p151 = scmp.lt.s32.totalorder %s9, 96
    // Predicated region
    $region17: #{mpii_4_forward.16} parent=5 // pred_check
      %p152 = pneg %p151
    $region18: #{mpii_4_forward.16} parent=5 // pred_check_branch
      %154 = sbr.rel (%p152) target = $region20
    $region19: #{mpii_4_forward.16} parent=5 // pred_region
      // Predicated region
      $region21: #{mpii_4_forward.16} parent=19 // pred_check
        %p155 = pneg %p52
      $region22: #{mpii_4_forward.16} parent=19 // pred_check_branch
        %157 = sbr.rel (%p155) target = $region24
      $region23: #{mpii_4_forward.16} parent=19 // pred_region
        %s158 = sadd.s32 %s17, %s18
        %p159 = scmp.lt.s32.totalorder %s16, 1
        %s160 = scalar_select %p159, %s16, 1
        %p161 = scmp.lt.s32.totalorder %s158, 17
        %s162 = scalar_select %p161, %s158, 17
        %s163 = smul.addr %s162, 3
        %s164 = smul.addr %s160, 54
        %s165 = sadd.s32 %s163, %s164
        %s166 = smul.addr %s165, 8
        %s167 = scalar_lea.vmem %s0, %s166
        %s168 = sadd.s32 %s17, %s18
      $region24: #{mpii_4_forward.16} parent=19 // pred_fallthru
        _
      // Predicated region
      $region25: #{mpii_4_forward.16} parent=19 // pred_check
        %p169 = pneg %p78
      $region26: #{mpii_4_forward.16} parent=19 // pred_check_branch
        %171 = sbr.rel (%p169) target = $region28
      $region27: #{mpii_4_forward.16} parent=19 // pred_region
        %p172 = scmp.lt.s32.totalorder %s18, 2
        %s173 = scalar_select %p172, %s18, 2
        %s174 = smul.addr %s173, 3
        %s175 = smul.addr %s174, 4
        %s176 = scalar_lea.vmem %s1, %s175
      $region28: #{mpii_4_forward.16} parent=19 // pred_fallthru
        _
    $region20: #{mpii_4_forward.16} parent=5 // pred_fallthru
      _
    %p177 = scmp.le.s32.totalorder 1, %s9
    %p178 = scmp.lt.s32.totalorder %s9, 97
    %p179 = pnand %p177, %p178
    %p180 = pneg %p179
    // Predicated region
    $region29: #{mpii_4_forward.16} parent=5 // pred_check
      _
    $region30: #{mpii_4_forward.16} parent=5 // pred_check_branch
      %182 = sbr.rel (%p179) target = $region32
    $region31: #{mpii_4_forward.16} parent=5 // pred_region
      %s183 = ssub.s32 %s9, 1
      %s184 = sadd.s32 %s20, %s21
      %p185 = scmp.lt.s32.totalorder %s19, 1
      %s186 = scalar_select %p185, %s19, 1
      %p187 = scmp.lt.s32.totalorder %s184, 17
      %s188 = scalar_select %p187, %s184, 17
      %s189 = smul.addr %s188, 3
      %s190 = smul.addr %s186, 54
      %s191 = sadd.s32 %s189, %s190
      %s192 = smul.addr %s191, 8
      %s193 = scalar_lea.vmem %s0, %s192
      %p194 = pneg %p58
      %p195 = pneg %p55
      %p196 = scmp.lt.s32.totalorder %s21, 2
      %s197 = scalar_select %p196, %s21, 2
      %s198 = smul.addr %s197, 3
      %s199 = smul.addr %s198, 4
      %s200 = scalar_lea.vmem %s1, %s199
      %p201 = pneg %p84
      %p202 = pneg %p81
      %p203 = pneg %p105
      %p204 = pneg %p102
      %p205 = pneg %p133
      %p206 = pneg %p130
      %p207 = scmp.lt.s32.totalorder %s19, 1
      %s208 = scalar_select %p207, %s19, 1
      %p209 = scmp.lt.s32.totalorder %s20, 15
      %s210 = scalar_select %p209, %s20, 15
      %s211 = smul.addr %s210, 2
      %s212 = smul.addr %s208, 32
      %s213 = sadd.s32 %s211, %s212
      %s214 = smul.addr %s213, 8
      %s215 = scalar_lea.vmem %s3, %s214
      %s216 = sadd.s32 %s20, %s21
      %p217 = scmp.lt.s32.totalorder %s19, 1
      %s218 = scalar_select %p217, %s19, 1
      %p219 = scmp.lt.s32.totalorder %s216, 17
      %s220 = scalar_select %p219, %s216, 17
      %s221 = smul.addr %s220, 3
      %s222 = smul.addr %s218, 54
      %s223 = sadd.s32 %s221, %s222
      %s224 = smul.addr %s223, 8
      %s225 = scalar_lea.vmem %s0, %s224
      %s226 = sadd.s32 %s20, %s21
      %p227 = scmp.lt.s32.totalorder %s21, 2
      %s228 = scalar_select %p227, %s21, 2
      %s229 = smul.addr %s228, 3
      %s230 = smul.addr %s229, 4
      %s231 = scalar_lea.vmem %s1, %s230
      %p232 = scmp.lt.s32.totalorder %s19, 1
      %s233 = scalar_select %p232, %s19, 1
      %p234 = scmp.lt.s32.totalorder %s20, 15
      %s235 = scalar_select %p234, %s20, 15
      %s236 = smul.addr %s235, 2
      %s237 = smul.addr %s233, 32
      %s238 = sadd.s32 %s236, %s237
      %s239 = smul.addr %s238, 8
      %s240 = scalar_lea.vmem %s3, %s239
      %p242 = scmp.eq.s32.totalorder %s21, 0
      // Predicated region
      $region33: #{mpii_4_forward.16} parent=31 // pred_check
        %p243 = pneg %p242
      $region34: #{mpii_4_forward.16} parent=31 // pred_check_branch
        %245 = sbr.rel (%p243) target = $region36
      $region35: #{mpii_4_forward.16} parent=31 // pred_region
        %vm246 = vcmask 64512
        %247 = vst.msk [vmem:[#allocation2] sm:$0xff] %vm246, 0.0
        %248 = vst.msk [vmem:[#allocation2 + $0x8] sm:$0xff] %vm246, 0.0
      $region36: #{mpii_4_forward.16} parent=31 // pred_fallthru
        _
      %v249 = vld [vmem:[#allocation2] sm:$0xff]
      %v250 = vld [vmem:[#allocation2 + $0x8] sm:$0xff]
      %v251 = vld [vmem:[%s225] sm:$0xff]
      %v252 = vld [vmem:[%s225 + $0x8] sm:$0xff]
      %v253 = vpack.c.bf16 %v252, %v251
      %v254 = vld [vmem:[%s231] sm:$0xf]
      %vm255 = vcmask 64512
      %v257 = vsel %vm255, %v253, 0
      %vm259 = vcmask 1043456
      %v261 = vsel %vm259, %v254, 0
      %263 = vmatprep.subr.bf16.mxu0 0
      %264 = vmatpush1.bf16.msra.mxu0 %v261
      %265 = vmatprep.subr.bf16.mxu0 0
      %266 = vmatpush1.bf16.msra.mxu0 0
      %267 = vmatprep.subr.bf16.mxu0 0
      %268 = vmatpush1.bf16.msra.mxu0 0
      %269 = vmatprep.subr.bf16.mxu0 0
      %270 = vmatpush1.bf16.msra.mxu0 0
      %271 = vmatprep.subr.bf16.mxu0 0
      %272 = vmatpush1.bf16.msra.mxu0 0
      %273 = vmatprep.subr.bf16.mxu0 0
      %274 = vmatpush1.bf16.msra.mxu0 0
      %275 = vmatprep.subr.bf16.mxu0 0
      %276 = vmatpush1.bf16.msra.mxu0 0
      %277 = vmatprep.subr.bf16.mxu0 0
      %278 = vmatpush1.bf16.msra.mxu0 0
      %279 = vmatprep.subr.bf16.mxu0 0
      %280 = vmatpush1.bf16.msra.mxu0 0
      %281 = vmatprep.subr.bf16.mxu0 0
      %282 = vmatpush1.bf16.msra.mxu0 0
      %283 = vmatprep.subr.bf16.mxu0 0
      %284 = vmatpush1.bf16.msra.mxu0 0
      %285 = vmatprep.subr.bf16.mxu0 0
      %286 = vmatpush1.bf16.msra.mxu0 0
      %287 = vmatprep.subr.bf16.mxu0 0
      %288 = vmatpush1.bf16.msra.mxu0 0
      %289 = vmatprep.subr.bf16.mxu0 0
      %290 = vmatpush1.bf16.msra.mxu0 0
      %291 = vmatprep.subr.bf16.mxu0 0
      %292 = vmatpush1.bf16.msra.mxu0 0
      %293 = vmatprep.subr.bf16.mxu0 0
      %294 = vmatpush1.bf16.msra.mxu0 0
      %295 = vmatprep.mubr.bf16.mxu0 0
      %296 = vmatmul.mubr.bf16.gmra.mrb[0].mxu0 %v257
      %v297 = vpop.f32.mrb[0].mxu0
      %v298 = vadd.f32 0.0, %v297
      %v299 = vpop.f32.mrb[0].mxu0
      %v300 = vpop.f32.mrb[0].mxu0
      %v301 = vadd.f32 0.0, %v300
      %v302 = vpop.f32.mrb[0].mxu0
      %303 = vdwg.mxu0
      %v304 = vadd.f32 %v249, %v298
      %v305 = vadd.f32 %v250, %v301
      %v306 = vld [vmem:[%s225 + $0x1] sm:$0xff]
      %v307 = vld [vmem:[%s225 + $0x9] sm:$0xff]
      %v308 = vpack.c.bf16 %v307, %v306
      %s309 = scalar_lea.vmem %s231, 4
      %v310 = vld [vmem:[%s309] sm:$0xf]
      %v312 = vsel %vm255, %v308, 0
      %v315 = vsel %vm259, %v310, 0
      %317 = vmatprep.subr.bf16.mxu0 0
      %318 = vmatpush1.bf16.msra.mxu0 %v315
      %319 = vmatprep.subr.bf16.mxu0 0
      %320 = vmatpush1.bf16.msra.mxu0 0
      %321 = vmatprep.subr.bf16.mxu0 0
      %322 = vmatpush1.bf16.msra.mxu0 0
      %323 = vmatprep.subr.bf16.mxu0 0
      %324 = vmatpush1.bf16.msra.mxu0 0
      %325 = vmatprep.subr.bf16.mxu0 0
      %326 = vmatpush1.bf16.msra.mxu0 0
      %327 = vmatprep.subr.bf16.mxu0 0
      %328 = vmatpush1.bf16.msra.mxu0 0
      %329 = vmatprep.subr.bf16.mxu0 0
      %330 = vmatpush1.bf16.msra.mxu0 0
      %331 = vmatprep.subr.bf16.mxu0 0
      %332 = vmatpush1.bf16.msra.mxu0 0
      %333 = vmatprep.subr.bf16.mxu0 0
      %334 = vmatpush1.bf16.msra.mxu0 0
      %335 = vmatprep.subr.bf16.mxu0 0
      %336 = vmatpush1.bf16.msra.mxu0 0
      %337 = vmatprep.subr.bf16.mxu0 0
      %338 = vmatpush1.bf16.msra.mxu0 0
      %339 = vmatprep.subr.bf16.mxu0 0
      %340 = vmatpush1.bf16.msra.mxu0 0
      %341 = vmatprep.subr.bf16.mxu0 0
      %342 = vmatpush1.bf16.msra.mxu0 0
      %343 = vmatprep.subr.bf16.mxu0 0
      %344 = vmatpush1.bf16.msra.mxu0 0
      %345 = vmatprep.subr.bf16.mxu0 0
      %346 = vmatpush1.bf16.msra.mxu0 0
      %347 = vmatprep.subr.bf16.mxu0 0
      %348 = vmatpush1.bf16.msra.mxu0 0
      %349 = vmatprep.mubr.bf16.mxu0 0
      %350 = vmatmul.mubr.bf16.gmra.mrb[0].mxu0 %v312
      %v351 = vpop.f32.mrb[0].mxu0
      %v352 = vadd.f32 0.0, %v351
      %v353 = vpop.f32.mrb[0].mxu0
      %v354 = vpop.f32.mrb[0].mxu0
      %v355 = vadd.f32 0.0, %v354
      %v356 = vpop.f32.mrb[0].mxu0
      %357 = vdwg.mxu0
      %v358 = vadd.f32 %v304, %v352
      %v359 = vadd.f32 %v305, %v355
      %v360 = vld [vmem:[%s225 + $0x2] sm:$0xff]
      %v361 = vld [vmem:[%s225 + $0xa] sm:$0xff]
      %v362 = vpack.c.bf16 %v361, %v360
      %s363 = scalar_lea.vmem %s231, 8
      %v364 = vld [vmem:[%s363] sm:$0xf]
      %v366 = vsel %vm255, %v362, 0
      %v369 = vsel %vm259, %v364, 0
      %371 = vmatprep.subr.bf16.mxu0 0
      %372 = vmatpush1.bf16.msra.mxu0 %v369
      %373 = vmatprep.subr.bf16.mxu0 0
      %374 = vmatpush1.bf16.msra.mxu0 0
      %375 = vmatprep.subr.bf16.mxu0 0
      %376 = vmatpush1.bf16.msra.mxu0 0
      %377 = vmatprep.subr.bf16.mxu0 0
      %378 = vmatpush1.bf16.msra.mxu0 0
      %379 = vmatprep.subr.bf16.mxu0 0
      %380 = vmatpush1.bf16.msra.mxu0 0
      %381 = vmatprep.subr.bf16.mxu0 0
      %382 = vmatpush1.bf16.msra.mxu0 0
      %383 = vmatprep.subr.bf16.mxu0 0
      %384 = vmatpush1.bf16.msra.mxu0 0
      %385 = vmatprep.subr.bf16.mxu0 0
      %386 = vmatpush1.bf16.msra.mxu0 0
      %387 = vmatprep.subr.bf16.mxu0 0
      %388 = vmatpush1.bf16.msra.mxu0 0
      %389 = vmatprep.subr.bf16.mxu0 0
      %390 = vmatpush1.bf16.msra.mxu0 0
      %391 = vmatprep.subr.bf16.mxu0 0
      %392 = vmatpush1.bf16.msra.mxu0 0
      %393 = vmatprep.subr.bf16.mxu0 0
      %394 = vmatpush1.bf16.msra.mxu0 0
      %395 = vmatprep.subr.bf16.mxu0 0
      %396 = vmatpush1.bf16.msra.mxu0 0
      %397 = vmatprep.subr.bf16.mxu0 0
      %398 = vmatpush1.bf16.msra.mxu0 0
      %399 = vmatprep.subr.bf16.mxu0 0
      %400 = vmatpush1.bf16.msra.mxu0 0
      %401 = vmatprep.subr.bf16.mxu0 0
      %402 = vmatpush1.bf16.msra.mxu0 0
      %403 = vmatprep.mubr.bf16.mxu0 0
      %404 = vmatmul.mubr.bf16.gmra.mrb[0].mxu0 %v366
      %v405 = vpop.f32.mrb[0].mxu0
      %v406 = vadd.f32 0.0, %v405
      %v407 = vpop.f32.mrb[0].mxu0
      %v408 = vpop.f32.mrb[0].mxu0
      %v409 = vadd.f32 0.0, %v408
      %v410 = vpop.f32.mrb[0].mxu0
      %411 = vdwg.mxu0
      %v412 = vadd.f32 %v358, %v406
      %v413 = vadd.f32 %v359, %v409
      %414 = vst.msk [vmem:[#allocation2] sm:$0xff] %vm255, %v412
      %415 = vst.msk [vmem:[#allocation2 + $0x8] sm:$0xff] %vm255, %v413
      %p416 = scmp.eq.s32.totalorder %s21, 2
      // Predicated region
      $region37: #{mpii_4_forward.16} parent=31 // pred_check
        %p417 = pneg %p416
      $region38: #{mpii_4_forward.16} parent=31 // pred_check_branch
        %419 = sbr.rel (%p417) target = $region40
      $region39: #{mpii_4_forward.16} parent=31 // pred_region
        %v420 = vld [vmem:[#allocation2] sm:$0xff]
        %v421 = vld [vmem:[#allocation2 + $0x8] sm:$0xff]
        %v422 = vld [vmem:[%s2] sm:$0x1]
        %v424 = vlaneseq
        %v425 = vshrl.u32 %v424, 7
        %v426 = vsub.s32 0, %v425
        %v427 = vrot.slane %v422, %v426
        %v429 = vadd.f32 %v420, %v427
        %v430 = vadd.f32 %v421, %v427
        %v431 = vmax.f32 %v429, 0.0
        %v432 = vmax.f32 %v430, 0.0
        %433 = vst.msk [vmem:[%s240] sm:$0xff] %vm255, %v431
        %434 = vst.msk [vmem:[%s240 + $0x8] sm:$0xff] %vm255, %v432
      $region40: #{mpii_4_forward.16} parent=31 // pred_fallthru
        _
      %p435 = scmp.lt.s32.totalorder %s19, 1
      %s436 = scalar_select %p435, %s19, 1
      %p437 = scmp.lt.s32.totalorder %s20, 15
      %s438 = scalar_select %p437, %s20, 15
      %s439 = smul.addr %s438, 2
      %s440 = smul.addr %s436, 32
      %s441 = sadd.s32 %s439, %s440
      %s442 = smul.addr %s441, 8
      %s443 = scalar_lea.vmem %s3, %s442
      // Predicated region
      $region41: #{mpii_4_forward.16} parent=31 // pred_check
        %p444 = pneg %p130
      $region42: #{mpii_4_forward.16} parent=31 // pred_check_branch
        %446 = sbr.rel (%p444) target = $region44
      $region43: #{mpii_4_forward.16} parent=31 // pred_region
        _
      $region44: #{mpii_4_forward.16} parent=31 // pred_fallthru
        _
    $region32: #{mpii_4_forward.16} parent=5 // pred_fallthru
      _
    %p447 = scmp.le.s32.totalorder 2, %s9
    // Predicated region
    $region45: #{mpii_4_forward.16} parent=5 // pred_check
      %p448 = pneg %p447
    $region46: #{mpii_4_forward.16} parent=5 // pred_check_branch
      %450 = sbr.rel (%p448) target = $region48
    $region47: #{mpii_4_forward.16} parent=5 // pred_region
      %s451 = ssub.s32 %s9, 2
      // Predicated region
      $region49: #{mpii_4_forward.16} parent=47 // pred_check
        %p452 = pneg %p136
      $region50: #{mpii_4_forward.16} parent=47 // pred_check_branch
        %454 = sbr.rel (%p452) target = $region52
      $region51: #{mpii_4_forward.16} parent=47 // pred_region
        %p455 = scmp.lt.s32.totalorder %s22, 1
        %s456 = scalar_select %p455, %s22, 1
        %p457 = scmp.lt.s32.totalorder %s23, 15
        %s458 = scalar_select %p457, %s23, 15
        %s459 = smul.addr %s458, 2
        %s460 = smul.addr %s456, 32
        %s461 = sadd.s32 %s459, %s460
        %s462 = smul.addr %s461, 8
        %s463 = scalar_lea.vmem %s3, %s462
      $region52: #{mpii_4_forward.16} parent=47 // pred_fallthru
        _
    $region48: #{mpii_4_forward.16} parent=5 // pred_fallthru
      _
  $region6: #{mpii_4_forward.16} parent=0 // loop_footer
    %s13 = sadd.s32 1, %s9
  $region7: #{mpii_4_forward.16} parent=0 // loop_footer_branch
    %8 = sbr.rel target = $region3
  $region8: #{mpii_4_forward.16} parent=0 // loop_exit
    _

// kernel: mpii_4_forward.15
$region0: #{mpii_4_forward.15}
  #allocation0 [shape = 'u32[]', space=smem, size = 0x4, offset = 0x4, fixed_abs, tag = 'smem constant byte address 0x4 - core index']
  #allocation1 [shape = 'u32[144,128]{1,0:T(1,128)}', space=vmem, size = 0x12000, scoped, tag = 'internal scratch']
  %s0 = inlined_call_operand.vmem [shape: bf16[512,27], index: 0, kind: input, shape index: {}]
  %s1 = inlined_call_operand.vmem [shape: bf16[27,8], index: 1, kind: input, shape index: {}]
  %s2 = inlined_call_operand.vmem [shape: f32[1,8], index: 2, kind: input, shape index: {}]
  %s3 = inlined_call_operand.vmem [shape: f32[512,8], index: 3, kind: output, shape index: {}]
  %s4 = sld [smem:[#allocation0]]
  $region45: #{mpii_4_forward.15} parent=0
    _
  %s6 = ssub.s32 1, %s4
  %s7 = scalar_select 0, %s6, %s4
  loop: start=0, step=1, limit=4
  $region2: #{mpii_4_forward.15} parent=0 // loop_pre_header
    _
  $region3: #{mpii_4_forward.15} parent=0 // loop_header
    %s9 = sphi 0, %s13
    %p10 = scmp.ge.s32.totalorder %s9, 4
    %s19 = sphi 0, %s21
    %s22 = sphi 0, %s19
    %s23 = sphi 0, %s22
    %s39 = sphi 0, %s23
    %s43 = sphi 0, %s43
    %s45 = sphi 0, %s43
    %s46 = sphi 0, %s45
    %s60 = sphi 0, %s46
    %s64 = sphi 0, %s64
    %s66 = sphi 0, %s64
    %s67 = sphi 0, %s66
    %s81 = sphi 0, %s67
    %s87 = sphi 0, %s89
    %s90 = sphi 0, %s87
    %s91 = sphi 0, %s90
    %s107 = sphi 0, %s91
  $region4: #{mpii_4_forward.15} parent=0 // loop_header_branch
    %12 = sbr.rel (%p10) target = $region8
  $region5: #{mpii_4_forward.15} parent=0 // loop_body
    %s14 = ssub.s32 %s9, 1
    %s15 = ssub.s32 %s9, 2
    %s16 = sadd.s32 %s9, 1
    %s17 = ssub.s32 %s9, %s16
    %p18 = scmp.eq.s32.totalorder %s17, 0
    %s20 = sadd.s32 %s19, 1
    %s21 = scalar_select %p18, %s19, %s20
    %p24 = pneg %p18
    %p25 = scmp.eq.s32.totalorder %s9, 1
    %p26 = por %p24, %p25
    %p27 = scmp.ne.s32.totalorder %s19, %s22
    %p28 = scmp.eq.s32.totalorder %s9, 0
    %p29 = por %p27, %p28
    %p30 = scmp.ne.s32.totalorder %s19, %s22
    %p31 = scmp.eq.s32.totalorder %s14, 1
    %p32 = por %p30, %p31
    %p33 = scmp.ne.s32.totalorder %s22, %s23
    %p34 = scmp.eq.s32.totalorder %s14, 0
    %p35 = por %p33, %p34
    %p36 = scmp.ne.s32.totalorder %s22, %s23
    %p37 = scmp.eq.s32.totalorder %s15, 1
    %p38 = por %p36, %p37
    %p40 = scmp.ne.s32.totalorder %s23, %s39
    %p41 = scmp.eq.s32.totalorder %s15, 0
    %p42 = por %p40, %p41
    %s44 = sadd.s32 %s43, 1
    %p47 = scmp.eq.s32.totalorder %s9, 1
    %p48 = scmp.ne.s32.totalorder %s43, %s45
    %p49 = scmp.eq.s32.totalorder %s9, 0
    %p50 = por %p48, %p49
    %p51 = scmp.ne.s32.totalorder %s43, %s45
    %p52 = scmp.eq.s32.totalorder %s14, 1
    %p53 = por %p51, %p52
    %p54 = scmp.ne.s32.totalorder %s45, %s46
    %p55 = scmp.eq.s32.totalorder %s14, 0
    %p56 = por %p54, %p55
    %p57 = scmp.ne.s32.totalorder %s45, %s46
    %p58 = scmp.eq.s32.totalorder %s15, 1
    %p59 = por %p57, %p58
    %p61 = scmp.ne.s32.totalorder %s46, %s60
    %p62 = scmp.eq.s32.totalorder %s15, 0
    %p63 = por %p61, %p62
    %s65 = sadd.s32 %s64, 1
    %p68 = scmp.eq.s32.totalorder %s9, 1
    %p69 = scmp.ne.s32.totalorder %s64, %s66
    %p70 = scmp.eq.s32.totalorder %s9, 0
    %p71 = por %p69, %p70
    %p72 = scmp.ne.s32.totalorder %s64, %s66
    %p73 = scmp.eq.s32.totalorder %s14, 1
    %p74 = por %p72, %p73
    %p75 = scmp.ne.s32.totalorder %s66, %s67
    %p76 = scmp.eq.s32.totalorder %s14, 0
    %p77 = por %p75, %p76
    %p78 = scmp.ne.s32.totalorder %s66, %s67
    %p79 = scmp.eq.s32.totalorder %s15, 1
    %p80 = por %p78, %p79
    %p82 = scmp.ne.s32.totalorder %s67, %s81
    %p83 = scmp.eq.s32.totalorder %s15, 0
    %p84 = por %p82, %p83
    %s85 = ssub.s32 %s9, %s16
    %p86 = scmp.eq.s32.totalorder %s85, 0
    %s88 = sadd.s32 %s87, 1
    %s89 = scalar_select %p86, %s87, %s88
    %p92 = pneg %p86
    %p93 = scmp.eq.s32.totalorder %s9, 1
    %p94 = por %p92, %p93
    %p95 = scmp.ne.s32.totalorder %s87, %s90
    %p96 = scmp.eq.s32.totalorder %s9, 0
    %p97 = por %p95, %p96
    %p98 = scmp.ne.s32.totalorder %s87, %s90
    %p99 = scmp.eq.s32.totalorder %s14, 1
    %p100 = por %p98, %p99
    %p101 = scmp.ne.s32.totalorder %s90, %s91
    %p102 = scmp.eq.s32.totalorder %s14, 0
    %p103 = por %p101, %p102
    %p104 = scmp.ne.s32.totalorder %s90, %s91
    %p105 = scmp.eq.s32.totalorder %s15, 1
    %p106 = por %p104, %p105
    %p108 = scmp.ne.s32.totalorder %s91, %s107
    %p109 = scmp.eq.s32.totalorder %s15, 0
    %p110 = por %p108, %p109
    %p111 = scmp.le.s32.totalorder 1, %s9
    %p112 = scmp.lt.s32.totalorder %s9, 3
    %p113 = pnand %p111, %p112
    %p114 = pneg %p113
    // Predicated region
    $region9: #{mpii_4_forward.15} parent=5 // pred_check
      _
    $region10: #{mpii_4_forward.15} parent=5 // pred_check_branch
      %116 = sbr.rel (%p113) target = $region12
    $region11: #{mpii_4_forward.15} parent=5 // pred_region
      %s117 = ssub.s32 %s9, 1
      // Predicated region
      $region13: #{mpii_4_forward.15} parent=11 // pred_check
        %p118 = pneg %p56
      $region14: #{mpii_4_forward.15} parent=11 // pred_check_branch
        %120 = sbr.rel (%p118) target = $region16
      $region15: #{mpii_4_forward.15} parent=11 // pred_region
        _
      $region16: #{mpii_4_forward.15} parent=11 // pred_fallthru
        _
      // Predicated region
      $region17: #{mpii_4_forward.15} parent=11 // pred_check
        %p121 = pneg %p77
      $region18: #{mpii_4_forward.15} parent=11 // pred_check_branch
        %123 = sbr.rel (%p121) target = $region20
      $region19: #{mpii_4_forward.15} parent=11 // pred_region
        _
      $region20: #{mpii_4_forward.15} parent=11 // pred_fallthru
        _
    $region12: #{mpii_4_forward.15} parent=5 // pred_fallthru
      _
    %p124 = scmp.lt.s32.totalorder %s9, 2
    // Predicated region
    $region21: #{mpii_4_forward.15} parent=5 // pred_check
      %p125 = pneg %p124
    $region22: #{mpii_4_forward.15} parent=5 // pred_check_branch
      %127 = sbr.rel (%p125) target = $region24
    $region23: #{mpii_4_forward.15} parent=5 // pred_region
      // Predicated region
      $region25: #{mpii_4_forward.15} parent=23 // pred_check
        %p128 = pneg %p29
      $region26: #{mpii_4_forward.15} parent=23 // pred_check_branch
        %130 = sbr.rel (%p128) target = $region28
      $region27: #{mpii_4_forward.15} parent=23 // pred_region
        %s131 = smul.u32 32, %s9
        %p132 = scmp.lt.s32.totalorder %s131, 63
        %s133 = scalar_select %p132, %s131, 63
        %s134 = smul.addr %s133, 4
        %s135 = scalar_lea.vmem %s0, %s134
        %s136 = smul.u32 32, %s9
      $region28: #{mpii_4_forward.15} parent=23 // pred_fallthru
        _
    $region24: #{mpii_4_forward.15} parent=5 // pred_fallthru
      _
    %p137 = scmp.le.s32.totalorder 1, %s9
    %p138 = scmp.lt.s32.totalorder %s9, 3
    %p139 = pnand %p137, %p138
    %p140 = pneg %p139
    // Predicated region
    $region29: #{mpii_4_forward.15} parent=5 // pred_check
      _
    $region30: #{mpii_4_forward.15} parent=5 // pred_check_branch
      %142 = sbr.rel (%p139) target = $region32
    $region31: #{mpii_4_forward.15} parent=5 // pred_region
      %s143 = ssub.s32 %s9, 1
      %s144 = smul.u32 32, %s14
      %p145 = scmp.lt.s32.totalorder %s144, 63
      %s146 = scalar_select %p145, %s144, 63
      %s147 = smul.addr %s146, 4
      %s148 = scalar_lea.vmem %s0, %s147
      %p149 = pneg %p35
      %p150 = pneg %p32
      %p151 = pneg %p56
      %p152 = pneg %p53
      %p153 = pneg %p77
      %p154 = pneg %p74
      %p155 = pneg %p103
      %p156 = pneg %p100
      %s157 = smul.u32 32, %s14
      %p158 = scmp.lt.s32.totalorder %s157, 63
      %s159 = scalar_select %p158, %s157, 63
      %s160 = smul.addr %s159, 8
      %s161 = scalar_lea.vmem %s3, %s160
      %s162 = smul.u32 32, %s14
      %p163 = scmp.lt.s32.totalorder %s162, 63
      %s164 = scalar_select %p163, %s162, 63
      %s165 = smul.addr %s164, 4
      %s166 = scalar_lea.vmem %s0, %s165
      %s167 = smul.u32 32, %s14
      %s168 = smul.u32 32, %s14
      %p169 = scmp.lt.s32.totalorder %s168, 63
      %s170 = scalar_select %p169, %s168, 63
      %s171 = smul.addr %s170, 8
      %s172 = scalar_lea.vmem %s3, %s171
      %s173 = smul.u32 32, %s14
      %v175 = vld [vmem:[%s166] sm:$0xf]
      %v176 = vld [vmem:[%s166 + $0x4] sm:$0xf]
      %v177 = vld [vmem:[%s166 + $0x8] sm:$0xf]
      %v178 = vld [vmem:[%s166 + $0xc] sm:$0xf]
      %v179 = vld [vmem:[%s166 + $0x10] sm:$0xf]
      %v180 = vld [vmem:[%s166 + $0x14] sm:$0xf]
      %v181 = vld [vmem:[%s166 + $0x18] sm:$0xf]
      %v182 = vld [vmem:[%s166 + $0x1c] sm:$0xf]
      %v183 = vld [vmem:[%s166 + $0x20] sm:$0xf]
      %v184 = vld [vmem:[%s166 + $0x24] sm:$0xf]
      %v185 = vld [vmem:[%s166 + $0x28] sm:$0xf]
      %v186 = vld [vmem:[%s166 + $0x2c] sm:$0xf]
      %v187 = vld [vmem:[%s166 + $0x30] sm:$0xf]
      %v188 = vld [vmem:[%s166 + $0x34] sm:$0xf]
      %v189 = vld [vmem:[%s166 + $0x38] sm:$0xf]
      %v190 = vld [vmem:[%s166 + $0x3c] sm:$0xf]
      %v191 = vld [vmem:[%s166 + $0x40] sm:$0xf]
      %v192 = vld [vmem:[%s166 + $0x44] sm:$0xf]
      %v193 = vld [vmem:[%s166 + $0x48] sm:$0xf]
      %v194 = vld [vmem:[%s166 + $0x4c] sm:$0xf]
      %v195 = vld [vmem:[%s166 + $0x50] sm:$0xf]
      %v196 = vld [vmem:[%s166 + $0x54] sm:$0xf]
      %v197 = vld [vmem:[%s166 + $0x58] sm:$0xf]
      %v198 = vld [vmem:[%s166 + $0x5c] sm:$0xf]
      %v199 = vld [vmem:[%s166 + $0x60] sm:$0xf]
      %v200 = vld [vmem:[%s166 + $0x64] sm:$0xf]
      %v201 = vld [vmem:[%s166 + $0x68] sm:$0xf]
      %v202 = vld [vmem:[%s166 + $0x6c] sm:$0xf]
      %v203 = vld [vmem:[%s166 + $0x70] sm:$0xf]
      %v204 = vld [vmem:[%s166 + $0x74] sm:$0xf]
      %v205 = vld [vmem:[%s166 + $0x78] sm:$0xf]
      %v206 = vld [vmem:[%s166 + $0x7c] sm:$0xf]
      %v207 = vld [vmem:[%s1] sm:$0xf]
      %v208 = vld [vmem:[%s1 + $0x4] sm:$0xf]
      %v209 = vld [vmem:[%s1 + $0x8] sm:$0xf]
      %v210 = vld [vmem:[%s1 + $0xc] sm:$0x3]
      %v211 = vld [vmem:[%s2] sm:$0x1]
      %v213 = vlaneseq
      %v214 = vshrl.u32 %v213, 7
      %v215 = vsub.s32 0, %v214
      %v216 = vrot.slane %v211, %v215
      %v250 = vunpack.c.l.b16 %v175
      %v251 = vunpack.c.l.b16 %v176
      %v252 = vunpack.c.l.b16 %v177
      %v253 = vunpack.c.l.b16 %v178
      %v254 = vunpack.c.l.b16 %v179
      %v255 = vunpack.c.l.b16 %v180
      %v256 = vunpack.c.l.b16 %v181
      %v257 = vunpack.c.l.b16 %v182
      %v258 = vunpack.c.l.b16 %v183
      %v259 = vunpack.c.l.b16 %v184
      %v260 = vunpack.c.l.b16 %v185
      %v261 = vunpack.c.l.b16 %v186
      %v262 = vunpack.c.l.b16 %v187
      %v263 = vunpack.c.l.b16 %v188
      %v264 = vunpack.c.l.b16 %v189
      %v265 = vunpack.c.l.b16 %v190
      %v266 = vunpack.c.l.b16 %v191
      %v267 = vunpack.c.l.b16 %v192
      %v268 = vunpack.c.l.b16 %v193
      %v269 = vunpack.c.l.b16 %v194
      %v270 = vunpack.c.l.b16 %v195
      %v271 = vunpack.c.l.b16 %v196
      %v272 = vunpack.c.l.b16 %v197
      %v273 = vunpack.c.l.b16 %v198
      %v274 = vunpack.c.l.b16 %v199
      %v275 = vunpack.c.l.b16 %v200
      %v276 = vunpack.c.l.b16 %v201
      %v277 = vunpack.c.l.b16 %v202
      %v278 = vunpack.c.l.b16 %v203
      %v279 = vunpack.c.l.b16 %v204
      %v280 = vunpack.c.l.b16 %v205
      %v281 = vunpack.c.l.b16 %v206
      %v282 = vpack.c.b16 %v251, %v250
      %v283 = vpack.c.b16 %v253, %v252
      %v284 = vpack.c.b16 %v255, %v254
      %v285 = vpack.c.b16 %v257, %v256
      %v286 = vpack.c.b16 %v259, %v258
      %v287 = vpack.c.b16 %v261, %v260
      %v288 = vpack.c.b16 %v263, %v262
      %v289 = vpack.c.b16 %v265, %v264
      %v290 = vpack.c.b16 %v267, %v266
      %v291 = vpack.c.b16 %v269, %v268
      %v292 = vpack.c.b16 %v271, %v270
      %v293 = vpack.c.b16 %v273, %v272
      %v294 = vpack.c.b16 %v275, %v274
      %v295 = vpack.c.b16 %v277, %v276
      %v296 = vpack.c.b16 %v279, %v278
      %v297 = vpack.c.b16 %v281, %v280
      %v302 = vunpack.c.l.b16 %v207
      %v303 = vunpack.c.l.b16 %v208
      %v304 = vunpack.c.l.b16 %v209
      %v305 = vunpack.c.l.b16 %v210
      %v306 = vpack.c.b16 %v303, %v302
      %v307 = vpack.c.b16 %v305, %v304
      %vm309 = vcmask 220160
      %v311 = vsel %vm309, %v282, 0
      %v314 = vsel %vm309, %v283, 0
      %v317 = vsel %vm309, %v284, 0
      %v320 = vsel %vm309, %v285, 0
      %v323 = vsel %vm309, %v286, 0
      %v326 = vsel %vm309, %v287, 0
      %v329 = vsel %vm309, %v288, 0
      %v332 = vsel %vm309, %v289, 0
      %v335 = vsel %vm309, %v290, 0
      %v338 = vsel %vm309, %v291, 0
      %v341 = vsel %vm309, %v292, 0
      %v344 = vsel %vm309, %v293, 0
      %v347 = vsel %vm309, %v294, 0
      %v350 = vsel %vm309, %v295, 0
      %v353 = vsel %vm309, %v296, 0
      %v356 = vsel %vm309, %v297, 0
      %vm358 = vcmask 1044480
      %vm359 = vcmask 1045504
      %v360 = vsel %vm358, 4294967295, 65535
      %v361 = vsel %vm359, %v360, 0
      %v363 = vand.u32 %v307, %v361
      %365 = vmatprep.subr.bf16.mxu0 0
      %366 = vmatpush1.bf16.msra.mxu0 %v306
      %367 = vmatprep.subr.bf16.mxu0 0
      %368 = vmatpush1.bf16.msra.mxu0 %v363
      %369 = vmatprep.subr.bf16.mxu0 0
      %370 = vmatpush1.bf16.msra.mxu0 0
      %371 = vmatprep.subr.bf16.mxu0 0
      %372 = vmatpush1.bf16.msra.mxu0 0
      %373 = vmatprep.subr.bf16.mxu0 0
      %374 = vmatpush1.bf16.msra.mxu0 0
      %375 = vmatprep.subr.bf16.mxu0 0
      %376 = vmatpush1.bf16.msra.mxu0 0
      %377 = vmatprep.subr.bf16.mxu0 0
      %378 = vmatpush1.bf16.msra.mxu0 0
      %379 = vmatprep.subr.bf16.mxu0 0
      %380 = vmatpush1.bf16.msra.mxu0 0
      %381 = vmatprep.subr.bf16.mxu0 0
      %382 = vmatpush1.bf16.msra.mxu0 0
      %383 = vmatprep.subr.bf16.mxu0 0
      %384 = vmatpush1.bf16.msra.mxu0 0
      %385 = vmatprep.subr.bf16.mxu0 0
      %386 = vmatpush1.bf16.msra.mxu0 0
      %387 = vmatprep.subr.bf16.mxu0 0
      %388 = vmatpush1.bf16.msra.mxu0 0
      %389 = vmatprep.subr.bf16.mxu0 0
      %390 = vmatpush1.bf16.msra.mxu0 0
      %391 = vmatprep.subr.bf16.mxu0 0
      %392 = vmatpush1.bf16.msra.mxu0 0
      %393 = vmatprep.subr.bf16.mxu0 0
      %394 = vmatpush1.bf16.msra.mxu0 0
      %395 = vmatprep.subr.bf16.mxu0 0
      %396 = vmatpush1.bf16.msra.mxu0 0
      %397 = vmatprep.mubr.bf16.mxu0 0
      %398 = vmatmul.mubr.bf16.gmra.mrb[0].mxu0 %v311
      %v399 = vpop.f32.mrb[0].mxu0
      %v400 = vadd.f32 %v216, %v399
      %v401 = vpop.f32.mrb[0].mxu0
      %v402 = vpop.f32.mrb[0].mxu0
      %v403 = vadd.f32 %v216, %v402
      %v404 = vpop.f32.mrb[0].mxu0
      %405 = vmatprep.mubr.bf16.mxu0 0
      %406 = vmatmul.mubr.bf16.gmra.mrb[0].mxu0 %v314
      %v407 = vpop.f32.mrb[0].mxu0
      %v408 = vadd.f32 %v216, %v407
      %v409 = vpop.f32.mrb[0].mxu0
      %v410 = vpop.f32.mrb[0].mxu0
      %v411 = vadd.f32 %v216, %v410
      %v412 = vpop.f32.mrb[0].mxu0
      %413 = vmatprep.mubr.bf16.mxu0 0
      %414 = vmatmul.mubr.bf16.gmra.mrb[0].mxu0 %v317
      %v415 = vpop.f32.mrb[0].mxu0
      %v416 = vadd.f32 %v216, %v415
      %v417 = vpop.f32.mrb[0].mxu0
      %v418 = vpop.f32.mrb[0].mxu0
      %v419 = vadd.f32 %v216, %v418
      %v420 = vpop.f32.mrb[0].mxu0
      %421 = vmatprep.mubr.bf16.mxu0 0
      %422 = vmatmul.mubr.bf16.gmra.mrb[0].mxu0 %v320
      %v423 = vpop.f32.mrb[0].mxu0
      %v424 = vadd.f32 %v216, %v423
      %v425 = vpop.f32.mrb[0].mxu0
      %v426 = vpop.f32.mrb[0].mxu0
      %v427 = vadd.f32 %v216, %v426
      %v428 = vpop.f32.mrb[0].mxu0
      %429 = vmatprep.mubr.bf16.mxu0 0
      %430 = vmatmul.mubr.bf16.gmra.mrb[0].mxu0 %v323
      %v431 = vpop.f32.mrb[0].mxu0
      %v432 = vadd.f32 %v216, %v431
      %v433 = vpop.f32.mrb[0].mxu0
      %v434 = vpop.f32.mrb[0].mxu0
      %v435 = vadd.f32 %v216, %v434
      %v436 = vpop.f32.mrb[0].mxu0
      %437 = vmatprep.mubr.bf16.mxu0 0
      %438 = vmatmul.mubr.bf16.gmra.mrb[0].mxu0 %v326
      %v439 = vpop.f32.mrb[0].mxu0
      %v440 = vadd.f32 %v216, %v439
      %v441 = vpop.f32.mrb[0].mxu0
      %v442 = vpop.f32.mrb[0].mxu0
      %v443 = vadd.f32 %v216, %v442
      %v444 = vpop.f32.mrb[0].mxu0
      %445 = vmatprep.mubr.bf16.mxu0 0
      %446 = vmatmul.mubr.bf16.gmra.mrb[0].mxu0 %v329
      %v447 = vpop.f32.mrb[0].mxu0
      %v448 = vadd.f32 %v216, %v447
      %v449 = vpop.f32.mrb[0].mxu0
      %v450 = vpop.f32.mrb[0].mxu0
      %v451 = vadd.f32 %v216, %v450
      %v452 = vpop.f32.mrb[0].mxu0
      %453 = vmatprep.mubr.bf16.mxu0 0
      %454 = vmatmul.mubr.bf16.gmra.mrb[0].mxu0 %v332
      %v455 = vpop.f32.mrb[0].mxu0
      %v456 = vadd.f32 %v216, %v455
      %v457 = vpop.f32.mrb[0].mxu0
      %v458 = vpop.f32.mrb[0].mxu0
      %v459 = vadd.f32 %v216, %v458
      %v460 = vpop.f32.mrb[0].mxu0
      %461 = vmatprep.mubr.bf16.mxu0 0
      %462 = vmatmul.mubr.bf16.gmra.mrb[0].mxu0 %v335
      %v463 = vpop.f32.mrb[0].mxu0
      %v464 = vadd.f32 %v216, %v463
      %v465 = vpop.f32.mrb[0].mxu0
      %v466 = vpop.f32.mrb[0].mxu0
      %v467 = vadd.f32 %v216, %v466
      %v468 = vpop.f32.mrb[0].mxu0
      %469 = vmatprep.mubr.bf16.mxu0 0
      %470 = vmatmul.mubr.bf16.gmra.mrb[0].mxu0 %v338
      %v471 = vpop.f32.mrb[0].mxu0
      %v472 = vadd.f32 %v216, %v471
      %v473 = vpop.f32.mrb[0].mxu0
      %v474 = vpop.f32.mrb[0].mxu0
      %v475 = vadd.f32 %v216, %v474
      %v476 = vpop.f32.mrb[0].mxu0
      %477 = vmatprep.mubr.bf16.mxu0 0
      %478 = vmatmul.mubr.bf16.gmra.mrb[0].mxu0 %v341
      %v479 = vpop.f32.mrb[0].mxu0
      %v480 = vadd.f32 %v216, %v479
      %v481 = vpop.f32.mrb[0].mxu0
      %v482 = vpop.f32.mrb[0].mxu0
      %v483 = vadd.f32 %v216, %v482
      %v484 = vpop.f32.mrb[0].mxu0
      %485 = vmatprep.mubr.bf16.mxu0 0
      %486 = vmatmul.mubr.bf16.gmra.mrb[0].mxu0 %v344
      %v487 = vpop.f32.mrb[0].mxu0
      %v488 = vadd.f32 %v216, %v487
      %v489 = vpop.f32.mrb[0].mxu0
      %v490 = vpop.f32.mrb[0].mxu0
      %v491 = vadd.f32 %v216, %v490
      %v492 = vpop.f32.mrb[0].mxu0
      %493 = vmatprep.mubr.bf16.mxu0 0
      %494 = vmatmul.mubr.bf16.gmra.mrb[0].mxu0 %v347
      %v495 = vpop.f32.mrb[0].mxu0
      %v496 = vadd.f32 %v216, %v495
      %v497 = vpop.f32.mrb[0].mxu0
      %v498 = vpop.f32.mrb[0].mxu0
      %v499 = vadd.f32 %v216, %v498
      %v500 = vpop.f32.mrb[0].mxu0
      %501 = vmatprep.mubr.bf16.mxu0 0
      %502 = vmatmul.mubr.bf16.gmra.mrb[0].mxu0 %v350
      %v503 = vpop.f32.mrb[0].mxu0
      %v504 = vadd.f32 %v216, %v503
      %v505 = vpop.f32.mrb[0].mxu0
      %v506 = vpop.f32.mrb[0].mxu0
      %v507 = vadd.f32 %v216, %v506
      %v508 = vpop.f32.mrb[0].mxu0
      %509 = vmatprep.mubr.bf16.mxu0 0
      %510 = vmatmul.mubr.bf16.gmra.mrb[0].mxu0 %v353
      %v511 = vpop.f32.mrb[0].mxu0
      %v512 = vadd.f32 %v216, %v511
      %v513 = vpop.f32.mrb[0].mxu0
      %v514 = vpop.f32.mrb[0].mxu0
      %v515 = vadd.f32 %v216, %v514
      %v516 = vpop.f32.mrb[0].mxu0
      %517 = vmatprep.mubr.bf16.mxu0 0
      %518 = vmatmul.mubr.bf16.gmra.mrb[0].mxu0 %v356
      %v519 = vpop.f32.mrb[0].mxu0
      %v520 = vadd.f32 %v216, %v519
      %v521 = vpop.f32.mrb[0].mxu0
      %v522 = vpop.f32.mrb[0].mxu0
      %v523 = vadd.f32 %v216, %v522
      %v524 = vpop.f32.mrb[0].mxu0
      %525 = vdwg.mxu0
      %v526 = vmax.f32 %v400, 0.0
      %v527 = vmax.f32 %v403, 0.0
      %v528 = vmax.f32 %v408, 0.0
      %v529 = vmax.f32 %v411, 0.0
      %v530 = vmax.f32 %v416, 0.0
      %v531 = vmax.f32 %v419, 0.0
      %v532 = vmax.f32 %v424, 0.0
      %v533 = vmax.f32 %v427, 0.0
      %v534 = vmax.f32 %v432, 0.0
      %v535 = vmax.f32 %v435, 0.0
      %v536 = vmax.f32 %v440, 0.0
      %v537 = vmax.f32 %v443, 0.0
      %v538 = vmax.f32 %v448, 0.0
      %v539 = vmax.f32 %v451, 0.0
      %v540 = vmax.f32 %v456, 0.0
      %v541 = vmax.f32 %v459, 0.0
      %v542 = vmax.f32 %v464, 0.0
      %v543 = vmax.f32 %v467, 0.0
      %v544 = vmax.f32 %v472, 0.0
      %v545 = vmax.f32 %v475, 0.0
      %v546 = vmax.f32 %v480, 0.0
      %v547 = vmax.f32 %v483, 0.0
      %v548 = vmax.f32 %v488, 0.0
      %v549 = vmax.f32 %v491, 0.0
      %v550 = vmax.f32 %v496, 0.0
      %v551 = vmax.f32 %v499, 0.0
      %v552 = vmax.f32 %v504, 0.0
      %v553 = vmax.f32 %v507, 0.0
      %v554 = vmax.f32 %v512, 0.0
      %v555 = vmax.f32 %v515, 0.0
      %v556 = vmax.f32 %v520, 0.0
      %v557 = vmax.f32 %v523, 0.0
      %vm558 = vcmask 64512
      %559 = vst.msk [vmem:[%s172] sm:$0xff] %vm558, %v526
      %560 = vst.msk [vmem:[%s172 + $0x8] sm:$0xff] %vm558, %v527
      %561 = vst.msk [vmem:[%s172 + $0x10] sm:$0xff] %vm558, %v528
      %562 = vst.msk [vmem:[%s172 + $0x18] sm:$0xff] %vm558, %v529
      %563 = vst.msk [vmem:[%s172 + $0x20] sm:$0xff] %vm558, %v530
      %564 = vst.msk [vmem:[%s172 + $0x28] sm:$0xff] %vm558, %v531
      %565 = vst.msk [vmem:[%s172 + $0x30] sm:$0xff] %vm558, %v532
      %566 = vst.msk [vmem:[%s172 + $0x38] sm:$0xff] %vm558, %v533
      %567 = vst.msk [vmem:[%s172 + $0x40] sm:$0xff] %vm558, %v534
      %568 = vst.msk [vmem:[%s172 + $0x48] sm:$0xff] %vm558, %v535
      %569 = vst.msk [vmem:[%s172 + $0x50] sm:$0xff] %vm558, %v536
      %570 = vst.msk [vmem:[%s172 + $0x58] sm:$0xff] %vm558, %v537
      %571 = vst.msk [vmem:[%s172 + $0x60] sm:$0xff] %vm558, %v538
      %572 = vst.msk [vmem:[%s172 + $0x68] sm:$0xff] %vm558, %v539
      %573 = vst.msk [vmem:[%s172 + $0x70] sm:$0xff] %vm558, %v540
      %574 = vst.msk [vmem:[%s172 + $0x78] sm:$0xff] %vm558, %v541
      %575 = vst.msk [vmem:[%s172 + $0x80] sm:$0xff] %vm558, %v542
      %576 = vst.msk [vmem:[%s172 + $0x88] sm:$0xff] %vm558, %v543
      %577 = vst.msk [vmem:[%s172 + $0x90] sm:$0xff] %vm558, %v544
      %578 = vst.msk [vmem:[%s172 + $0x98] sm:$0xff] %vm558, %v545
      %579 = vst.msk [vmem:[%s172 + $0xa0] sm:$0xff] %vm558, %v546
      %580 = vst.msk [vmem:[%s172 + $0xa8] sm:$0xff] %vm558, %v547
      %581 = vst.msk [vmem:[%s172 + $0xb0] sm:$0xff] %vm558, %v548
      %582 = vst.msk [vmem:[%s172 + $0xb8] sm:$0xff] %vm558, %v549
      %583 = vst.msk [vmem:[%s172 + $0xc0] sm:$0xff] %vm558, %v550
      %584 = vst.msk [vmem:[%s172 + $0xc8] sm:$0xff] %vm558, %v551
      %585 = vst.msk [vmem:[%s172 + $0xd0] sm:$0xff] %vm558, %v552
      %586 = vst.msk [vmem:[%s172 + $0xd8] sm:$0xff] %vm558, %v553
      %587 = vst.msk [vmem:[%s172 + $0xe0] sm:$0xff] %vm558, %v554
      %588 = vst.msk [vmem:[%s172 + $0xe8] sm:$0xff] %vm558, %v555
      %589 = vst.msk [vmem:[%s172 + $0xf0] sm:$0xff] %vm558, %v556
      %590 = vst.msk [vmem:[%s172 + $0xf8] sm:$0xff] %vm558, %v557
      %s591 = smul.u32 32, %s14
      %p592 = scmp.lt.s32.totalorder %s591, 63
      %s593 = scalar_select %p592, %s591, 63
      %s594 = smul.addr %s593, 8
      %s595 = scalar_lea.vmem %s3, %s594
      // Predicated region
      $region33: #{mpii_4_forward.15} parent=31 // pred_check
        %p596 = pneg %p100
      $region34: #{mpii_4_forward.15} parent=31 // pred_check_branch
        %598 = sbr.rel (%p596) target = $region36
      $region35: #{mpii_4_forward.15} parent=31 // pred_region
        %s599 = smul.u32 32, %s14
      $region36: #{mpii_4_forward.15} parent=31 // pred_fallthru
        _
    $region32: #{mpii_4_forward.15} parent=5 // pred_fallthru
      _
    %p600 = scmp.le.s32.totalorder 2, %s9
    // Predicated region
    $region37: #{mpii_4_forward.15} parent=5 // pred_check
      %p601 = pneg %p600
    $region38: #{mpii_4_forward.15} parent=5 // pred_check_branch
      %603 = sbr.rel (%p601) target = $region40
    $region39: #{mpii_4_forward.15} parent=5 // pred_region
      %s604 = ssub.s32 %s9, 2
      // Predicated region
      $region41: #{mpii_4_forward.15} parent=39 // pred_check
        %p605 = pneg %p106
      $region42: #{mpii_4_forward.15} parent=39 // pred_check_branch
        %607 = sbr.rel (%p605) target = $region44
      $region43: #{mpii_4_forward.15} parent=39 // pred_region
        %s608 = smul.u32 32, %s15
        %p609 = scmp.lt.s32.totalorder %s608, 63
        %s610 = scalar_select %p609, %s608, 63
        %s611 = smul.addr %s610, 8
        %s612 = scalar_lea.vmem %s3, %s611
      $region44: #{mpii_4_forward.15} parent=39 // pred_fallthru
        _
    $region40: #{mpii_4_forward.15} parent=5 // pred_fallthru
      _
  $region6: #{mpii_4_forward.15} parent=0 // loop_footer
    %s13 = sadd.s32 1, %s9
  $region7: #{mpii_4_forward.15} parent=0 // loop_footer_branch
    %8 = sbr.rel target = $region3
  $region8: #{mpii_4_forward.15} parent=0 // loop_exit
    _

// kernel: mpii_4_forward.17
$region0: #{mpii_4_forward.17}
  #allocation0 [shape = 'u32[]', space=smem, size = 0x4, offset = 0x4, fixed_abs, tag = 'smem constant byte address 0x4 - core index']
  #allocation1 [shape = 'u32[144,128]{1,0:T(1,128)}', space=vmem, size = 0x12000, scoped, tag = 'internal scratch']
  %s0 = inlined_call_operand.vmem [shape: bf16[128,72], index: 0, kind: input, shape index: {}]
  %s1 = inlined_call_operand.vmem [shape: bf16[72,16], index: 1, kind: input, shape index: {}]
  %s2 = inlined_call_operand.vmem [shape: f32[1,16], index: 2, kind: input, shape index: {}]
  %s3 = inlined_call_operand.vmem [shape: f32[128,16], index: 3, kind: output, shape index: {}]
  %s4 = sld [smem:[#allocation0]]
  $region22: #{mpii_4_forward.17} parent=0
    _
  %s6 = ssub.s32 1, %s4
  %s7 = scalar_select 0, %s6, %s4
  // Predicated region
  $region2: #{mpii_4_forward.17} parent=0 // pred_check
    _
  $region3: #{mpii_4_forward.17} parent=0 // pred_check_branch
    %9 = sbr.rel (0) target = $region5
  $region4: #{mpii_4_forward.17} parent=0 // pred_region
    _
  $region5: #{mpii_4_forward.17} parent=0 // pred_fallthru
    _
  // Predicated region
  $region6: #{mpii_4_forward.17} parent=0 // pred_check
    _
  $region7: #{mpii_4_forward.17} parent=0 // pred_check_branch
    %11 = sbr.rel (0) target = $region9
  $region8: #{mpii_4_forward.17} parent=0 // pred_region
    _
  $region9: #{mpii_4_forward.17} parent=0 // pred_fallthru
    _
  // Predicated region
  $region10: #{mpii_4_forward.17} parent=0 // pred_check
    _
  $region11: #{mpii_4_forward.17} parent=0 // pred_check_branch
    %13 = sbr.rel (0) target = $region13
  $region12: #{mpii_4_forward.17} parent=0 // pred_region
    _
  $region13: #{mpii_4_forward.17} parent=0 // pred_fallthru
    _
  %v15 = vld [vmem:[%s0] sm:$0xf]
  %v16 = vld [vmem:[%s0 + $0x4] sm:$0xf]
  %v17 = vld [vmem:[%s0 + $0x8] sm:$0xf]
  %v18 = vld [vmem:[%s0 + $0xc] sm:$0xf]
  %v19 = vld [vmem:[%s0 + $0x10] sm:$0xf]
  %v20 = vld [vmem:[%s0 + $0x14] sm:$0xf]
  %v21 = vld [vmem:[%s0 + $0x18] sm:$0xf]
  %v22 = vld [vmem:[%s0 + $0x1c] sm:$0xf]
  %v23 = vld [vmem:[%s0 + $0x20] sm:$0xf]
  %v24 = vld [vmem:[%s0 + $0x24] sm:$0xf]
  %v25 = vld [vmem:[%s0 + $0x28] sm:$0xf]
  %v26 = vld [vmem:[%s0 + $0x2c] sm:$0xf]
  %v27 = vld [vmem:[%s0 + $0x30] sm:$0xf]
  %v28 = vld [vmem:[%s0 + $0x34] sm:$0xf]
  %v29 = vld [vmem:[%s0 + $0x38] sm:$0xf]
  %v30 = vld [vmem:[%s0 + $0x3c] sm:$0xf]
  %v31 = vld [vmem:[%s1] sm:$0xf]
  %v32 = vld [vmem:[%s1 + $0x4] sm:$0xf]
  %v33 = vld [vmem:[%s1 + $0x8] sm:$0xf]
  %v34 = vld [vmem:[%s1 + $0xc] sm:$0xf]
  %v35 = vld [vmem:[%s1 + $0x10] sm:$0xf]
  %v36 = vld [vmem:[%s1 + $0x14] sm:$0xf]
  %v37 = vld [vmem:[%s1 + $0x18] sm:$0xf]
  %v38 = vld [vmem:[%s1 + $0x1c] sm:$0xf]
  %v39 = vld [vmem:[%s1 + $0x20] sm:$0xf]
  %v40 = vld [vmem:[%s2] sm:$0x1]
  %v42 = vlaneseq
  %v43 = vshrl.u32 %v42, 7
  %v44 = vsub.s32 0, %v43
  %v45 = vrot.slane %v40, %v44
  %v63 = vunpack.c.l.b16 %v15
  %v64 = vunpack.c.l.b16 %v16
  %v65 = vunpack.c.l.b16 %v17
  %v66 = vunpack.c.l.b16 %v18
  %v67 = vunpack.c.l.b16 %v19
  %v68 = vunpack.c.l.b16 %v20
  %v69 = vunpack.c.l.b16 %v21
  %v70 = vunpack.c.l.b16 %v22
  %v71 = vunpack.c.l.b16 %v23
  %v72 = vunpack.c.l.b16 %v24
  %v73 = vunpack.c.l.b16 %v25
  %v74 = vunpack.c.l.b16 %v26
  %v75 = vunpack.c.l.b16 %v27
  %v76 = vunpack.c.l.b16 %v28
  %v77 = vunpack.c.l.b16 %v29
  %v78 = vunpack.c.l.b16 %v30
  %v79 = vpack.c.b16 %v64, %v63
  %v80 = vpack.c.b16 %v66, %v65
  %v81 = vpack.c.b16 %v68, %v67
  %v82 = vpack.c.b16 %v70, %v69
  %v83 = vpack.c.b16 %v72, %v71
  %v84 = vpack.c.b16 %v74, %v73
  %v85 = vpack.c.b16 %v76, %v75
  %v86 = vpack.c.b16 %v78, %v77
  %v96 = vunpack.c.l.b16 %v31
  %v97 = vunpack.c.l.b16 %v32
  %v98 = vunpack.c.l.b16 %v33
  %v99 = vunpack.c.l.b16 %v34
  %v100 = vunpack.c.l.b16 %v35
  %v101 = vunpack.c.l.b16 %v36
  %v102 = vunpack.c.l.b16 %v37
  %v103 = vunpack.c.l.b16 %v38
  %v104 = vunpack.c.l.b16 %v39
  %v105 = vpack.c.b16 %v97, %v96
  %v106 = vpack.c.b16 %v99, %v98
  %v107 = vpack.c.b16 %v101, %v100
  %v108 = vpack.c.b16 %v103, %v102
  %v109 = vpack.c.b16 %v104, %v104
  %vm114 = vcmask 588800
  %v116 = vsel %vm114, %v79, 0
  %v119 = vsel %vm114, %v80, 0
  %v122 = vsel %vm114, %v81, 0
  %v125 = vsel %vm114, %v82, 0
  %v128 = vsel %vm114, %v83, 0
  %v131 = vsel %vm114, %v84, 0
  %v134 = vsel %vm114, %v85, 0
  %v137 = vsel %vm114, %v86, 0
  %vm139 = vcmask 1043456
  %v141 = vsel %vm139, %v109, 0
  %143 = vmatprep.subr.bf16.mxu0 0
  %144 = vmatpush1.bf16.msra.mxu0 %v105
  %145 = vmatprep.subr.bf16.mxu0 0
  %146 = vmatpush1.bf16.msra.mxu0 %v106
  %147 = vmatprep.subr.bf16.mxu0 0
  %148 = vmatpush1.bf16.msra.mxu0 %v107
  %149 = vmatprep.subr.bf16.mxu0 0
  %150 = vmatpush1.bf16.msra.mxu0 %v108
  %151 = vmatprep.subr.bf16.mxu0 0
  %152 = vmatpush1.bf16.msra.mxu0 %v141
  %153 = vmatprep.subr.bf16.mxu0 0
  %154 = vmatpush1.bf16.msra.mxu0 0
  %155 = vmatprep.subr.bf16.mxu0 0
  %156 = vmatpush1.bf16.msra.mxu0 0
  %157 = vmatprep.subr.bf16.mxu0 0
  %158 = vmatpush1.bf16.msra.mxu0 0
  %159 = vmatprep.subr.bf16.mxu0 0
  %160 = vmatpush1.bf16.msra.mxu0 0
  %161 = vmatprep.subr.bf16.mxu0 0
  %162 = vmatpush1.bf16.msra.mxu0 0
  %163 = vmatprep.subr.bf16.mxu0 0
  %164 = vmatpush1.bf16.msra.mxu0 0
  %165 = vmatprep.subr.bf16.mxu0 0
  %166 = vmatpush1.bf16.msra.mxu0 0
  %167 = vmatprep.subr.bf16.mxu0 0
  %168 = vmatpush1.bf16.msra.mxu0 0
  %169 = vmatprep.subr.bf16.mxu0 0
  %170 = vmatpush1.bf16.msra.mxu0 0
  %171 = vmatprep.subr.bf16.mxu0 0
  %172 = vmatpush1.bf16.msra.mxu0 0
  %173 = vmatprep.subr.bf16.mxu0 0
  %174 = vmatpush1.bf16.msra.mxu0 0
  %175 = vmatprep.mubr.bf16.mxu0 0
  %176 = vmatmul.mubr.bf16.gmra.mrb[0].mxu0 %v116
  %v177 = vpop.f32.mrb[0].mxu0
  %v178 = vadd.f32 %v45, %v177
  %v179 = vpop.f32.mrb[0].mxu0
  %v180 = vpop.f32.mrb[0].mxu0
  %v181 = vadd.f32 %v45, %v180
  %v182 = vpop.f32.mrb[0].mxu0
  %183 = vmatprep.mubr.bf16.mxu0 0
  %184 = vmatmul.mubr.bf16.gmra.mrb[0].mxu0 %v119
  %v185 = vpop.f32.mrb[0].mxu0
  %v186 = vadd.f32 %v45, %v185
  %v187 = vpop.f32.mrb[0].mxu0
  %v188 = vpop.f32.mrb[0].mxu0
  %v189 = vadd.f32 %v45, %v188
  %v190 = vpop.f32.mrb[0].mxu0
  %191 = vmatprep.mubr.bf16.mxu0 0
  %192 = vmatmul.mubr.bf16.gmra.mrb[0].mxu0 %v122
  %v193 = vpop.f32.mrb[0].mxu0
  %v194 = vadd.f32 %v45, %v193
  %v195 = vpop.f32.mrb[0].mxu0
  %v196 = vpop.f32.mrb[0].mxu0
  %v197 = vadd.f32 %v45, %v196
  %v198 = vpop.f32.mrb[0].mxu0
  %199 = vmatprep.mubr.bf16.mxu0 0
  %200 = vmatmul.mubr.bf16.gmra.mrb[0].mxu0 %v125
  %v201 = vpop.f32.mrb[0].mxu0
  %v202 = vadd.f32 %v45, %v201
  %v203 = vpop.f32.mrb[0].mxu0
  %v204 = vpop.f32.mrb[0].mxu0
  %v205 = vadd.f32 %v45, %v204
  %v206 = vpop.f32.mrb[0].mxu0
  %207 = vmatprep.mubr.bf16.mxu0 0
  %208 = vmatmul.mubr.bf16.gmra.mrb[0].mxu0 %v128
  %v209 = vpop.f32.mrb[0].mxu0
  %v210 = vadd.f32 %v45, %v209
  %v211 = vpop.f32.mrb[0].mxu0
  %v212 = vpop.f32.mrb[0].mxu0
  %v213 = vadd.f32 %v45, %v212
  %v214 = vpop.f32.mrb[0].mxu0
  %215 = vmatprep.mubr.bf16.mxu0 0
  %216 = vmatmul.mubr.bf16.gmra.mrb[0].mxu0 %v131
  %v217 = vpop.f32.mrb[0].mxu0
  %v218 = vadd.f32 %v45, %v217
  %v219 = vpop.f32.mrb[0].mxu0
  %v220 = vpop.f32.mrb[0].mxu0
  %v221 = vadd.f32 %v45, %v220
  %v222 = vpop.f32.mrb[0].mxu0
  %223 = vmatprep.mubr.bf16.mxu0 0
  %224 = vmatmul.mubr.bf16.gmra.mrb[0].mxu0 %v134
  %v225 = vpop.f32.mrb[0].mxu0
  %v226 = vadd.f32 %v45, %v225
  %v227 = vpop.f32.mrb[0].mxu0
  %v228 = vpop.f32.mrb[0].mxu0
  %v229 = vadd.f32 %v45, %v228
  %v230 = vpop.f32.mrb[0].mxu0
  %231 = vmatprep.mubr.bf16.mxu0 0
  %232 = vmatmul.mubr.bf16.gmra.mrb[0].mxu0 %v137
  %v233 = vpop.f32.mrb[0].mxu0
  %v234 = vadd.f32 %v45, %v233
  %v235 = vpop.f32.mrb[0].mxu0
  %v236 = vpop.f32.mrb[0].mxu0
  %v237 = vadd.f32 %v45, %v236
  %v238 = vpop.f32.mrb[0].mxu0
  %239 = vdwg.mxu0
  %v240 = vmax.f32 %v178, 0.0
  %v241 = vmax.f32 %v181, 0.0
  %v242 = vmax.f32 %v186, 0.0
  %v243 = vmax.f32 %v189, 0.0
  %v244 = vmax.f32 %v194, 0.0
  %v245 = vmax.f32 %v197, 0.0
  %v246 = vmax.f32 %v202, 0.0
  %v247 = vmax.f32 %v205, 0.0
  %v248 = vmax.f32 %v210, 0.0
  %v249 = vmax.f32 %v213, 0.0
  %v250 = vmax.f32 %v218, 0.0
  %v251 = vmax.f32 %v221, 0.0
  %v252 = vmax.f32 %v226, 0.0
  %v253 = vmax.f32 %v229, 0.0
  %v254 = vmax.f32 %v234, 0.0
  %v255 = vmax.f32 %v237, 0.0
  %vm256 = vcmask 130048
  %257 = vst.msk [vmem:[%s3] sm:$0xff] %vm256, %v240
  %258 = vst.msk [vmem:[%s3 + $0x8] sm:$0xff] %vm256, %v241
  %259 = vst.msk [vmem:[%s3 + $0x10] sm:$0xff] %vm256, %v242
  %260 = vst.msk [vmem:[%s3 + $0x18] sm:$0xff] %vm256, %v243
  %261 = vst.msk [vmem:[%s3 + $0x20] sm:$0xff] %vm256, %v244
  %262 = vst.msk [vmem:[%s3 + $0x28] sm:$0xff] %vm256, %v245
  %263 = vst.msk [vmem:[%s3 + $0x30] sm:$0xff] %vm256, %v246
  %264 = vst.msk [vmem:[%s3 + $0x38] sm:$0xff] %vm256, %v247
  %265 = vst.msk [vmem:[%s3 + $0x40] sm:$0xff] %vm256, %v248
  %266 = vst.msk [vmem:[%s3 + $0x48] sm:$0xff] %vm256, %v249
  %267 = vst.msk [vmem:[%s3 + $0x50] sm:$0xff] %vm256, %v250
  %268 = vst.msk [vmem:[%s3 + $0x58] sm:$0xff] %vm256, %v251
  %269 = vst.msk [vmem:[%s3 + $0x60] sm:$0xff] %vm256, %v252
  %270 = vst.msk [vmem:[%s3 + $0x68] sm:$0xff] %vm256, %v253
  %271 = vst.msk [vmem:[%s3 + $0x70] sm:$0xff] %vm256, %v254
  %272 = vst.msk [vmem:[%s3 + $0x78] sm:$0xff] %vm256, %v255
  // Predicated region
  $region14: #{mpii_4_forward.17} parent=0 // pred_check
    _
  $region15: #{mpii_4_forward.17} parent=0 // pred_check_branch
    %274 = sbr.rel (0) target = $region17
  $region16: #{mpii_4_forward.17} parent=0 // pred_region
    _
  $region17: #{mpii_4_forward.17} parent=0 // pred_fallthru
    _
  // Predicated region
  $region18: #{mpii_4_forward.17} parent=0 // pred_check
    _
  $region19: #{mpii_4_forward.17} parent=0 // pred_check_branch
    %276 = sbr.rel (0) target = $region21
  $region20: #{mpii_4_forward.17} parent=0 // pred_region
    _
  $region21: #{mpii_4_forward.17} parent=0 // pred_fallthru
    _

// kernel: mpii_4_forward.18
$region0: #{mpii_4_forward.18}
  #allocation0 [shape = 'u32[]', space=smem, size = 0x4, offset = 0x4, fixed_abs, tag = 'smem constant byte address 0x4 - core index']
  #allocation1 [shape = 'u32[144,128]{1,0:T(1,128)}', space=vmem, size = 0x12000, scoped, tag = 'internal scratch']
  #allocation2 [shape = 'f32[8,16]{1,0:T(8,128)}', space=vmem, size = 0x1000, scoped, tag = 'scratch operand']
  %s0 = inlined_call_operand.vmem [shape: f32[2,10,10,16], index: 0, kind: input, shape index: {}]
  %s1 = inlined_call_operand.vmem [shape: bf16[3,3,16,16], index: 1, kind: input, shape index: {}]
  %s2 = inlined_call_operand.vmem [shape: f32[1,16], index: 2, kind: input, shape index: {}]
  %s3 = inlined_call_operand.vmem [shape: f32[2,8,8,16], index: 3, kind: output, shape index: {}]
  %s4 = sld [smem:[#allocation0]]
  $region53: #{mpii_4_forward.18} parent=0
    _
  %s6 = ssub.s32 1, %s4
  %s7 = scalar_select 0, %s6, %s4
  loop: start=0, step=1, limit=50
  $region2: #{mpii_4_forward.18} parent=0 // loop_pre_header
    _
  $region3: #{mpii_4_forward.18} parent=0 // loop_header
    %s9 = sphi 0, %s13
    %p10 = scmp.ge.s32.totalorder %s9, 50
    %s16 = sphi 0, %s35
    %s17 = sphi 0, %s31
    %s18 = sphi 0, %s27
    %s19 = sphi 0, %s16
    %s20 = sphi 0, %s17
    %s21 = sphi 0, %s18
    %s22 = sphi 0, %s19
    %s23 = sphi 0, %s20
    %s24 = sphi 0, %s21
    %s42 = sphi 0, %s44
    %s45 = sphi 0, %s42
    %s46 = sphi 0, %s45
    %s62 = sphi 0, %s46
    %s68 = sphi 0, %s70
    %s71 = sphi 0, %s68
    %s72 = sphi 0, %s71
    %s88 = sphi 0, %s72
    %s92 = sphi 0, %s92
    %s94 = sphi 0, %s92
    %s95 = sphi 0, %s94
    %s109 = sphi 0, %s95
    %s117 = sphi 0, %s119
    %s120 = sphi 0, %s117
    %s121 = sphi 0, %s120
    %s137 = sphi 0, %s121
  $region4: #{mpii_4_forward.18} parent=0 // loop_header_branch
    %12 = sbr.rel (%p10) target = $region8
  $region5: #{mpii_4_forward.18} parent=0 // loop_body
    %s14 = ssub.s32 %s9, 1
    %s15 = ssub.s32 %s9, 2
    %s25 = sadd.s32 1, %s18
    %p26 = scmp.ge.s32.totalorder %s25, 3
    %s27 = scalar_select %p26, 0, %s25
    %s28 = sadd.s32 1, %s17
    %s29 = scalar_select %p26, %s28, %s17
    %p30 = scmp.ge.s32.totalorder %s29, 8
    %s31 = scalar_select %p30, 0, %s29
    %s32 = sadd.s32 1, %s16
    %s33 = scalar_select %p30, %s32, %s16
    %p34 = scmp.ge.s32.totalorder %s33, 2
    %s35 = scalar_select %p34, 0, %s33
    %s36 = sadd.s32 %s17, %s18
    %s37 = sadd.s32 %s31, %s27
    %s38 = ssub.s32 %s16, %s35
    %s39 = ssub.s32 %s36, %s37
    %s40 = sor.u32 %s38, %s39
    %p41 = scmp.eq.s32.totalorder %s40, 0
    %s43 = sadd.s32 %s42, 1
    %s44 = scalar_select %p41, %s42, %s43
    %p47 = pneg %p41
    %p48 = scmp.eq.s32.totalorder %s9, 47
    %p49 = por %p47, %p48
    %p50 = scmp.ne.s32.totalorder %s42, %s45
    %p51 = scmp.eq.s32.totalorder %s9, 0
    %p52 = por %p50, %p51
    %p53 = scmp.ne.s32.totalorder %s42, %s45
    %p54 = scmp.eq.s32.totalorder %s14, 47
    %p55 = por %p53, %p54
    %p56 = scmp.ne.s32.totalorder %s45, %s46
    %p57 = scmp.eq.s32.totalorder %s14, 0
    %p58 = por %p56, %p57
    %p59 = scmp.ne.s32.totalorder %s45, %s46
    %p60 = scmp.eq.s32.totalorder %s15, 47
    %p61 = por %p59, %p60
    %p63 = scmp.ne.s32.totalorder %s46, %s62
    %p64 = scmp.eq.s32.totalorder %s15, 0
    %p65 = por %p63, %p64
    %s66 = ssub.s32 %s18, %s27
    %p67 = scmp.eq.s32.totalorder %s66, 0
    %s69 = sadd.s32 %s68, 1
    %s70 = scalar_select %p67, %s68, %s69
    %p73 = pneg %p67
    %p74 = scmp.eq.s32.totalorder %s9, 47
    %p75 = por %p73, %p74
    %p76 = scmp.ne.s32.totalorder %s68, %s71
    %p77 = scmp.eq.s32.totalorder %s9, 0
    %p78 = por %p76, %p77
    %p79 = scmp.ne.s32.totalorder %s68, %s71
    %p80 = scmp.eq.s32.totalorder %s14, 47
    %p81 = por %p79, %p80
    %p82 = scmp.ne.s32.totalorder %s71, %s72
    %p83 = scmp.eq.s32.totalorder %s14, 0
    %p84 = por %p82, %p83
    %p85 = scmp.ne.s32.totalorder %s71, %s72
    %p86 = scmp.eq.s32.totalorder %s15, 47
    %p87 = por %p85, %p86
    %p89 = scmp.ne.s32.totalorder %s72, %s88
    %p90 = scmp.eq.s32.totalorder %s15, 0
    %p91 = por %p89, %p90
    %s93 = sadd.s32 %s92, 1
    %p96 = scmp.eq.s32.totalorder %s9, 47
    %p97 = scmp.ne.s32.totalorder %s92, %s94
    %p98 = scmp.eq.s32.totalorder %s9, 0
    %p99 = por %p97, %p98
    %p100 = scmp.ne.s32.totalorder %s92, %s94
    %p101 = scmp.eq.s32.totalorder %s14, 47
    %p102 = por %p100, %p101
    %p103 = scmp.ne.s32.totalorder %s94, %s95
    %p104 = scmp.eq.s32.totalorder %s14, 0
    %p105 = por %p103, %p104
    %p106 = scmp.ne.s32.totalorder %s94, %s95
    %p107 = scmp.eq.s32.totalorder %s15, 47
    %p108 = por %p106, %p107
    %p110 = scmp.ne.s32.totalorder %s95, %s109
    %p111 = scmp.eq.s32.totalorder %s15, 0
    %p112 = por %p110, %p111
    %s113 = ssub.s32 %s16, %s35
    %s114 = ssub.s32 %s17, %s31
    %s115 = sor.u32 %s113, %s114
    %p116 = scmp.eq.s32.totalorder %s115, 0
    %s118 = sadd.s32 %s117, 1
    %s119 = scalar_select %p116, %s117, %s118
    %p122 = pneg %p116
    %p123 = scmp.eq.s32.totalorder %s9, 47
    %p124 = por %p122, %p123
    %p125 = scmp.ne.s32.totalorder %s117, %s120
    %p126 = scmp.eq.s32.totalorder %s9, 0
    %p127 = por %p125, %p126
    %p128 = scmp.ne.s32.totalorder %s117, %s120
    %p129 = scmp.eq.s32.totalorder %s14, 47
    %p130 = por %p128, %p129
    %p131 = scmp.ne.s32.totalorder %s120, %s121
    %p132 = scmp.eq.s32.totalorder %s14, 0
    %p133 = por %p131, %p132
    %p134 = scmp.ne.s32.totalorder %s120, %s121
    %p135 = scmp.eq.s32.totalorder %s15, 47
    %p136 = por %p134, %p135
    %p138 = scmp.ne.s32.totalorder %s121, %s137
    %p139 = scmp.eq.s32.totalorder %s15, 0
    %p140 = por %p138, %p139
    %p141 = scmp.le.s32.totalorder 1, %s9
    %p142 = scmp.lt.s32.totalorder %s9, 49
    %p143 = pnand %p141, %p142
    %p144 = pneg %p143
    // Predicated region
    $region9: #{mpii_4_forward.18} parent=5 // pred_check
      _
    $region10: #{mpii_4_forward.18} parent=5 // pred_check_branch
      %146 = sbr.rel (%p143) target = $region12
    $region11: #{mpii_4_forward.18} parent=5 // pred_region
      %s147 = ssub.s32 %s9, 1
      // Predicated region
      $region13: #{mpii_4_forward.18} parent=11 // pred_check
        %p148 = pneg %p105
      $region14: #{mpii_4_forward.18} parent=11 // pred_check_branch
        %150 = sbr.rel (%p148) target = $region16
      $region15: #{mpii_4_forward.18} parent=11 // pred_region
        _
      $region16: #{mpii_4_forward.18} parent=11 // pred_fallthru
        _
    $region12: #{mpii_4_forward.18} parent=5 // pred_fallthru
      _
    %p151 = scmp.lt.s32.totalorder %s9, 48
    // Predicated region
    $region17: #{mpii_4_forward.18} parent=5 // pred_check
      %p152 = pneg %p151
    $region18: #{mpii_4_forward.18} parent=5 // pred_check_branch
      %154 = sbr.rel (%p152) target = $region20
    $region19: #{mpii_4_forward.18} parent=5 // pred_region
      // Predicated region
      $region21: #{mpii_4_forward.18} parent=19 // pred_check
        %p155 = pneg %p52
      $region22: #{mpii_4_forward.18} parent=19 // pred_check_branch
        %157 = sbr.rel (%p155) target = $region24
      $region23: #{mpii_4_forward.18} parent=19 // pred_region
        %s158 = sadd.s32 %s17, %s18
        %p159 = scmp.lt.s32.totalorder %s16, 1
        %s160 = scalar_select %p159, %s16, 1
        %p161 = scmp.lt.s32.totalorder %s158, 9
        %s162 = scalar_select %p161, %s158, 9
        %s163 = smul.addr %s162, 2
        %s164 = smul.addr %s160, 20
        %s165 = sadd.s32 %s163, %s164
        %s166 = smul.addr %s165, 8
        %s167 = scalar_lea.vmem %s0, %s166
        %s168 = sadd.s32 %s17, %s18
      $region24: #{mpii_4_forward.18} parent=19 // pred_fallthru
        _
      // Predicated region
      $region25: #{mpii_4_forward.18} parent=19 // pred_check
        %p169 = pneg %p78
      $region26: #{mpii_4_forward.18} parent=19 // pred_check_branch
        %171 = sbr.rel (%p169) target = $region28
      $region27: #{mpii_4_forward.18} parent=19 // pred_region
        %p172 = scmp.lt.s32.totalorder %s18, 2
        %s173 = scalar_select %p172, %s18, 2
        %s174 = smul.addr %s173, 6
        %s175 = smul.addr %s174, 4
        %s176 = scalar_lea.vmem %s1, %s175
      $region28: #{mpii_4_forward.18} parent=19 // pred_fallthru
        _
    $region20: #{mpii_4_forward.18} parent=5 // pred_fallthru
      _
    %p177 = scmp.le.s32.totalorder 1, %s9
    %p178 = scmp.lt.s32.totalorder %s9, 49
    %p179 = pnand %p177, %p178
    %p180 = pneg %p179
    // Predicated region
    $region29: #{mpii_4_forward.18} parent=5 // pred_check
      _
    $region30: #{mpii_4_forward.18} parent=5 // pred_check_branch
      %182 = sbr.rel (%p179) target = $region32
    $region31: #{mpii_4_forward.18} parent=5 // pred_region
      %s183 = ssub.s32 %s9, 1
      %s184 = sadd.s32 %s20, %s21
      %p185 = scmp.lt.s32.totalorder %s19, 1
      %s186 = scalar_select %p185, %s19, 1
      %p187 = scmp.lt.s32.totalorder %s184, 9
      %s188 = scalar_select %p187, %s184, 9
      %s189 = smul.addr %s188, 2
      %s190 = smul.addr %s186, 20
      %s191 = sadd.s32 %s189, %s190
      %s192 = smul.addr %s191, 8
      %s193 = scalar_lea.vmem %s0, %s192
      %p194 = pneg %p58
      %p195 = pneg %p55
      %p196 = scmp.lt.s32.totalorder %s21, 2
      %s197 = scalar_select %p196, %s21, 2
      %s198 = smul.addr %s197, 6
      %s199 = smul.addr %s198, 4
      %s200 = scalar_lea.vmem %s1, %s199
      %p201 = pneg %p84
      %p202 = pneg %p81
      %p203 = pneg %p105
      %p204 = pneg %p102
      %p205 = pneg %p133
      %p206 = pneg %p130
      %p207 = scmp.lt.s32.totalorder %s19, 1
      %s208 = scalar_select %p207, %s19, 1
      %p209 = scmp.lt.s32.totalorder %s20, 7
      %s210 = scalar_select %p209, %s20, 7
      %s211 = smul.addr %s208, 8
      %s212 = sadd.s32 %s210, %s211
      %s213 = smul.addr %s212, 8
      %s214 = scalar_lea.vmem %s3, %s213
      %s215 = sadd.s32 %s20, %s21
      %p216 = scmp.lt.s32.totalorder %s19, 1
      %s217 = scalar_select %p216, %s19, 1
      %p218 = scmp.lt.s32.totalorder %s215, 9
      %s219 = scalar_select %p218, %s215, 9
      %s220 = smul.addr %s219, 2
      %s221 = smul.addr %s217, 20
      %s222 = sadd.s32 %s220, %s221
      %s223 = smul.addr %s222, 8
      %s224 = scalar_lea.vmem %s0, %s223
      %s225 = sadd.s32 %s20, %s21
      %p226 = scmp.lt.s32.totalorder %s21, 2
      %s227 = scalar_select %p226, %s21, 2
      %s228 = smul.addr %s227, 6
      %s229 = smul.addr %s228, 4
      %s230 = scalar_lea.vmem %s1, %s229
      %p231 = scmp.lt.s32.totalorder %s19, 1
      %s232 = scalar_select %p231, %s19, 1
      %p233 = scmp.lt.s32.totalorder %s20, 7
      %s234 = scalar_select %p233, %s20, 7
      %s235 = smul.addr %s232, 8
      %s236 = sadd.s32 %s234, %s235
      %s237 = smul.addr %s236, 8
      %s238 = scalar_lea.vmem %s3, %s237
      %p240 = scmp.eq.s32.totalorder %s21, 0
      // Predicated region
      $region33: #{mpii_4_forward.18} parent=31 // pred_check
        %p241 = pneg %p240
      $region34: #{mpii_4_forward.18} parent=31 // pred_check_branch
        %243 = sbr.rel (%p241) target = $region36
      $region35: #{mpii_4_forward.18} parent=31 // pred_region
        %vm244 = vcmask 130048
        %245 = vst.msk [vmem:[#allocation2] sm:$0xff] %vm244, 0.0
      $region36: #{mpii_4_forward.18} parent=31 // pred_fallthru
        _
      %v246 = vld [vmem:[#allocation2] sm:$0xff]
      %v247 = vld [vmem:[%s224] sm:$0xff]
      %v248 = vpack.c.bf16 %v247, %v247
      %v249 = vld [vmem:[%s230] sm:$0xf]
      %v250 = vld [vmem:[%s230 + $0x4] sm:$0xf]
      %v253 = vunpack.c.l.b16 %v249
      %v254 = vunpack.c.l.b16 %v250
      %v255 = vpack.c.b16 %v254, %v253
      %vm257 = vcmask 130048
      %v259 = vsel %vm257, %v248, 0
      %261 = vmatprep.subr.bf16.mxu0 0
      %262 = vmatpush1.bf16.msra.mxu0 %v255
      %263 = vmatprep.subr.bf16.mxu0 0
      %264 = vmatpush1.bf16.msra.mxu0 0
      %265 = vmatprep.subr.bf16.mxu0 0
      %266 = vmatpush1.bf16.msra.mxu0 0
      %267 = vmatprep.subr.bf16.mxu0 0
      %268 = vmatpush1.bf16.msra.mxu0 0
      %269 = vmatprep.subr.bf16.mxu0 0
      %270 = vmatpush1.bf16.msra.mxu0 0
      %271 = vmatprep.subr.bf16.mxu0 0
      %272 = vmatpush1.bf16.msra.mxu0 0
      %273 = vmatprep.subr.bf16.mxu0 0
      %274 = vmatpush1.bf16.msra.mxu0 0
      %275 = vmatprep.subr.bf16.mxu0 0
      %276 = vmatpush1.bf16.msra.mxu0 0
      %277 = vmatprep.subr.bf16.mxu0 0
      %278 = vmatpush1.bf16.msra.mxu0 0
      %279 = vmatprep.subr.bf16.mxu0 0
      %280 = vmatpush1.bf16.msra.mxu0 0
      %281 = vmatprep.subr.bf16.mxu0 0
      %282 = vmatpush1.bf16.msra.mxu0 0
      %283 = vmatprep.subr.bf16.mxu0 0
      %284 = vmatpush1.bf16.msra.mxu0 0
      %285 = vmatprep.subr.bf16.mxu0 0
      %286 = vmatpush1.bf16.msra.mxu0 0
      %287 = vmatprep.subr.bf16.mxu0 0
      %288 = vmatpush1.bf16.msra.mxu0 0
      %289 = vmatprep.subr.bf16.mxu0 0
      %290 = vmatpush1.bf16.msra.mxu0 0
      %291 = vmatprep.subr.bf16.mxu0 0
      %292 = vmatpush1.bf16.msra.mxu0 0
      %293 = vmatprep.mubr.bf16.mxu0 0
      %294 = vmatmul.mubr.bf16.gmra.mrb[0].mxu0 %v259
      %v295 = vpop.f32.mrb[0].mxu0
      %v296 = vadd.f32 0.0, %v295
      %v297 = vpop.f32.mrb[0].mxu0
      %v298 = vpop.f32.mrb[0].mxu0
      %v299 = vpop.f32.mrb[0].mxu0
      %300 = vdwg.mxu0
      %v301 = vadd.f32 %v246, %v296
      %v302 = vld [vmem:[%s224 + $0x1] sm:$0xff]
      %v303 = vpack.c.bf16 %v302, %v302
      %s304 = scalar_lea.vmem %s230, 8
      %v305 = vld [vmem:[%s304] sm:$0xf]
      %v306 = vld [vmem:[%s304 + $0x4] sm:$0xf]
      %v309 = vunpack.c.l.b16 %v305
      %v310 = vunpack.c.l.b16 %v306
      %v311 = vpack.c.b16 %v310, %v309
      %v314 = vsel %vm257, %v303, 0
      %316 = vmatprep.subr.bf16.mxu0 0
      %317 = vmatpush1.bf16.msra.mxu0 %v311
      %318 = vmatprep.subr.bf16.mxu0 0
      %319 = vmatpush1.bf16.msra.mxu0 0
      %320 = vmatprep.subr.bf16.mxu0 0
      %321 = vmatpush1.bf16.msra.mxu0 0
      %322 = vmatprep.subr.bf16.mxu0 0
      %323 = vmatpush1.bf16.msra.mxu0 0
      %324 = vmatprep.subr.bf16.mxu0 0
      %325 = vmatpush1.bf16.msra.mxu0 0
      %326 = vmatprep.subr.bf16.mxu0 0
      %327 = vmatpush1.bf16.msra.mxu0 0
      %328 = vmatprep.subr.bf16.mxu0 0
      %329 = vmatpush1.bf16.msra.mxu0 0
      %330 = vmatprep.subr.bf16.mxu0 0
      %331 = vmatpush1.bf16.msra.mxu0 0
      %332 = vmatprep.subr.bf16.mxu0 0
      %333 = vmatpush1.bf16.msra.mxu0 0
      %334 = vmatprep.subr.bf16.mxu0 0
      %335 = vmatpush1.bf16.msra.mxu0 0
      %336 = vmatprep.subr.bf16.mxu0 0
      %337 = vmatpush1.bf16.msra.mxu0 0
      %338 = vmatprep.subr.bf16.mxu0 0
      %339 = vmatpush1.bf16.msra.mxu0 0
      %340 = vmatprep.subr.bf16.mxu0 0
      %341 = vmatpush1.bf16.msra.mxu0 0
      %342 = vmatprep.subr.bf16.mxu0 0
      %343 = vmatpush1.bf16.msra.mxu0 0
      %344 = vmatprep.subr.bf16.mxu0 0
      %345 = vmatpush1.bf16.msra.mxu0 0
      %346 = vmatprep.subr.bf16.mxu0 0
      %347 = vmatpush1.bf16.msra.mxu0 0
      %348 = vmatprep.mubr.bf16.mxu0 0
      %349 = vmatmul.mubr.bf16.gmra.mrb[0].mxu0 %v314
      %v350 = vpop.f32.mrb[0].mxu0
      %v351 = vadd.f32 0.0, %v350
      %v352 = vpop.f32.mrb[0].mxu0
      %v353 = vpop.f32.mrb[0].mxu0
      %v354 = vpop.f32.mrb[0].mxu0
      %355 = vdwg.mxu0
      %v356 = vadd.f32 %v301, %v351
      %v357 = vld [vmem:[%s224 + $0x2] sm:$0xff]
      %v358 = vpack.c.bf16 %v357, %v357
      %s359 = scalar_lea.vmem %s230, 16
      %v360 = vld [vmem:[%s359] sm:$0xf]
      %v361 = vld [vmem:[%s359 + $0x4] sm:$0xf]
      %v364 = vunpack.c.l.b16 %v360
      %v365 = vunpack.c.l.b16 %v361
      %v366 = vpack.c.b16 %v365, %v364
      %v369 = vsel %vm257, %v358, 0
      %371 = vmatprep.subr.bf16.mxu0 0
      %372 = vmatpush1.bf16.msra.mxu0 %v366
      %373 = vmatprep.subr.bf16.mxu0 0
      %374 = vmatpush1.bf16.msra.mxu0 0
      %375 = vmatprep.subr.bf16.mxu0 0
      %376 = vmatpush1.bf16.msra.mxu0 0
      %377 = vmatprep.subr.bf16.mxu0 0
      %378 = vmatpush1.bf16.msra.mxu0 0
      %379 = vmatprep.subr.bf16.mxu0 0
      %380 = vmatpush1.bf16.msra.mxu0 0
      %381 = vmatprep.subr.bf16.mxu0 0
      %382 = vmatpush1.bf16.msra.mxu0 0
      %383 = vmatprep.subr.bf16.mxu0 0
      %384 = vmatpush1.bf16.msra.mxu0 0
      %385 = vmatprep.subr.bf16.mxu0 0
      %386 = vmatpush1.bf16.msra.mxu0 0
      %387 = vmatprep.subr.bf16.mxu0 0
      %388 = vmatpush1.bf16.msra.mxu0 0
      %389 = vmatprep.subr.bf16.mxu0 0
      %390 = vmatpush1.bf16.msra.mxu0 0
      %391 = vmatprep.subr.bf16.mxu0 0
      %392 = vmatpush1.bf16.msra.mxu0 0
      %393 = vmatprep.subr.bf16.mxu0 0
      %394 = vmatpush1.bf16.msra.mxu0 0
      %395 = vmatprep.subr.bf16.mxu0 0
      %396 = vmatpush1.bf16.msra.mxu0 0
      %397 = vmatprep.subr.bf16.mxu0 0
      %398 = vmatpush1.bf16.msra.mxu0 0
      %399 = vmatprep.subr.bf16.mxu0 0
      %400 = vmatpush1.bf16.msra.mxu0 0
      %401 = vmatprep.subr.bf16.mxu0 0
      %402 = vmatpush1.bf16.msra.mxu0 0
      %403 = vmatprep.mubr.bf16.mxu0 0
      %404 = vmatmul.mubr.bf16.gmra.mrb[0].mxu0 %v369
      %v405 = vpop.f32.mrb[0].mxu0
      %v406 = vadd.f32 0.0, %v405
      %v407 = vpop.f32.mrb[0].mxu0
      %v408 = vpop.f32.mrb[0].mxu0
      %v409 = vpop.f32.mrb[0].mxu0
      %410 = vdwg.mxu0
      %v411 = vadd.f32 %v356, %v406
      %412 = vst.msk [vmem:[#allocation2] sm:$0xff] %vm257, %v411
      %p413 = scmp.eq.s32.totalorder %s21, 2
      // Predicated region
      $region37: #{mpii_4_forward.18} parent=31 // pred_check
        %p414 = pneg %p413
      $region38: #{mpii_4_forward.18} parent=31 // pred_check_branch
        %416 = sbr.rel (%p414) target = $region40
      $region39: #{mpii_4_forward.18} parent=31 // pred_region
        %v417 = vld [vmem:[#allocation2] sm:$0xff]
        %v418 = vld [vmem:[%s2] sm:$0x1]
        %v420 = vlaneseq
        %v421 = vshrl.u32 %v420, 7
        %v422 = vsub.s32 0, %v421
        %v423 = vrot.slane %v418, %v422
        %v425 = vadd.f32 %v417, %v423
        %v426 = vmax.f32 %v425, 0.0
        %427 = vst.msk [vmem:[%s238] sm:$0xff] %vm257, %v426
      $region40: #{mpii_4_forward.18} parent=31 // pred_fallthru
        _
      %p428 = scmp.lt.s32.totalorder %s19, 1
      %s429 = scalar_select %p428, %s19, 1
      %p430 = scmp.lt.s32.totalorder %s20, 7
      %s431 = scalar_select %p430, %s20, 7
      %s432 = smul.addr %s429, 8
      %s433 = sadd.s32 %s431, %s432
      %s434 = smul.addr %s433, 8
      %s435 = scalar_lea.vmem %s3, %s434
      // Predicated region
      $region41: #{mpii_4_forward.18} parent=31 // pred_check
        %p436 = pneg %p130
      $region42: #{mpii_4_forward.18} parent=31 // pred_check_branch
        %438 = sbr.rel (%p436) target = $region44
      $region43: #{mpii_4_forward.18} parent=31 // pred_region
        _
      $region44: #{mpii_4_forward.18} parent=31 // pred_fallthru
        _
    $region32: #{mpii_4_forward.18} parent=5 // pred_fallthru
      _
    %p439 = scmp.le.s32.totalorder 2, %s9
    // Predicated region
    $region45: #{mpii_4_forward.18} parent=5 // pred_check
      %p440 = pneg %p439
    $region46: #{mpii_4_forward.18} parent=5 // pred_check_branch
      %442 = sbr.rel (%p440) target = $region48
    $region47: #{mpii_4_forward.18} parent=5 // pred_region
      %s443 = ssub.s32 %s9, 2
      // Predicated region
      $region49: #{mpii_4_forward.18} parent=47 // pred_check
        %p444 = pneg %p136
      $region50: #{mpii_4_forward.18} parent=47 // pred_check_branch
        %446 = sbr.rel (%p444) target = $region52
      $region51: #{mpii_4_forward.18} parent=47 // pred_region
        %p447 = scmp.lt.s32.totalorder %s22, 1
        %s448 = scalar_select %p447, %s22, 1
        %p449 = scmp.lt.s32.totalorder %s23, 7
        %s450 = scalar_select %p449, %s23, 7
        %s451 = smul.addr %s448, 8
        %s452 = sadd.s32 %s450, %s451
        %s453 = smul.addr %s452, 8
        %s454 = scalar_lea.vmem %s3, %s453
      $region52: #{mpii_4_forward.18} parent=47 // pred_fallthru
        _
    $region48: #{mpii_4_forward.18} parent=5 // pred_fallthru
      _
  $region6: #{mpii_4_forward.18} parent=0 // loop_footer
    %s13 = sadd.s32 1, %s9
  $region7: #{mpii_4_forward.18} parent=0 // loop_footer_branch
    %8 = sbr.rel target = $region3
  $region8: #{mpii_4_forward.18} parent=0 // loop_exit
    _

// kernel: mpii_4_forward.19
$region0: #{mpii_4_forward.19}
  #allocation0 [shape = 'u32[]', space=smem, size = 0x4, offset = 0x4, fixed_abs, tag = 'smem constant byte address 0x4 - core index']
  #allocation1 [shape = 'u32[144,128]{1,0:T(1,128)}', space=vmem, size = 0x12000, scoped, tag = 'internal scratch']
  %s0 = inlined_call_operand.vmem [shape: f32[128,16], index: 0, kind: input, shape index: {}]
  %s1 = inlined_call_operand.vmem [shape: f32[128,16], index: 1, kind: input, shape index: {}]
  %s2 = inlined_call_operand.vmem [shape: bf16[16,16], index: 2, kind: input, shape index: {}]
  %s3 = inlined_call_operand.vmem [shape: f32[1,16], index: 3, kind: input, shape index: {}]
  %s4 = inlined_call_operand.vmem [shape: bf16[16,16], index: 4, kind: input, shape index: {}]
  %s5 = inlined_call_operand.vmem [shape: f32[1,16], index: 5, kind: input, shape index: {}]
  %s6 = inlined_call_operand.vmem [shape: bf16[16,16], index: 6, kind: input, shape index: {}]
  %s7 = inlined_call_operand.vmem [shape: f32[1,16], index: 7, kind: input, shape index: {}]
  %s8 = inlined_call_operand.vmem [shape: f32[128,16], index: 8, kind: output, shape index: {0}]
  %s9 = inlined_call_operand.vmem [shape: f32[128,16], index: 9, kind: output, shape index: {1}]
  %10 = xla_tuple %s8, %s9
  %s11 = sld [smem:[#allocation0]]
  $region50: #{mpii_4_forward.19} parent=0
    _
  %s13 = ssub.s32 1, %s11
  %s14 = scalar_select 0, %s13, %s11
  // Predicated region
  $region2: #{mpii_4_forward.19} parent=0 // pred_check
    _
  $region3: #{mpii_4_forward.19} parent=0 // pred_check_branch
    %16 = sbr.rel (0) target = $region5
  $region4: #{mpii_4_forward.19} parent=0 // pred_region
    _
  $region5: #{mpii_4_forward.19} parent=0 // pred_fallthru
    _
  // Predicated region
  $region6: #{mpii_4_forward.19} parent=0 // pred_check
    _
  $region7: #{mpii_4_forward.19} parent=0 // pred_check_branch
    %18 = sbr.rel (0) target = $region9
  $region8: #{mpii_4_forward.19} parent=0 // pred_region
    _
  $region9: #{mpii_4_forward.19} parent=0 // pred_fallthru
    _
  // Predicated region
  $region10: #{mpii_4_forward.19} parent=0 // pred_check
    _
  $region11: #{mpii_4_forward.19} parent=0 // pred_check_branch
    %20 = sbr.rel (0) target = $region13
  $region12: #{mpii_4_forward.19} parent=0 // pred_region
    _
  $region13: #{mpii_4_forward.19} parent=0 // pred_fallthru
    _
  // Predicated region
  $region14: #{mpii_4_forward.19} parent=0 // pred_check
    _
  $region15: #{mpii_4_forward.19} parent=0 // pred_check_branch
    %22 = sbr.rel (0) target = $region17
  $region16: #{mpii_4_forward.19} parent=0 // pred_region
    _
  $region17: #{mpii_4_forward.19} parent=0 // pred_fallthru
    _
  // Predicated region
  $region18: #{mpii_4_forward.19} parent=0 // pred_check
    _
  $region19: #{mpii_4_forward.19} parent=0 // pred_check_branch
    %24 = sbr.rel (0) target = $region21
  $region20: #{mpii_4_forward.19} parent=0 // pred_region
    _
  $region21: #{mpii_4_forward.19} parent=0 // pred_fallthru
    _
  // Predicated region
  $region22: #{mpii_4_forward.19} parent=0 // pred_check
    _
  $region23: #{mpii_4_forward.19} parent=0 // pred_check_branch
    %26 = sbr.rel (0) target = $region25
  $region24: #{mpii_4_forward.19} parent=0 // pred_region
    _
  $region25: #{mpii_4_forward.19} parent=0 // pred_fallthru
    _
  // Predicated region
  $region26: #{mpii_4_forward.19} parent=0 // pred_check
    _
  $region27: #{mpii_4_forward.19} parent=0 // pred_check_branch
    %28 = sbr.rel (0) target = $region29
  $region28: #{mpii_4_forward.19} parent=0 // pred_region
    _
  $region29: #{mpii_4_forward.19} parent=0 // pred_fallthru
    _
  // Predicated region
  $region30: #{mpii_4_forward.19} parent=0 // pred_check
    _
  $region31: #{mpii_4_forward.19} parent=0 // pred_check_branch
    %30 = sbr.rel (0) target = $region33
  $region32: #{mpii_4_forward.19} parent=0 // pred_region
    _
  $region33: #{mpii_4_forward.19} parent=0 // pred_fallthru
    _
  %v32 = vld [vmem:[%s0] sm:$0xff]
  %v33 = vld [vmem:[%s0 + $0x8] sm:$0xff]
  %v34 = vld [vmem:[%s0 + $0x10] sm:$0xff]
  %v35 = vld [vmem:[%s0 + $0x18] sm:$0xff]
  %v36 = vld [vmem:[%s0 + $0x20] sm:$0xff]
  %v37 = vld [vmem:[%s0 + $0x28] sm:$0xff]
  %v38 = vld [vmem:[%s0 + $0x30] sm:$0xff]
  %v39 = vld [vmem:[%s0 + $0x38] sm:$0xff]
  %v40 = vld [vmem:[%s0 + $0x40] sm:$0xff]
  %v41 = vld [vmem:[%s0 + $0x48] sm:$0xff]
  %v42 = vld [vmem:[%s0 + $0x50] sm:$0xff]
  %v43 = vld [vmem:[%s0 + $0x58] sm:$0xff]
  %v44 = vld [vmem:[%s0 + $0x60] sm:$0xff]
  %v45 = vld [vmem:[%s0 + $0x68] sm:$0xff]
  %v46 = vld [vmem:[%s0 + $0x70] sm:$0xff]
  %v47 = vld [vmem:[%s0 + $0x78] sm:$0xff]
  %v48 = vpack.c.bf16 %v33, %v32
  %v49 = vpack.c.bf16 %v35, %v34
  %v50 = vpack.c.bf16 %v37, %v36
  %v51 = vpack.c.bf16 %v39, %v38
  %v52 = vpack.c.bf16 %v41, %v40
  %v53 = vpack.c.bf16 %v43, %v42
  %v54 = vpack.c.bf16 %v45, %v44
  %v55 = vpack.c.bf16 %v47, %v46
  %v56 = vld [vmem:[%s2] sm:$0xf]
  %v57 = vld [vmem:[%s2 + $0x4] sm:$0xf]
  %v58 = vld [vmem:[%s3] sm:$0x1]
  %v60 = vlaneseq
  %v61 = vshrl.u32 %v60, 7
  %v62 = vsub.s32 0, %v61
  %v63 = vrot.slane %v58, %v62
  %v67 = vunpack.c.l.b16 %v56
  %v68 = vunpack.c.l.b16 %v57
  %v69 = vpack.c.b16 %v68, %v67
  %vm71 = vcmask 130048
  %v73 = vsel %vm71, %v48, 0
  %v76 = vsel %vm71, %v49, 0
  %v79 = vsel %vm71, %v50, 0
  %v82 = vsel %vm71, %v51, 0
  %v85 = vsel %vm71, %v52, 0
  %v88 = vsel %vm71, %v53, 0
  %v91 = vsel %vm71, %v54, 0
  %v94 = vsel %vm71, %v55, 0
  %96 = vmatprep.subr.bf16.mxu0 0
  %97 = vmatpush1.bf16.msra.mxu0 %v69
  %98 = vmatprep.subr.bf16.mxu0 0
  %99 = vmatpush1.bf16.msra.mxu0 0
  %100 = vmatprep.subr.bf16.mxu0 0
  %101 = vmatpush1.bf16.msra.mxu0 0
  %102 = vmatprep.subr.bf16.mxu0 0
  %103 = vmatpush1.bf16.msra.mxu0 0
  %104 = vmatprep.subr.bf16.mxu0 0
  %105 = vmatpush1.bf16.msra.mxu0 0
  %106 = vmatprep.subr.bf16.mxu0 0
  %107 = vmatpush1.bf16.msra.mxu0 0
  %108 = vmatprep.subr.bf16.mxu0 0
  %109 = vmatpush1.bf16.msra.mxu0 0
  %110 = vmatprep.subr.bf16.mxu0 0
  %111 = vmatpush1.bf16.msra.mxu0 0
  %112 = vmatprep.subr.bf16.mxu0 0
  %113 = vmatpush1.bf16.msra.mxu0 0
  %114 = vmatprep.subr.bf16.mxu0 0
  %115 = vmatpush1.bf16.msra.mxu0 0
  %116 = vmatprep.subr.bf16.mxu0 0
  %117 = vmatpush1.bf16.msra.mxu0 0
  %118 = vmatprep.subr.bf16.mxu0 0
  %119 = vmatpush1.bf16.msra.mxu0 0
  %120 = vmatprep.subr.bf16.mxu0 0
  %121 = vmatpush1.bf16.msra.mxu0 0
  %122 = vmatprep.subr.bf16.mxu0 0
  %123 = vmatpush1.bf16.msra.mxu0 0
  %124 = vmatprep.subr.bf16.mxu0 0
  %125 = vmatpush1.bf16.msra.mxu0 0
  %126 = vmatprep.subr.bf16.mxu0 0
  %127 = vmatpush1.bf16.msra.mxu0 0
  %128 = vmatprep.mubr.bf16.mxu0 0
  %129 = vmatmul.mubr.bf16.gmra.mrb[0].mxu0 %v73
  %v130 = vpop.f32.mrb[0].mxu0
  %v131 = vadd.f32 %v63, %v130
  %v132 = vpop.f32.mrb[0].mxu0
  %v133 = vpop.f32.mrb[0].mxu0
  %v134 = vadd.f32 %v63, %v133
  %v135 = vpop.f32.mrb[0].mxu0
  %136 = vmatprep.mubr.bf16.mxu0 0
  %137 = vmatmul.mubr.bf16.gmra.mrb[0].mxu0 %v76
  %v138 = vpop.f32.mrb[0].mxu0
  %v139 = vadd.f32 %v63, %v138
  %v140 = vpop.f32.mrb[0].mxu0
  %v141 = vpop.f32.mrb[0].mxu0
  %v142 = vadd.f32 %v63, %v141
  %v143 = vpop.f32.mrb[0].mxu0
  %144 = vmatprep.mubr.bf16.mxu0 0
  %145 = vmatmul.mubr.bf16.gmra.mrb[0].mxu0 %v79
  %v146 = vpop.f32.mrb[0].mxu0
  %v147 = vadd.f32 %v63, %v146
  %v148 = vpop.f32.mrb[0].mxu0
  %v149 = vpop.f32.mrb[0].mxu0
  %v150 = vadd.f32 %v63, %v149
  %v151 = vpop.f32.mrb[0].mxu0
  %152 = vmatprep.mubr.bf16.mxu0 0
  %153 = vmatmul.mubr.bf16.gmra.mrb[0].mxu0 %v82
  %v154 = vpop.f32.mrb[0].mxu0
  %v155 = vadd.f32 %v63, %v154
  %v156 = vpop.f32.mrb[0].mxu0
  %v157 = vpop.f32.mrb[0].mxu0
  %v158 = vadd.f32 %v63, %v157
  %v159 = vpop.f32.mrb[0].mxu0
  %160 = vmatprep.mubr.bf16.mxu0 0
  %161 = vmatmul.mubr.bf16.gmra.mrb[0].mxu0 %v85
  %v162 = vpop.f32.mrb[0].mxu0
  %v163 = vadd.f32 %v63, %v162
  %v164 = vpop.f32.mrb[0].mxu0
  %v165 = vpop.f32.mrb[0].mxu0
  %v166 = vadd.f32 %v63, %v165
  %v167 = vpop.f32.mrb[0].mxu0
  %168 = vmatprep.mubr.bf16.mxu0 0
  %169 = vmatmul.mubr.bf16.gmra.mrb[0].mxu0 %v88
  %v170 = vpop.f32.mrb[0].mxu0
  %v171 = vadd.f32 %v63, %v170
  %v172 = vpop.f32.mrb[0].mxu0
  %v173 = vpop.f32.mrb[0].mxu0
  %v174 = vadd.f32 %v63, %v173
  %v175 = vpop.f32.mrb[0].mxu0
  %176 = vmatprep.mubr.bf16.mxu0 0
  %177 = vmatmul.mubr.bf16.gmra.mrb[0].mxu0 %v91
  %v178 = vpop.f32.mrb[0].mxu0
  %v179 = vadd.f32 %v63, %v178
  %v180 = vpop.f32.mrb[0].mxu0
  %v181 = vpop.f32.mrb[0].mxu0
  %v182 = vadd.f32 %v63, %v181
  %v183 = vpop.f32.mrb[0].mxu0
  %184 = vmatprep.mubr.bf16.mxu0 0
  %185 = vmatmul.mubr.bf16.gmra.mrb[0].mxu0 %v94
  %v186 = vpop.f32.mrb[0].mxu0
  %v187 = vadd.f32 %v63, %v186
  %v188 = vpop.f32.mrb[0].mxu0
  %v189 = vpop.f32.mrb[0].mxu0
  %v190 = vadd.f32 %v63, %v189
  %v191 = vpop.f32.mrb[0].mxu0
  %192 = vdwg.mxu0
  %v193 = vld [vmem:[%s4] sm:$0xf]
  %v194 = vld [vmem:[%s4 + $0x4] sm:$0xf]
  %v195 = vld [vmem:[%s5] sm:$0x1]
  %v197 = vlaneseq
  %v198 = vshrl.u32 %v197, 7
  %v199 = vsub.s32 0, %v198
  %v200 = vrot.slane %v195, %v199
  %v204 = vunpack.c.l.b16 %v193
  %v205 = vunpack.c.l.b16 %v194
  %v206 = vpack.c.b16 %v205, %v204
  %208 = vmatprep.subr.bf16.mxu0 0
  %209 = vmatpush1.bf16.msra.mxu0 %v206
  %210 = vmatprep.subr.bf16.mxu0 0
  %211 = vmatpush1.bf16.msra.mxu0 0
  %212 = vmatprep.subr.bf16.mxu0 0
  %213 = vmatpush1.bf16.msra.mxu0 0
  %214 = vmatprep.subr.bf16.mxu0 0
  %215 = vmatpush1.bf16.msra.mxu0 0
  %216 = vmatprep.subr.bf16.mxu0 0
  %217 = vmatpush1.bf16.msra.mxu0 0
  %218 = vmatprep.subr.bf16.mxu0 0
  %219 = vmatpush1.bf16.msra.mxu0 0
  %220 = vmatprep.subr.bf16.mxu0 0
  %221 = vmatpush1.bf16.msra.mxu0 0
  %222 = vmatprep.subr.bf16.mxu0 0
  %223 = vmatpush1.bf16.msra.mxu0 0
  %224 = vmatprep.subr.bf16.mxu0 0
  %225 = vmatpush1.bf16.msra.mxu0 0
  %226 = vmatprep.subr.bf16.mxu0 0
  %227 = vmatpush1.bf16.msra.mxu0 0
  %228 = vmatprep.subr.bf16.mxu0 0
  %229 = vmatpush1.bf16.msra.mxu0 0
  %230 = vmatprep.subr.bf16.mxu0 0
  %231 = vmatpush1.bf16.msra.mxu0 0
  %232 = vmatprep.subr.bf16.mxu0 0
  %233 = vmatpush1.bf16.msra.mxu0 0
  %234 = vmatprep.subr.bf16.mxu0 0
  %235 = vmatpush1.bf16.msra.mxu0 0
  %236 = vmatprep.subr.bf16.mxu0 0
  %237 = vmatpush1.bf16.msra.mxu0 0
  %238 = vmatprep.subr.bf16.mxu0 0
  %239 = vmatpush1.bf16.msra.mxu0 0
  %240 = vmatprep.mubr.bf16.mxu0 0
  %241 = vmatmul.mubr.bf16.gmra.mrb[0].mxu0 %v73
  %v242 = vpop.f32.mrb[0].mxu0
  %v243 = vadd.f32 %v200, %v242
  %v244 = vpop.f32.mrb[0].mxu0
  %v245 = vpop.f32.mrb[0].mxu0
  %v246 = vadd.f32 %v200, %v245
  %v247 = vpop.f32.mrb[0].mxu0
  %248 = vmatprep.mubr.bf16.mxu0 0
  %249 = vmatmul.mubr.bf16.gmra.mrb[0].mxu0 %v76
  %v250 = vpop.f32.mrb[0].mxu0
  %v251 = vadd.f32 %v200, %v250
  %v252 = vpop.f32.mrb[0].mxu0
  %v253 = vpop.f32.mrb[0].mxu0
  %v254 = vadd.f32 %v200, %v253
  %v255 = vpop.f32.mrb[0].mxu0
  %256 = vmatprep.mubr.bf16.mxu0 0
  %257 = vmatmul.mubr.bf16.gmra.mrb[0].mxu0 %v79
  %v258 = vpop.f32.mrb[0].mxu0
  %v259 = vadd.f32 %v200, %v258
  %v260 = vpop.f32.mrb[0].mxu0
  %v261 = vpop.f32.mrb[0].mxu0
  %v262 = vadd.f32 %v200, %v261
  %v263 = vpop.f32.mrb[0].mxu0
  %264 = vmatprep.mubr.bf16.mxu0 0
  %265 = vmatmul.mubr.bf16.gmra.mrb[0].mxu0 %v82
  %v266 = vpop.f32.mrb[0].mxu0
  %v267 = vadd.f32 %v200, %v266
  %v268 = vpop.f32.mrb[0].mxu0
  %v269 = vpop.f32.mrb[0].mxu0
  %v270 = vadd.f32 %v200, %v269
  %v271 = vpop.f32.mrb[0].mxu0
  %272 = vmatprep.mubr.bf16.mxu0 0
  %273 = vmatmul.mubr.bf16.gmra.mrb[0].mxu0 %v85
  %v274 = vpop.f32.mrb[0].mxu0
  %v275 = vadd.f32 %v200, %v274
  %v276 = vpop.f32.mrb[0].mxu0
  %v277 = vpop.f32.mrb[0].mxu0
  %v278 = vadd.f32 %v200, %v277
  %v279 = vpop.f32.mrb[0].mxu0
  %280 = vmatprep.mubr.bf16.mxu0 0
  %281 = vmatmul.mubr.bf16.gmra.mrb[0].mxu0 %v88
  %v282 = vpop.f32.mrb[0].mxu0
  %v283 = vadd.f32 %v200, %v282
  %v284 = vpop.f32.mrb[0].mxu0
  %v285 = vpop.f32.mrb[0].mxu0
  %v286 = vadd.f32 %v200, %v285
  %v287 = vpop.f32.mrb[0].mxu0
  %288 = vmatprep.mubr.bf16.mxu0 0
  %289 = vmatmul.mubr.bf16.gmra.mrb[0].mxu0 %v91
  %v290 = vpop.f32.mrb[0].mxu0
  %v291 = vadd.f32 %v200, %v290
  %v292 = vpop.f32.mrb[0].mxu0
  %v293 = vpop.f32.mrb[0].mxu0
  %v294 = vadd.f32 %v200, %v293
  %v295 = vpop.f32.mrb[0].mxu0
  %296 = vmatprep.mubr.bf16.mxu0 0
  %297 = vmatmul.mubr.bf16.gmra.mrb[0].mxu0 %v94
  %v298 = vpop.f32.mrb[0].mxu0
  %v299 = vadd.f32 %v200, %v298
  %v300 = vpop.f32.mrb[0].mxu0
  %v301 = vpop.f32.mrb[0].mxu0
  %v302 = vadd.f32 %v200, %v301
  %v303 = vpop.f32.mrb[0].mxu0
  %304 = vdwg.mxu0
  %v305 = vpack.c.bf16 %v134, %v131
  %v306 = vpack.c.bf16 %v142, %v139
  %v307 = vpack.c.bf16 %v150, %v147
  %v308 = vpack.c.bf16 %v158, %v155
  %v309 = vpack.c.bf16 %v166, %v163
  %v310 = vpack.c.bf16 %v174, %v171
  %v311 = vpack.c.bf16 %v182, %v179
  %v312 = vpack.c.bf16 %v190, %v187
  %v313 = vld [vmem:[%s6] sm:$0xf]
  %v314 = vld [vmem:[%s6 + $0x4] sm:$0xf]
  %v315 = vld [vmem:[%s7] sm:$0x1]
  %v317 = vlaneseq
  %v318 = vshrl.u32 %v317, 7
  %v319 = vsub.s32 0, %v318
  %v320 = vrot.slane %v315, %v319
  %v324 = vunpack.c.l.b16 %v313
  %v325 = vunpack.c.l.b16 %v314
  %v326 = vpack.c.b16 %v325, %v324
  %v329 = vsel %vm71, %v305, 0
  %v332 = vsel %vm71, %v306, 0
  %v335 = vsel %vm71, %v307, 0
  %v338 = vsel %vm71, %v308, 0
  %v341 = vsel %vm71, %v309, 0
  %v344 = vsel %vm71, %v310, 0
  %v347 = vsel %vm71, %v311, 0
  %v350 = vsel %vm71, %v312, 0
  %352 = vmatprep.subr.bf16.mxu0 0
  %353 = vmatpush1.bf16.msra.mxu0 %v326
  %354 = vmatprep.subr.bf16.mxu0 0
  %355 = vmatpush1.bf16.msra.mxu0 0
  %356 = vmatprep.subr.bf16.mxu0 0
  %357 = vmatpush1.bf16.msra.mxu0 0
  %358 = vmatprep.subr.bf16.mxu0 0
  %359 = vmatpush1.bf16.msra.mxu0 0
  %360 = vmatprep.subr.bf16.mxu0 0
  %361 = vmatpush1.bf16.msra.mxu0 0
  %362 = vmatprep.subr.bf16.mxu0 0
  %363 = vmatpush1.bf16.msra.mxu0 0
  %364 = vmatprep.subr.bf16.mxu0 0
  %365 = vmatpush1.bf16.msra.mxu0 0
  %366 = vmatprep.subr.bf16.mxu0 0
  %367 = vmatpush1.bf16.msra.mxu0 0
  %368 = vmatprep.subr.bf16.mxu0 0
  %369 = vmatpush1.bf16.msra.mxu0 0
  %370 = vmatprep.subr.bf16.mxu0 0
  %371 = vmatpush1.bf16.msra.mxu0 0
  %372 = vmatprep.subr.bf16.mxu0 0
  %373 = vmatpush1.bf16.msra.mxu0 0
  %374 = vmatprep.subr.bf16.mxu0 0
  %375 = vmatpush1.bf16.msra.mxu0 0
  %376 = vmatprep.subr.bf16.mxu0 0
  %377 = vmatpush1.bf16.msra.mxu0 0
  %378 = vmatprep.subr.bf16.mxu0 0
  %379 = vmatpush1.bf16.msra.mxu0 0
  %380 = vmatprep.subr.bf16.mxu0 0
  %381 = vmatpush1.bf16.msra.mxu0 0
  %382 = vmatprep.subr.bf16.mxu0 0
  %383 = vmatpush1.bf16.msra.mxu0 0
  %384 = vmatprep.mubr.bf16.mxu0 0
  %385 = vmatmul.mubr.bf16.gmra.mrb[0].mxu0 %v329
  %v386 = vpop.f32.mrb[0].mxu0
  %v387 = vadd.f32 %v320, %v386
  %v388 = vpop.f32.mrb[0].mxu0
  %v389 = vpop.f32.mrb[0].mxu0
  %v390 = vadd.f32 %v320, %v389
  %v391 = vpop.f32.mrb[0].mxu0
  %392 = vmatprep.mubr.bf16.mxu0 0
  %393 = vmatmul.mubr.bf16.gmra.mrb[0].mxu0 %v332
  %v394 = vpop.f32.mrb[0].mxu0
  %v395 = vadd.f32 %v320, %v394
  %v396 = vpop.f32.mrb[0].mxu0
  %v397 = vpop.f32.mrb[0].mxu0
  %v398 = vadd.f32 %v320, %v397
  %v399 = vpop.f32.mrb[0].mxu0
  %400 = vmatprep.mubr.bf16.mxu0 0
  %401 = vmatmul.mubr.bf16.gmra.mrb[0].mxu0 %v335
  %v402 = vpop.f32.mrb[0].mxu0
  %v403 = vadd.f32 %v320, %v402
  %v404 = vpop.f32.mrb[0].mxu0
  %v405 = vpop.f32.mrb[0].mxu0
  %v406 = vadd.f32 %v320, %v405
  %v407 = vpop.f32.mrb[0].mxu0
  %408 = vmatprep.mubr.bf16.mxu0 0
  %409 = vmatmul.mubr.bf16.gmra.mrb[0].mxu0 %v338
  %v410 = vpop.f32.mrb[0].mxu0
  %v411 = vadd.f32 %v320, %v410
  %v412 = vpop.f32.mrb[0].mxu0
  %v413 = vpop.f32.mrb[0].mxu0
  %v414 = vadd.f32 %v320, %v413
  %v415 = vpop.f32.mrb[0].mxu0
  %416 = vmatprep.mubr.bf16.mxu0 0
  %417 = vmatmul.mubr.bf16.gmra.mrb[0].mxu0 %v341
  %v418 = vpop.f32.mrb[0].mxu0
  %v419 = vadd.f32 %v320, %v418
  %v420 = vpop.f32.mrb[0].mxu0
  %v421 = vpop.f32.mrb[0].mxu0
  %v422 = vadd.f32 %v320, %v421
  %v423 = vpop.f32.mrb[0].mxu0
  %424 = vmatprep.mubr.bf16.mxu0 0
  %425 = vmatmul.mubr.bf16.gmra.mrb[0].mxu0 %v344
  %v426 = vpop.f32.mrb[0].mxu0
  %v427 = vadd.f32 %v320, %v426
  %v428 = vpop.f32.mrb[0].mxu0
  %v429 = vpop.f32.mrb[0].mxu0
  %v430 = vadd.f32 %v320, %v429
  %v431 = vpop.f32.mrb[0].mxu0
  %432 = vmatprep.mubr.bf16.mxu0 0
  %433 = vmatmul.mubr.bf16.gmra.mrb[0].mxu0 %v347
  %v434 = vpop.f32.mrb[0].mxu0
  %v435 = vadd.f32 %v320, %v434
  %v436 = vpop.f32.mrb[0].mxu0
  %v437 = vpop.f32.mrb[0].mxu0
  %v438 = vadd.f32 %v320, %v437
  %v439 = vpop.f32.mrb[0].mxu0
  %440 = vmatprep.mubr.bf16.mxu0 0
  %441 = vmatmul.mubr.bf16.gmra.mrb[0].mxu0 %v350
  %v442 = vpop.f32.mrb[0].mxu0
  %v443 = vadd.f32 %v320, %v442
  %v444 = vpop.f32.mrb[0].mxu0
  %v445 = vpop.f32.mrb[0].mxu0
  %v446 = vadd.f32 %v320, %v445
  %v447 = vpop.f32.mrb[0].mxu0
  %448 = vdwg.mxu0
  %449 = vst.msk [vmem:[%s8] sm:$0xff] %vm71, %v131
  %450 = vst.msk [vmem:[%s8 + $0x8] sm:$0xff] %vm71, %v134
  %451 = vst.msk [vmem:[%s8 + $0x10] sm:$0xff] %vm71, %v139
  %452 = vst.msk [vmem:[%s8 + $0x18] sm:$0xff] %vm71, %v142
  %453 = vst.msk [vmem:[%s8 + $0x20] sm:$0xff] %vm71, %v147
  %454 = vst.msk [vmem:[%s8 + $0x28] sm:$0xff] %vm71, %v150
  %455 = vst.msk [vmem:[%s8 + $0x30] sm:$0xff] %vm71, %v155
  %456 = vst.msk [vmem:[%s8 + $0x38] sm:$0xff] %vm71, %v158
  %457 = vst.msk [vmem:[%s8 + $0x40] sm:$0xff] %vm71, %v163
  %458 = vst.msk [vmem:[%s8 + $0x48] sm:$0xff] %vm71, %v166
  %459 = vst.msk [vmem:[%s8 + $0x50] sm:$0xff] %vm71, %v171
  %460 = vst.msk [vmem:[%s8 + $0x58] sm:$0xff] %vm71, %v174
  %461 = vst.msk [vmem:[%s8 + $0x60] sm:$0xff] %vm71, %v179
  %462 = vst.msk [vmem:[%s8 + $0x68] sm:$0xff] %vm71, %v182
  %463 = vst.msk [vmem:[%s8 + $0x70] sm:$0xff] %vm71, %v187
  %464 = vst.msk [vmem:[%s8 + $0x78] sm:$0xff] %vm71, %v190
  %v465 = vld [vmem:[%s1] sm:$0xff]
  %v466 = vld [vmem:[%s1 + $0x8] sm:$0xff]
  %v467 = vld [vmem:[%s1 + $0x10] sm:$0xff]
  %v468 = vld [vmem:[%s1 + $0x18] sm:$0xff]
  %v469 = vld [vmem:[%s1 + $0x20] sm:$0xff]
  %v470 = vld [vmem:[%s1 + $0x28] sm:$0xff]
  %v471 = vld [vmem:[%s1 + $0x30] sm:$0xff]
  %v472 = vld [vmem:[%s1 + $0x38] sm:$0xff]
  %v473 = vld [vmem:[%s1 + $0x40] sm:$0xff]
  %v474 = vld [vmem:[%s1 + $0x48] sm:$0xff]
  %v475 = vld [vmem:[%s1 + $0x50] sm:$0xff]
  %v476 = vld [vmem:[%s1 + $0x58] sm:$0xff]
  %v477 = vld [vmem:[%s1 + $0x60] sm:$0xff]
  %v478 = vld [vmem:[%s1 + $0x68] sm:$0xff]
  %v479 = vld [vmem:[%s1 + $0x70] sm:$0xff]
  %v480 = vld [vmem:[%s1 + $0x78] sm:$0xff]
  %v481 = vadd.f32 %v465, %v243
  %v482 = vadd.f32 %v466, %v246
  %v483 = vadd.f32 %v467, %v251
  %v484 = vadd.f32 %v468, %v254
  %v485 = vadd.f32 %v469, %v259
  %v486 = vadd.f32 %v470, %v262
  %v487 = vadd.f32 %v471, %v267
  %v488 = vadd.f32 %v472, %v270
  %v489 = vadd.f32 %v473, %v275
  %v490 = vadd.f32 %v474, %v278
  %v491 = vadd.f32 %v475, %v283
  %v492 = vadd.f32 %v476, %v286
  %v493 = vadd.f32 %v477, %v291
  %v494 = vadd.f32 %v478, %v294
  %v495 = vadd.f32 %v479, %v299
  %v496 = vadd.f32 %v480, %v302
  %v497 = vadd.f32 %v481, %v387
  %v498 = vadd.f32 %v482, %v390
  %v499 = vadd.f32 %v483, %v395
  %v500 = vadd.f32 %v484, %v398
  %v501 = vadd.f32 %v485, %v403
  %v502 = vadd.f32 %v486, %v406
  %v503 = vadd.f32 %v487, %v411
  %v504 = vadd.f32 %v488, %v414
  %v505 = vadd.f32 %v489, %v419
  %v506 = vadd.f32 %v490, %v422
  %v507 = vadd.f32 %v491, %v427
  %v508 = vadd.f32 %v492, %v430
  %v509 = vadd.f32 %v493, %v435
  %v510 = vadd.f32 %v494, %v438
  %v511 = vadd.f32 %v495, %v443
  %v512 = vadd.f32 %v496, %v446
  %v513 = vmax.f32 %v497, 0.0
  %v514 = vmax.f32 %v498, 0.0
  %v515 = vmax.f32 %v499, 0.0
  %v516 = vmax.f32 %v500, 0.0
  %v517 = vmax.f32 %v501, 0.0
  %v518 = vmax.f32 %v502, 0.0
  %v519 = vmax.f32 %v503, 0.0
  %v520 = vmax.f32 %v504, 0.0
  %v521 = vmax.f32 %v505, 0.0
  %v522 = vmax.f32 %v506, 0.0
  %v523 = vmax.f32 %v507, 0.0
  %v524 = vmax.f32 %v508, 0.0
  %v525 = vmax.f32 %v509, 0.0
  %v526 = vmax.f32 %v510, 0.0
  %v527 = vmax.f32 %v511, 0.0
  %v528 = vmax.f32 %v512, 0.0
  %529 = vst.msk [vmem:[%s9] sm:$0xff] %vm71, %v513
  %530 = vst.msk [vmem:[%s9 + $0x8] sm:$0xff] %vm71, %v514
  %531 = vst.msk [vmem:[%s9 + $0x10] sm:$0xff] %vm71, %v515
  %532 = vst.msk [vmem:[%s9 + $0x18] sm:$0xff] %vm71, %v516
  %533 = vst.msk [vmem:[%s9 + $0x20] sm:$0xff] %vm71, %v517
  %534 = vst.msk [vmem:[%s9 + $0x28] sm:$0xff] %vm71, %v518
  %535 = vst.msk [vmem:[%s9 + $0x30] sm:$0xff] %vm71, %v519
  %536 = vst.msk [vmem:[%s9 + $0x38] sm:$0xff] %vm71, %v520
  %537 = vst.msk [vmem:[%s9 + $0x40] sm:$0xff] %vm71, %v521
  %538 = vst.msk [vmem:[%s9 + $0x48] sm:$0xff] %vm71, %v522
  %539 = vst.msk [vmem:[%s9 + $0x50] sm:$0xff] %vm71, %v523
  %540 = vst.msk [vmem:[%s9 + $0x58] sm:$0xff] %vm71, %v524
  %541 = vst.msk [vmem:[%s9 + $0x60] sm:$0xff] %vm71, %v525
  %542 = vst.msk [vmem:[%s9 + $0x68] sm:$0xff] %vm71, %v526
  %543 = vst.msk [vmem:[%s9 + $0x70] sm:$0xff] %vm71, %v527
  %544 = vst.msk [vmem:[%s9 + $0x78] sm:$0xff] %vm71, %v528
  // Predicated region
  $region34: #{mpii_4_forward.19} parent=0 // pred_check
    _
  $region35: #{mpii_4_forward.19} parent=0 // pred_check_branch
    %546 = sbr.rel (0) target = $region37
  $region36: #{mpii_4_forward.19} parent=0 // pred_region
    _
  $region37: #{mpii_4_forward.19} parent=0 // pred_fallthru
    _
  // Predicated region
  $region38: #{mpii_4_forward.19} parent=0 // pred_check
    _
  $region39: #{mpii_4_forward.19} parent=0 // pred_check_branch
    %548 = sbr.rel (0) target = $region41
  $region40: #{mpii_4_forward.19} parent=0 // pred_region
    _
  $region41: #{mpii_4_forward.19} parent=0 // pred_fallthru
    _
  // Predicated region
  $region42: #{mpii_4_forward.19} parent=0 // pred_check
    _
  $region43: #{mpii_4_forward.19} parent=0 // pred_check_branch
    %550 = sbr.rel (0) target = $region45
  $region44: #{mpii_4_forward.19} parent=0 // pred_region
    _
  $region45: #{mpii_4_forward.19} parent=0 // pred_fallthru
    _
  // Predicated region
  $region46: #{mpii_4_forward.19} parent=0 // pred_check
    _
  $region47: #{mpii_4_forward.19} parent=0 // pred_check_branch
    %552 = sbr.rel (0) target = $region49
  $region48: #{mpii_4_forward.19} parent=0 // pred_region
    _
  $region49: #{mpii_4_forward.19} parent=0 // pred_fallthru
    _

// kernel: mpii_4_forward.29
$region0: #{mpii_4_forward.29}
  #allocation0 [shape = 'u32[]', space=smem, size = 0x4, offset = 0x4, fixed_abs, tag = 'smem constant byte address 0x4 - core index']
  #allocation1 [shape = 'u32[144,128]{1,0:T(1,128)}', space=vmem, size = 0x12000, scoped, tag = 'internal scratch']
  %s0 = inlined_call_operand.vmem [shape: f32[32,64], index: 0, kind: input, shape index: {}]
  %s1 = inlined_call_operand.vmem [shape: f32[32,2], index: 1, kind: output, shape index: {}]
  %s2 = sld [smem:[#allocation0]]
  $region14: #{mpii_4_forward.29} parent=0
    _
  %s4 = ssub.s32 1, %s2
  %s5 = scalar_select 0, %s4, %s2
  // Predicated region
  $region2: #{mpii_4_forward.29} parent=0 // pred_check
    _
  $region3: #{mpii_4_forward.29} parent=0 // pred_check_branch
    %7 = sbr.rel (0) target = $region5
  $region4: #{mpii_4_forward.29} parent=0 // pred_region
    _
  $region5: #{mpii_4_forward.29} parent=0 // pred_fallthru
    _
  %v8 = vld [vmem:[%s0] sm:$0xff]
  %v9 = vld [vmem:[%s0 + $0x8] sm:$0xff]
  %v10 = vld [vmem:[%s0 + $0x10] sm:$0xff]
  %v11 = vld [vmem:[%s0 + $0x18] sm:$0xff]
  %vm12 = vcmask 523264
  %v13 = vsel %vm12, %v8, -inf
  %14 = vmax.xlane.f32.xlu0 %v13
  %v15 = vpop.xlane.xlu0 %14
  %v16 = vsel %vm12, %v9, -inf
  %17 = vmax.xlane.f32.xlu0 %v16
  %v18 = vpop.xlane.xlu0 %17
  %v19 = vsel %vm12, %v10, -inf
  %20 = vmax.xlane.f32.xlu0 %v19
  %v21 = vpop.xlane.xlu0 %20
  %v22 = vsel %vm12, %v11, -inf
  %23 = vmax.xlane.f32.xlu0 %v22
  %v24 = vpop.xlane.xlu0 %23
  %v25 = vsub.f32 %v8, %v15
  %v26 = vsub.f32 %v9, %v18
  %v27 = vsub.f32 %v10, %v21
  %v28 = vsub.f32 %v11, %v24
  %v29 = vmul.f32 %v25, 1.442695
  %v30 = vpow.pop %v29
  %v31 = vmul.f32 %v26, 1.442695
  %v32 = vpow.pop %v31
  %v33 = vmul.f32 %v27, 1.442695
  %v34 = vpow.pop %v33
  %v35 = vmul.f32 %v28, 1.442695
  %v36 = vpow.pop %v35
  %v37 = vsel %vm12, %v30, 0.0
  %38 = vadd.xlane.f32.xlu0 %v37
  %v39 = vpop.xlane.xlu0 %38
  %v40 = vsel %vm12, %v32, 0.0
  %41 = vadd.xlane.f32.xlu0 %v40
  %v42 = vpop.xlane.xlu0 %41
  %v43 = vsel %vm12, %v34, 0.0
  %44 = vadd.xlane.f32.xlu0 %v43
  %v45 = vpop.xlane.xlu0 %44
  %v46 = vsel %vm12, %v36, 0.0
  %47 = vadd.xlane.f32.xlu0 %v46
  %v48 = vpop.xlane.xlu0 %47
  %v49 = vrcp.pop %v39
  %v50 = vrcp.pop %v42
  %v51 = vrcp.pop %v45
  %v52 = vrcp.pop %v48
  %v53 = vmul.f32 %v30, %v49
  %v54 = vmul.f32 %v32, %v50
  %v55 = vmul.f32 %v34, %v51
  %v56 = vmul.f32 %v36, %v52
  %v57 = vlaneseq
  %v58 = vand.u32 %v57, 127
  %v59 = vcvt.s32.f32 %v58
  %v60 = vmul.f32 %v59, 0.125
  %v61 = vfloor.f32 %v60
  %v62 = vmul.f32 %v61, 8.0
  %v63 = vsub.f32 %v59, %v62
  %v64 = vadd.f32 %v63, 0.5
  %v65 = vmul.f32 %v64, 0.125
  %v66 = vadd.f32 %v61, 0.5
  %v67 = vmul.f32 %v66, 0.125
  %v68 = vmul.f32 %v53, %v65
  %v69 = vmul.f32 %v54, %v65
  %v70 = vmul.f32 %v55, %v65
  %v71 = vmul.f32 %v56, %v65
  %v72 = vsel %vm12, %v68, 0.0
  %73 = vadd.xlane.f32.xlu0 %v72
  %v74 = vpop.xlane.xlu0 %73
  %v75 = vsel %vm12, %v69, 0.0
  %76 = vadd.xlane.f32.xlu0 %v75
  %v77 = vpop.xlane.xlu0 %76
  %v78 = vsel %vm12, %v70, 0.0
  %79 = vadd.xlane.f32.xlu0 %v78
  %v80 = vpop.xlane.xlu0 %79
  %v81 = vsel %vm12, %v71, 0.0
  %82 = vadd.xlane.f32.xlu0 %v81
  %v83 = vpop.xlane.xlu0 %82
  %vm84 = vcmask 7168
  %85 = vst.msk [vmem:[%s1] sm:$0xff] %vm84, %v74
  %86 = vst.msk [vmem:[%s1 + $0x8] sm:$0xff] %vm84, %v77
  %87 = vst.msk [vmem:[%s1 + $0x10] sm:$0xff] %vm84, %v80
  %88 = vst.msk [vmem:[%s1 + $0x18] sm:$0xff] %vm84, %v83
  %v89 = vmul.f32 %v53, %v67
  %v90 = vmul.f32 %v54, %v67
  %v91 = vmul.f32 %v55, %v67
  %v92 = vmul.f32 %v56, %v67
  %v93 = vsel %vm12, %v89, 0.0
  %94 = vadd.xlane.f32.xlu0 %v93
  %v95 = vpop.xlane.xlu0 %94
  %v96 = vsel %vm12, %v90, 0.0
  %97 = vadd.xlane.f32.xlu0 %v96
  %v98 = vpop.xlane.xlu0 %97
  %v99 = vsel %vm12, %v91, 0.0
  %100 = vadd.xlane.f32.xlu0 %v99
  %v101 = vpop.xlane.xlu0 %100
  %v102 = vsel %vm12, %v92, 0.0
  %103 = vadd.xlane.f32.xlu0 %v102
  %v104 = vpop.xlane.xlu0 %103
  %vm105 = vcmask 15368
  %106 = vst.msk [vmem:[%s1] sm:$0xff] %vm105, %v95
  %107 = vst.msk [vmem:[%s1 + $0x8] sm:$0xff] %vm105, %v98
  %108 = vst.msk [vmem:[%s1 + $0x10] sm:$0xff] %vm105, %v101
  %109 = vst.msk [vmem:[%s1 + $0x18] sm:$0xff] %vm105, %v104
  // Predicated region
  $region6: #{mpii_4_forward.29} parent=0 // pred_check
    _
  $region7: #{mpii_4_forward.29} parent=0 // pred_check_branch
    %111 = sbr.rel (0) target = $region9
  $region8: #{mpii_4_forward.29} parent=0 // pred_region
    _
  $region9: #{mpii_4_forward.29} parent=0 // pred_fallthru
    _
  // Predicated region
  $region10: #{mpii_4_forward.29} parent=0 // pred_check
    _
  $region11: #{mpii_4_forward.29} parent=0 // pred_check_branch
    %113 = sbr.rel (0) target = $region13
  $region12: #{mpii_4_forward.29} parent=0 // pred_region
    _
  $region13: #{mpii_4_forward.29} parent=0 // pred_fallthru
    _

// kernel: mpii_4_forward.28
$region0: #{mpii_4_forward.28}
  #allocation0 [shape = 'u32[]', space=smem, size = 0x4, offset = 0x4, fixed_abs, tag = 'smem constant byte address 0x4 - core index']
  #allocation1 [shape = 'u32[144,128]{1,0:T(1,128)}', space=vmem, size = 0x12000, scoped, tag = 'internal scratch']
  %s0 = inlined_call_operand.vmem [shape: f32[128,16], index: 0, kind: input, shape index: {}]
  %s1 = inlined_call_operand.vmem [shape: f32[128,16], index: 1, kind: input, shape index: {}]
  %s2 = inlined_call_operand.vmem [shape: bf16[16,16], index: 2, kind: input, shape index: {}]
  %s3 = inlined_call_operand.vmem [shape: f32[1,16], index: 3, kind: input, shape index: {}]
  %s4 = inlined_call_operand.vmem [shape: bf16[16,16], index: 4, kind: input, shape index: {}]
  %s5 = inlined_call_operand.vmem [shape: f32[1,16], index: 5, kind: input, shape index: {}]
  %s6 = inlined_call_operand.vmem [shape: bf16[16,16], index: 6, kind: input, shape index: {}]
  %s7 = inlined_call_operand.vmem [shape: f32[1,16], index: 7, kind: input, shape index: {}]
  %s8 = inlined_call_operand.vmem [shape: f32[128,16], index: 8, kind: output, shape index: {0}]
  %s9 = inlined_call_operand.hbm [shape: f32[128,16], index: 9, kind: output, shape index: {1}]
  %10 = xla_tuple %s8, %s9
  %s11 = sld [smem:[#allocation0]]
  $region50: #{mpii_4_forward.28} parent=0
    _
  %s13 = ssub.s32 1, %s11
  %s14 = scalar_select 0, %s13, %s11
  $region1: #{mpii_4_forward.28} parent=0
    #allocation2 [shape = 'u8[65536]{0}', space=vmem, size = 0x10000, scoped, tag = 'output window, operand 1, single buffered']
    #allocation3 [shape = 's32[1]{0}', space=sflag, size = 0x4, scoped, tag = 'scoped memory for mpii_4_forward.28']
    %15 = vsyncpa [#allocation3], 0
    // Predicated region
    $region2: #{mpii_4_forward.28} parent=1 // pred_check
      _
    $region3: #{mpii_4_forward.28} parent=1 // pred_check_branch
      %17 = sbr.rel (0) target = $region5
    $region4: #{mpii_4_forward.28} parent=1 // pred_region
      _
    $region5: #{mpii_4_forward.28} parent=1 // pred_fallthru
      _
    // Predicated region
    $region6: #{mpii_4_forward.28} parent=1 // pred_check
      _
    $region7: #{mpii_4_forward.28} parent=1 // pred_check_branch
      %19 = sbr.rel (0) target = $region9
    $region8: #{mpii_4_forward.28} parent=1 // pred_region
      _
    $region9: #{mpii_4_forward.28} parent=1 // pred_fallthru
      _
    // Predicated region
    $region10: #{mpii_4_forward.28} parent=1 // pred_check
      _
    $region11: #{mpii_4_forward.28} parent=1 // pred_check_branch
      %21 = sbr.rel (0) target = $region13
    $region12: #{mpii_4_forward.28} parent=1 // pred_region
      _
    $region13: #{mpii_4_forward.28} parent=1 // pred_fallthru
      _
    // Predicated region
    $region14: #{mpii_4_forward.28} parent=1 // pred_check
      _
    $region15: #{mpii_4_forward.28} parent=1 // pred_check_branch
      %23 = sbr.rel (0) target = $region17
    $region16: #{mpii_4_forward.28} parent=1 // pred_region
      _
    $region17: #{mpii_4_forward.28} parent=1 // pred_fallthru
      _
    // Predicated region
    $region18: #{mpii_4_forward.28} parent=1 // pred_check
      _
    $region19: #{mpii_4_forward.28} parent=1 // pred_check_branch
      %25 = sbr.rel (0) target = $region21
    $region20: #{mpii_4_forward.28} parent=1 // pred_region
      _
    $region21: #{mpii_4_forward.28} parent=1 // pred_fallthru
      _
    // Predicated region
    $region22: #{mpii_4_forward.28} parent=1 // pred_check
      _
    $region23: #{mpii_4_forward.28} parent=1 // pred_check_branch
      %27 = sbr.rel (0) target = $region25
    $region24: #{mpii_4_forward.28} parent=1 // pred_region
      _
    $region25: #{mpii_4_forward.28} parent=1 // pred_fallthru
      _
    // Predicated region
    $region26: #{mpii_4_forward.28} parent=1 // pred_check
      _
    $region27: #{mpii_4_forward.28} parent=1 // pred_check_branch
      %29 = sbr.rel (0) target = $region29
    $region28: #{mpii_4_forward.28} parent=1 // pred_region
      _
    $region29: #{mpii_4_forward.28} parent=1 // pred_fallthru
      _
    // Predicated region
    $region30: #{mpii_4_forward.28} parent=1 // pred_check
      _
    $region31: #{mpii_4_forward.28} parent=1 // pred_check_branch
      %31 = sbr.rel (0) target = $region33
    $region32: #{mpii_4_forward.28} parent=1 // pred_region
      _
    $region33: #{mpii_4_forward.28} parent=1 // pred_fallthru
      _
    %v33 = vld [vmem:[%s0] sm:$0xff]
    %v34 = vld [vmem:[%s0 + $0x8] sm:$0xff]
    %v35 = vld [vmem:[%s0 + $0x10] sm:$0xff]
    %v36 = vld [vmem:[%s0 + $0x18] sm:$0xff]
    %v37 = vld [vmem:[%s0 + $0x20] sm:$0xff]
    %v38 = vld [vmem:[%s0 + $0x28] sm:$0xff]
    %v39 = vld [vmem:[%s0 + $0x30] sm:$0xff]
    %v40 = vld [vmem:[%s0 + $0x38] sm:$0xff]
    %v41 = vld [vmem:[%s0 + $0x40] sm:$0xff]
    %v42 = vld [vmem:[%s0 + $0x48] sm:$0xff]
    %v43 = vld [vmem:[%s0 + $0x50] sm:$0xff]
    %v44 = vld [vmem:[%s0 + $0x58] sm:$0xff]
    %v45 = vld [vmem:[%s0 + $0x60] sm:$0xff]
    %v46 = vld [vmem:[%s0 + $0x68] sm:$0xff]
    %v47 = vld [vmem:[%s0 + $0x70] sm:$0xff]
    %v48 = vld [vmem:[%s0 + $0x78] sm:$0xff]
    %v49 = vpack.c.bf16 %v34, %v33
    %v50 = vpack.c.bf16 %v36, %v35
    %v51 = vpack.c.bf16 %v38, %v37
    %v52 = vpack.c.bf16 %v40, %v39
    %v53 = vpack.c.bf16 %v42, %v41
    %v54 = vpack.c.bf16 %v44, %v43
    %v55 = vpack.c.bf16 %v46, %v45
    %v56 = vpack.c.bf16 %v48, %v47
    %v57 = vld [vmem:[%s2] sm:$0xf]
    %v58 = vld [vmem:[%s2 + $0x4] sm:$0xf]
    %v59 = vld [vmem:[%s3] sm:$0x1]
    %v61 = vlaneseq
    %v62 = vshrl.u32 %v61, 7
    %v63 = vsub.s32 0, %v62
    %v64 = vrot.slane %v59, %v63
    %v68 = vunpack.c.l.b16 %v57
    %v69 = vunpack.c.l.b16 %v58
    %v70 = vpack.c.b16 %v69, %v68
    %vm72 = vcmask 130048
    %v74 = vsel %vm72, %v49, 0
    %v77 = vsel %vm72, %v50, 0
    %v80 = vsel %vm72, %v51, 0
    %v83 = vsel %vm72, %v52, 0
    %v86 = vsel %vm72, %v53, 0
    %v89 = vsel %vm72, %v54, 0
    %v92 = vsel %vm72, %v55, 0
    %v95 = vsel %vm72, %v56, 0
    %97 = vmatprep.subr.bf16.mxu0 0
    %98 = vmatpush1.bf16.msra.mxu0 %v70
    %99 = vmatprep.subr.bf16.mxu0 0
    %100 = vmatpush1.bf16.msra.mxu0 0
    %101 = vmatprep.subr.bf16.mxu0 0
    %102 = vmatpush1.bf16.msra.mxu0 0
    %103 = vmatprep.subr.bf16.mxu0 0
    %104 = vmatpush1.bf16.msra.mxu0 0
    %105 = vmatprep.subr.bf16.mxu0 0
    %106 = vmatpush1.bf16.msra.mxu0 0
    %107 = vmatprep.subr.bf16.mxu0 0
    %108 = vmatpush1.bf16.msra.mxu0 0
    %109 = vmatprep.subr.bf16.mxu0 0
    %110 = vmatpush1.bf16.msra.mxu0 0
    %111 = vmatprep.subr.bf16.mxu0 0
    %112 = vmatpush1.bf16.msra.mxu0 0
    %113 = vmatprep.subr.bf16.mxu0 0
    %114 = vmatpush1.bf16.msra.mxu0 0
    %115 = vmatprep.subr.bf16.mxu0 0
    %116 = vmatpush1.bf16.msra.mxu0 0
    %117 = vmatprep.subr.bf16.mxu0 0
    %118 = vmatpush1.bf16.msra.mxu0 0
    %119 = vmatprep.subr.bf16.mxu0 0
    %120 = vmatpush1.bf16.msra.mxu0 0
    %121 = vmatprep.subr.bf16.mxu0 0
    %122 = vmatpush1.bf16.msra.mxu0 0
    %123 = vmatprep.subr.bf16.mxu0 0
    %124 = vmatpush1.bf16.msra.mxu0 0
    %125 = vmatprep.subr.bf16.mxu0 0
    %126 = vmatpush1.bf16.msra.mxu0 0
    %127 = vmatprep.subr.bf16.mxu0 0
    %128 = vmatpush1.bf16.msra.mxu0 0
    %129 = vmatprep.mubr.bf16.mxu0 0
    %130 = vmatmul.mubr.bf16.gmra.mrb[0].mxu0 %v74
    %v131 = vpop.f32.mrb[0].mxu0
    %v132 = vadd.f32 %v64, %v131
    %v133 = vpop.f32.mrb[0].mxu0
    %v134 = vpop.f32.mrb[0].mxu0
    %v135 = vadd.f32 %v64, %v134
    %v136 = vpop.f32.mrb[0].mxu0
    %137 = vmatprep.mubr.bf16.mxu0 0
    %138 = vmatmul.mubr.bf16.gmra.mrb[0].mxu0 %v77
    %v139 = vpop.f32.mrb[0].mxu0
    %v140 = vadd.f32 %v64, %v139
    %v141 = vpop.f32.mrb[0].mxu0
    %v142 = vpop.f32.mrb[0].mxu0
    %v143 = vadd.f32 %v64, %v142
    %v144 = vpop.f32.mrb[0].mxu0
    %145 = vmatprep.mubr.bf16.mxu0 0
    %146 = vmatmul.mubr.bf16.gmra.mrb[0].mxu0 %v80
    %v147 = vpop.f32.mrb[0].mxu0
    %v148 = vadd.f32 %v64, %v147
    %v149 = vpop.f32.mrb[0].mxu0
    %v150 = vpop.f32.mrb[0].mxu0
    %v151 = vadd.f32 %v64, %v150
    %v152 = vpop.f32.mrb[0].mxu0
    %153 = vmatprep.mubr.bf16.mxu0 0
    %154 = vmatmul.mubr.bf16.gmra.mrb[0].mxu0 %v83
    %v155 = vpop.f32.mrb[0].mxu0
    %v156 = vadd.f32 %v64, %v155
    %v157 = vpop.f32.mrb[0].mxu0
    %v158 = vpop.f32.mrb[0].mxu0
    %v159 = vadd.f32 %v64, %v158
    %v160 = vpop.f32.mrb[0].mxu0
    %161 = vmatprep.mubr.bf16.mxu0 0
    %162 = vmatmul.mubr.bf16.gmra.mrb[0].mxu0 %v86
    %v163 = vpop.f32.mrb[0].mxu0
    %v164 = vadd.f32 %v64, %v163
    %v165 = vpop.f32.mrb[0].mxu0
    %v166 = vpop.f32.mrb[0].mxu0
    %v167 = vadd.f32 %v64, %v166
    %v168 = vpop.f32.mrb[0].mxu0
    %169 = vmatprep.mubr.bf16.mxu0 0
    %170 = vmatmul.mubr.bf16.gmra.mrb[0].mxu0 %v89
    %v171 = vpop.f32.mrb[0].mxu0
    %v172 = vadd.f32 %v64, %v171
    %v173 = vpop.f32.mrb[0].mxu0
    %v174 = vpop.f32.mrb[0].mxu0
    %v175 = vadd.f32 %v64, %v174
    %v176 = vpop.f32.mrb[0].mxu0
    %177 = vmatprep.mubr.bf16.mxu0 0
    %178 = vmatmul.mubr.bf16.gmra.mrb[0].mxu0 %v92
    %v179 = vpop.f32.mrb[0].mxu0
    %v180 = vadd.f32 %v64, %v179
    %v181 = vpop.f32.mrb[0].mxu0
    %v182 = vpop.f32.mrb[0].mxu0
    %v183 = vadd.f32 %v64, %v182
    %v184 = vpop.f32.mrb[0].mxu0
    %185 = vmatprep.mubr.bf16.mxu0 0
    %186 = vmatmul.mubr.bf16.gmra.mrb[0].mxu0 %v95
    %v187 = vpop.f32.mrb[0].mxu0
    %v188 = vadd.f32 %v64, %v187
    %v189 = vpop.f32.mrb[0].mxu0
    %v190 = vpop.f32.mrb[0].mxu0
    %v191 = vadd.f32 %v64, %v190
    %v192 = vpop.f32.mrb[0].mxu0
    %193 = vdwg.mxu0
    %v194 = vld [vmem:[%s4] sm:$0xf]
    %v195 = vld [vmem:[%s4 + $0x4] sm:$0xf]
    %v196 = vld [vmem:[%s5] sm:$0x1]
    %v198 = vlaneseq
    %v199 = vshrl.u32 %v198, 7
    %v200 = vsub.s32 0, %v199
    %v201 = vrot.slane %v196, %v200
    %v205 = vunpack.c.l.b16 %v194
    %v206 = vunpack.c.l.b16 %v195
    %v207 = vpack.c.b16 %v206, %v205
    %209 = vmatprep.subr.bf16.mxu0 0
    %210 = vmatpush1.bf16.msra.mxu0 %v207
    %211 = vmatprep.subr.bf16.mxu0 0
    %212 = vmatpush1.bf16.msra.mxu0 0
    %213 = vmatprep.subr.bf16.mxu0 0
    %214 = vmatpush1.bf16.msra.mxu0 0
    %215 = vmatprep.subr.bf16.mxu0 0
    %216 = vmatpush1.bf16.msra.mxu0 0
    %217 = vmatprep.subr.bf16.mxu0 0
    %218 = vmatpush1.bf16.msra.mxu0 0
    %219 = vmatprep.subr.bf16.mxu0 0
    %220 = vmatpush1.bf16.msra.mxu0 0
    %221 = vmatprep.subr.bf16.mxu0 0
    %222 = vmatpush1.bf16.msra.mxu0 0
    %223 = vmatprep.subr.bf16.mxu0 0
    %224 = vmatpush1.bf16.msra.mxu0 0
    %225 = vmatprep.subr.bf16.mxu0 0
    %226 = vmatpush1.bf16.msra.mxu0 0
    %227 = vmatprep.subr.bf16.mxu0 0
    %228 = vmatpush1.bf16.msra.mxu0 0
    %229 = vmatprep.subr.bf16.mxu0 0
    %230 = vmatpush1.bf16.msra.mxu0 0
    %231 = vmatprep.subr.bf16.mxu0 0
    %232 = vmatpush1.bf16.msra.mxu0 0
    %233 = vmatprep.subr.bf16.mxu0 0
    %234 = vmatpush1.bf16.msra.mxu0 0
    %235 = vmatprep.subr.bf16.mxu0 0
    %236 = vmatpush1.bf16.msra.mxu0 0
    %237 = vmatprep.subr.bf16.mxu0 0
    %238 = vmatpush1.bf16.msra.mxu0 0
    %239 = vmatprep.subr.bf16.mxu0 0
    %240 = vmatpush1.bf16.msra.mxu0 0
    %241 = vmatprep.mubr.bf16.mxu0 0
    %242 = vmatmul.mubr.bf16.gmra.mrb[0].mxu0 %v74
    %v243 = vpop.f32.mrb[0].mxu0
    %v244 = vadd.f32 %v201, %v243
    %v245 = vpop.f32.mrb[0].mxu0
    %v246 = vpop.f32.mrb[0].mxu0
    %v247 = vadd.f32 %v201, %v246
    %v248 = vpop.f32.mrb[0].mxu0
    %249 = vmatprep.mubr.bf16.mxu0 0
    %250 = vmatmul.mubr.bf16.gmra.mrb[0].mxu0 %v77
    %v251 = vpop.f32.mrb[0].mxu0
    %v252 = vadd.f32 %v201, %v251
    %v253 = vpop.f32.mrb[0].mxu0
    %v254 = vpop.f32.mrb[0].mxu0
    %v255 = vadd.f32 %v201, %v254
    %v256 = vpop.f32.mrb[0].mxu0
    %257 = vmatprep.mubr.bf16.mxu0 0
    %258 = vmatmul.mubr.bf16.gmra.mrb[0].mxu0 %v80
    %v259 = vpop.f32.mrb[0].mxu0
    %v260 = vadd.f32 %v201, %v259
    %v261 = vpop.f32.mrb[0].mxu0
    %v262 = vpop.f32.mrb[0].mxu0
    %v263 = vadd.f32 %v201, %v262
    %v264 = vpop.f32.mrb[0].mxu0
    %265 = vmatprep.mubr.bf16.mxu0 0
    %266 = vmatmul.mubr.bf16.gmra.mrb[0].mxu0 %v83
    %v267 = vpop.f32.mrb[0].mxu0
    %v268 = vadd.f32 %v201, %v267
    %v269 = vpop.f32.mrb[0].mxu0
    %v270 = vpop.f32.mrb[0].mxu0
    %v271 = vadd.f32 %v201, %v270
    %v272 = vpop.f32.mrb[0].mxu0
    %273 = vmatprep.mubr.bf16.mxu0 0
    %274 = vmatmul.mubr.bf16.gmra.mrb[0].mxu0 %v86
    %v275 = vpop.f32.mrb[0].mxu0
    %v276 = vadd.f32 %v201, %v275
    %v277 = vpop.f32.mrb[0].mxu0
    %v278 = vpop.f32.mrb[0].mxu0
    %v279 = vadd.f32 %v201, %v278
    %v280 = vpop.f32.mrb[0].mxu0
    %281 = vmatprep.mubr.bf16.mxu0 0
    %282 = vmatmul.mubr.bf16.gmra.mrb[0].mxu0 %v89
    %v283 = vpop.f32.mrb[0].mxu0
    %v284 = vadd.f32 %v201, %v283
    %v285 = vpop.f32.mrb[0].mxu0
    %v286 = vpop.f32.mrb[0].mxu0
    %v287 = vadd.f32 %v201, %v286
    %v288 = vpop.f32.mrb[0].mxu0
    %289 = vmatprep.mubr.bf16.mxu0 0
    %290 = vmatmul.mubr.bf16.gmra.mrb[0].mxu0 %v92
    %v291 = vpop.f32.mrb[0].mxu0
    %v292 = vadd.f32 %v201, %v291
    %v293 = vpop.f32.mrb[0].mxu0
    %v294 = vpop.f32.mrb[0].mxu0
    %v295 = vadd.f32 %v201, %v294
    %v296 = vpop.f32.mrb[0].mxu0
    %297 = vmatprep.mubr.bf16.mxu0 0
    %298 = vmatmul.mubr.bf16.gmra.mrb[0].mxu0 %v95
    %v299 = vpop.f32.mrb[0].mxu0
    %v300 = vadd.f32 %v201, %v299
    %v301 = vpop.f32.mrb[0].mxu0
    %v302 = vpop.f32.mrb[0].mxu0
    %v303 = vadd.f32 %v201, %v302
    %v304 = vpop.f32.mrb[0].mxu0
    %305 = vdwg.mxu0
    %v306 = vpack.c.bf16 %v135, %v132
    %v307 = vpack.c.bf16 %v143, %v140
    %v308 = vpack.c.bf16 %v151, %v148
    %v309 = vpack.c.bf16 %v159, %v156
    %v310 = vpack.c.bf16 %v167, %v164
    %v311 = vpack.c.bf16 %v175, %v172
    %v312 = vpack.c.bf16 %v183, %v180
    %v313 = vpack.c.bf16 %v191, %v188
    %v314 = vld [vmem:[%s6] sm:$0xf]
    %v315 = vld [vmem:[%s6 + $0x4] sm:$0xf]
    %v316 = vld [vmem:[%s7] sm:$0x1]
    %v318 = vlaneseq
    %v319 = vshrl.u32 %v318, 7
    %v320 = vsub.s32 0, %v319
    %v321 = vrot.slane %v316, %v320
    %v325 = vunpack.c.l.b16 %v314
    %v326 = vunpack.c.l.b16 %v315
    %v327 = vpack.c.b16 %v326, %v325
    %v330 = vsel %vm72, %v306, 0
    %v333 = vsel %vm72, %v307, 0
    %v336 = vsel %vm72, %v308, 0
    %v339 = vsel %vm72, %v309, 0
    %v342 = vsel %vm72, %v310, 0
    %v345 = vsel %vm72, %v311, 0
    %v348 = vsel %vm72, %v312, 0
    %v351 = vsel %vm72, %v313, 0
    %353 = vmatprep.subr.bf16.mxu0 0
    %354 = vmatpush1.bf16.msra.mxu0 %v327
    %355 = vmatprep.subr.bf16.mxu0 0
    %356 = vmatpush1.bf16.msra.mxu0 0
    %357 = vmatprep.subr.bf16.mxu0 0
    %358 = vmatpush1.bf16.msra.mxu0 0
    %359 = vmatprep.subr.bf16.mxu0 0
    %360 = vmatpush1.bf16.msra.mxu0 0
    %361 = vmatprep.subr.bf16.mxu0 0
    %362 = vmatpush1.bf16.msra.mxu0 0
    %363 = vmatprep.subr.bf16.mxu0 0
    %364 = vmatpush1.bf16.msra.mxu0 0
    %365 = vmatprep.subr.bf16.mxu0 0
    %366 = vmatpush1.bf16.msra.mxu0 0
    %367 = vmatprep.subr.bf16.mxu0 0
    %368 = vmatpush1.bf16.msra.mxu0 0
    %369 = vmatprep.subr.bf16.mxu0 0
    %370 = vmatpush1.bf16.msra.mxu0 0
    %371 = vmatprep.subr.bf16.mxu0 0
    %372 = vmatpush1.bf16.msra.mxu0 0
    %373 = vmatprep.subr.bf16.mxu0 0
    %374 = vmatpush1.bf16.msra.mxu0 0
    %375 = vmatprep.subr.bf16.mxu0 0
    %376 = vmatpush1.bf16.msra.mxu0 0
    %377 = vmatprep.subr.bf16.mxu0 0
    %378 = vmatpush1.bf16.msra.mxu0 0
    %379 = vmatprep.subr.bf16.mxu0 0
    %380 = vmatpush1.bf16.msra.mxu0 0
    %381 = vmatprep.subr.bf16.mxu0 0
    %382 = vmatpush1.bf16.msra.mxu0 0
    %383 = vmatprep.subr.bf16.mxu0 0
    %384 = vmatpush1.bf16.msra.mxu0 0
    %385 = vmatprep.mubr.bf16.mxu0 0
    %386 = vmatmul.mubr.bf16.gmra.mrb[0].mxu0 %v330
    %v387 = vpop.f32.mrb[0].mxu0
    %v388 = vadd.f32 %v321, %v387
    %v389 = vpop.f32.mrb[0].mxu0
    %v390 = vpop.f32.mrb[0].mxu0
    %v391 = vadd.f32 %v321, %v390
    %v392 = vpop.f32.mrb[0].mxu0
    %393 = vmatprep.mubr.bf16.mxu0 0
    %394 = vmatmul.mubr.bf16.gmra.mrb[0].mxu0 %v333
    %v395 = vpop.f32.mrb[0].mxu0
    %v396 = vadd.f32 %v321, %v395
    %v397 = vpop.f32.mrb[0].mxu0
    %v398 = vpop.f32.mrb[0].mxu0
    %v399 = vadd.f32 %v321, %v398
    %v400 = vpop.f32.mrb[0].mxu0
    %401 = vmatprep.mubr.bf16.mxu0 0
    %402 = vmatmul.mubr.bf16.gmra.mrb[0].mxu0 %v336
    %v403 = vpop.f32.mrb[0].mxu0
    %v404 = vadd.f32 %v321, %v403
    %v405 = vpop.f32.mrb[0].mxu0
    %v406 = vpop.f32.mrb[0].mxu0
    %v407 = vadd.f32 %v321, %v406
    %v408 = vpop.f32.mrb[0].mxu0
    %409 = vmatprep.mubr.bf16.mxu0 0
    %410 = vmatmul.mubr.bf16.gmra.mrb[0].mxu0 %v339
    %v411 = vpop.f32.mrb[0].mxu0
    %v412 = vadd.f32 %v321, %v411
    %v413 = vpop.f32.mrb[0].mxu0
    %v414 = vpop.f32.mrb[0].mxu0
    %v415 = vadd.f32 %v321, %v414
    %v416 = vpop.f32.mrb[0].mxu0
    %417 = vmatprep.mubr.bf16.mxu0 0
    %418 = vmatmul.mubr.bf16.gmra.mrb[0].mxu0 %v342
    %v419 = vpop.f32.mrb[0].mxu0
    %v420 = vadd.f32 %v321, %v419
    %v421 = vpop.f32.mrb[0].mxu0
    %v422 = vpop.f32.mrb[0].mxu0
    %v423 = vadd.f32 %v321, %v422
    %v424 = vpop.f32.mrb[0].mxu0
    %425 = vmatprep.mubr.bf16.mxu0 0
    %426 = vmatmul.mubr.bf16.gmra.mrb[0].mxu0 %v345
    %v427 = vpop.f32.mrb[0].mxu0
    %v428 = vadd.f32 %v321, %v427
    %v429 = vpop.f32.mrb[0].mxu0
    %v430 = vpop.f32.mrb[0].mxu0
    %v431 = vadd.f32 %v321, %v430
    %v432 = vpop.f32.mrb[0].mxu0
    %433 = vmatprep.mubr.bf16.mxu0 0
    %434 = vmatmul.mubr.bf16.gmra.mrb[0].mxu0 %v348
    %v435 = vpop.f32.mrb[0].mxu0
    %v436 = vadd.f32 %v321, %v435
    %v437 = vpop.f32.mrb[0].mxu0
    %v438 = vpop.f32.mrb[0].mxu0
    %v439 = vadd.f32 %v321, %v438
    %v440 = vpop.f32.mrb[0].mxu0
    %441 = vmatprep.mubr.bf16.mxu0 0
    %442 = vmatmul.mubr.bf16.gmra.mrb[0].mxu0 %v351
    %v443 = vpop.f32.mrb[0].mxu0
    %v444 = vadd.f32 %v321, %v443
    %v445 = vpop.f32.mrb[0].mxu0
    %v446 = vpop.f32.mrb[0].mxu0
    %v447 = vadd.f32 %v321, %v446
    %v448 = vpop.f32.mrb[0].mxu0
    %449 = vdwg.mxu0
    %450 = vst.msk [vmem:[%s8] sm:$0xff] %vm72, %v132
    %451 = vst.msk [vmem:[%s8 + $0x8] sm:$0xff] %vm72, %v135
    %452 = vst.msk [vmem:[%s8 + $0x10] sm:$0xff] %vm72, %v140
    %453 = vst.msk [vmem:[%s8 + $0x18] sm:$0xff] %vm72, %v143
    %454 = vst.msk [vmem:[%s8 + $0x20] sm:$0xff] %vm72, %v148
    %455 = vst.msk [vmem:[%s8 + $0x28] sm:$0xff] %vm72, %v151
    %456 = vst.msk [vmem:[%s8 + $0x30] sm:$0xff] %vm72, %v156
    %457 = vst.msk [vmem:[%s8 + $0x38] sm:$0xff] %vm72, %v159
    %458 = vst.msk [vmem:[%s8 + $0x40] sm:$0xff] %vm72, %v164
    %459 = vst.msk [vmem:[%s8 + $0x48] sm:$0xff] %vm72, %v167
    %460 = vst.msk [vmem:[%s8 + $0x50] sm:$0xff] %vm72, %v172
    %461 = vst.msk [vmem:[%s8 + $0x58] sm:$0xff] %vm72, %v175
    %462 = vst.msk [vmem:[%s8 + $0x60] sm:$0xff] %vm72, %v180
    %463 = vst.msk [vmem:[%s8 + $0x68] sm:$0xff] %vm72, %v183
    %464 = vst.msk [vmem:[%s8 + $0x70] sm:$0xff] %vm72, %v188
    %465 = vst.msk [vmem:[%s8 + $0x78] sm:$0xff] %vm72, %v191
    %v466 = vld [vmem:[%s1] sm:$0xff]
    %v467 = vld [vmem:[%s1 + $0x8] sm:$0xff]
    %v468 = vld [vmem:[%s1 + $0x10] sm:$0xff]
    %v469 = vld [vmem:[%s1 + $0x18] sm:$0xff]
    %v470 = vld [vmem:[%s1 + $0x20] sm:$0xff]
    %v471 = vld [vmem:[%s1 + $0x28] sm:$0xff]
    %v472 = vld [vmem:[%s1 + $0x30] sm:$0xff]
    %v473 = vld [vmem:[%s1 + $0x38] sm:$0xff]
    %v474 = vld [vmem:[%s1 + $0x40] sm:$0xff]
    %v475 = vld [vmem:[%s1 + $0x48] sm:$0xff]
    %v476 = vld [vmem:[%s1 + $0x50] sm:$0xff]
    %v477 = vld [vmem:[%s1 + $0x58] sm:$0xff]
    %v478 = vld [vmem:[%s1 + $0x60] sm:$0xff]
    %v479 = vld [vmem:[%s1 + $0x68] sm:$0xff]
    %v480 = vld [vmem:[%s1 + $0x70] sm:$0xff]
    %v481 = vld [vmem:[%s1 + $0x78] sm:$0xff]
    %v482 = vadd.f32 %v466, %v244
    %v483 = vadd.f32 %v467, %v247
    %v484 = vadd.f32 %v468, %v252
    %v485 = vadd.f32 %v469, %v255
    %v486 = vadd.f32 %v470, %v260
    %v487 = vadd.f32 %v471, %v263
    %v488 = vadd.f32 %v472, %v268
    %v489 = vadd.f32 %v473, %v271
    %v490 = vadd.f32 %v474, %v276
    %v491 = vadd.f32 %v475, %v279
    %v492 = vadd.f32 %v476, %v284
    %v493 = vadd.f32 %v477, %v287
    %v494 = vadd.f32 %v478, %v292
    %v495 = vadd.f32 %v479, %v295
    %v496 = vadd.f32 %v480, %v300
    %v497 = vadd.f32 %v481, %v303
    %v498 = vadd.f32 %v482, %v388
    %v499 = vadd.f32 %v483, %v391
    %v500 = vadd.f32 %v484, %v396
    %v501 = vadd.f32 %v485, %v399
    %v502 = vadd.f32 %v486, %v404
    %v503 = vadd.f32 %v487, %v407
    %v504 = vadd.f32 %v488, %v412
    %v505 = vadd.f32 %v489, %v415
    %v506 = vadd.f32 %v490, %v420
    %v507 = vadd.f32 %v491, %v423
    %v508 = vadd.f32 %v492, %v428
    %v509 = vadd.f32 %v493, %v431
    %v510 = vadd.f32 %v494, %v436
    %v511 = vadd.f32 %v495, %v439
    %v512 = vadd.f32 %v496, %v444
    %v513 = vadd.f32 %v497, %v447
    %v514 = vmax.f32 %v498, 0.0
    %v515 = vmax.f32 %v499, 0.0
    %v516 = vmax.f32 %v500, 0.0
    %v517 = vmax.f32 %v501, 0.0
    %v518 = vmax.f32 %v502, 0.0
    %v519 = vmax.f32 %v503, 0.0
    %v520 = vmax.f32 %v504, 0.0
    %v521 = vmax.f32 %v505, 0.0
    %v522 = vmax.f32 %v506, 0.0
    %v523 = vmax.f32 %v507, 0.0
    %v524 = vmax.f32 %v508, 0.0
    %v525 = vmax.f32 %v509, 0.0
    %v526 = vmax.f32 %v510, 0.0
    %v527 = vmax.f32 %v511, 0.0
    %v528 = vmax.f32 %v512, 0.0
    %v529 = vmax.f32 %v513, 0.0
    %530 = vst.msk [vmem:[#allocation2] sm:$0xff] %vm72, %v514
    %531 = vst.msk [vmem:[#allocation2 + $0x8] sm:$0xff] %vm72, %v515
    %532 = vst.msk [vmem:[#allocation2 + $0x10] sm:$0xff] %vm72, %v516
    %533 = vst.msk [vmem:[#allocation2 + $0x18] sm:$0xff] %vm72, %v517
    %534 = vst.msk [vmem:[#allocation2 + $0x20] sm:$0xff] %vm72, %v518
    %535 = vst.msk [vmem:[#allocation2 + $0x28] sm:$0xff] %vm72, %v519
    %536 = vst.msk [vmem:[#allocation2 + $0x30] sm:$0xff] %vm72, %v520
    %537 = vst.msk [vmem:[#allocation2 + $0x38] sm:$0xff] %vm72, %v521
    %538 = vst.msk [vmem:[#allocation2 + $0x40] sm:$0xff] %vm72, %v522
    %539 = vst.msk [vmem:[#allocation2 + $0x48] sm:$0xff] %vm72, %v523
    %540 = vst.msk [vmem:[#allocation2 + $0x50] sm:$0xff] %vm72, %v524
    %541 = vst.msk [vmem:[#allocation2 + $0x58] sm:$0xff] %vm72, %v525
    %542 = vst.msk [vmem:[#allocation2 + $0x60] sm:$0xff] %vm72, %v526
    %543 = vst.msk [vmem:[#allocation2 + $0x68] sm:$0xff] %vm72, %v527
    %544 = vst.msk [vmem:[#allocation2 + $0x70] sm:$0xff] %vm72, %v528
    %545 = vst.msk [vmem:[#allocation2 + $0x78] sm:$0xff] %vm72, %v529
    // Predicated region
    $region34: #{mpii_4_forward.28} parent=1 // pred_check
      _
    $region35: #{mpii_4_forward.28} parent=1 // pred_check_branch
      %547 = sbr.rel (0) target = $region37
    $region36: #{mpii_4_forward.28} parent=1 // pred_region
      _
    $region37: #{mpii_4_forward.28} parent=1 // pred_fallthru
      _
    // Predicated region
    $region38: #{mpii_4_forward.28} parent=1 // pred_check
      _
    $region39: #{mpii_4_forward.28} parent=1 // pred_check_branch
      %549 = sbr.rel (0) target = $region41
    $region40: #{mpii_4_forward.28} parent=1 // pred_region
      %s551 = ssub.s32 2048, 2048
      %552 = vsyncadd [#allocation3], %s551
      %s553 = sshll.u32 [#allocation2], 4
      %s554 = int_to_ptr.vmem [resolvable:$true] %s553
      %559 = dma.vmem_to_hbm [thread:$0]  %s554, 2048, %s9, [#allocation3], 128, 128, 8
    $region41: #{mpii_4_forward.28} parent=1 // pred_fallthru
      _
    // Predicated region
    $region42: #{mpii_4_forward.28} parent=1 // pred_check
      _
    $region43: #{mpii_4_forward.28} parent=1 // pred_check_branch
      %561 = sbr.rel (0) target = $region45
    $region44: #{mpii_4_forward.28} parent=1 // pred_region
      _
    $region45: #{mpii_4_forward.28} parent=1 // pred_fallthru
      _
    // Predicated region
    $region46: #{mpii_4_forward.28} parent=1 // pred_check
      _
    $region47: #{mpii_4_forward.28} parent=1 // pred_check_branch
      %563 = sbr.rel (0) target = $region49
    $region48: #{mpii_4_forward.28} parent=1 // pred_region
      %564 = dma.done [#allocation3], 2048
    $region49: #{mpii_4_forward.28} parent=1 // pred_fallthru
      _
    %565 = vsyncpa [#allocation3], 1

</llo_original>
